<compile_context>
chip_gen: v7x
topology: tpu7x:2x2x1
jax: 0.10.0
libtpu: 0.0.40
codegen_flags: <defaults>
</compile_context>

<pallas_src>
import numpy as np
import jax
import jax.numpy as jnp
from jax import lax
from jax.experimental import pallas as pl
from jax.experimental.pallas import tpu as pltpu


# ------------------------------ fused kernel -------------------------------- #

def net_kernel(x5_ref,    # (24*bt, 140) bf16  row-im2col input: row r*bt+b holds x[b, r:r+5, :]
               w1b_ref,   # (140, 512)  bf16   banded conv1 weight (even/odd-w column blocks)
               b1_ref,    # (1, 256)    f32    conv1 bias tiled over pooled columns (pad 0)
               w2b_ref,   # (5, 256, 512) bf16 banded conv2 weight per kh
               b2_ref,    # (1, 256)    f32    conv2 bias tiled over pooled columns (pad 0)
               fw1_ref,   # (4, 256, H) bf16   fc1 weight per pooled row (rows >=200 are 0)
               fb1_ref,   # (1, H)      f32
               fw2_ref,   # (H, 128)    bf16   fc2 weight, cols >=10 are 0
               fb2_ref,   # (1, 128)    f32    fc2 bias, cols >=10 are -1e30
               o_ref,     # (bt, 128)   f32    log_softmax output (cols >=10 = pad)
               c1_ref,    # VMEM (24*bt, 512) f32  conv1 pre-activation
               p1_ref,    # VMEM (12*bt, 256) bf16 pool1 + bias + relu
               c2_ref):   # VMEM (8*bt, 512)  f32  conv2 pre-activation
    bt = o_ref.shape[0]
    H = fw1_ref.shape[2]

    # ---- conv1: ONE banded matmul over (rows, batch) in M; single store ----
    c1_ref[...] = jnp.dot(x5_ref[...], w1b_ref[...],
                          preferred_element_type=jnp.float32)          # (24bt, 512)

    # ---- pool1 (2x2/2) + bias + ReLU (pool commutes with +bias and ReLU) ----
    # Lane layout of c1: [even-w block | odd-w block], each block = j*20 + c.
    b1 = b1_ref[...]
    for p in range(12):                                 # pooled output row
        r0 = c1_ref[(2 * p) * bt:(2 * p + 1) * bt, :]   # conv row 2p    (bt,512)
        r1 = c1_ref[(2 * p + 1) * bt:(2 * p + 2) * bt, :]
        rm = jnp.maximum(r0, r1)
        pooled = jnp.maximum(rm[:, :256], rm[:, 256:])  # even/odd column max (bt,256)
        p1_ref[p * bt:(p + 1) * bt, :] = jnp.maximum(pooled + b1, 0.0).astype(jnp.bfloat16)

    # ---- conv2: 5 banded matmuls (one per kh), accumulated in VMEM ----
    for kh in range(5):
        lhs = p1_ref[kh * bt:(kh + 8) * bt, :]          # pooled rows kh..kh+7 (8bt,256) bf16
        t = jnp.dot(lhs, w2b_ref[kh], preferred_element_type=jnp.float32)  # (8bt,512)
        if kh == 0:
            c2_ref[...] = t
        else:
            c2_ref[...] += t

    # ---- pool2 + bias + ReLU fused with fc1 (4 matmuls, K=256) ----
    b2 = b2_ref[...]
    acc = jnp.zeros((bt, H), jnp.float32)
    for q in range(4):                                  # pooled output row
        r0 = c2_ref[(2 * q) * bt:(2 * q + 1) * bt, :]
        r1 = c2_ref[(2 * q + 1) * bt:(2 * q + 2) * bt, :]
        rm = jnp.maximum(r0, r1)
        pooled = jnp.maximum(rm[:, :256], rm[:, 256:])  # (bt,256), lanes j*50+co (pad 0)
        act = jnp.maximum(pooled + b2, 0.0).astype(jnp.bfloat16)
        acc = acc + jnp.dot(act, fw1_ref[q], preferred_element_type=jnp.float32)

    hid = jnp.maximum(acc + fb1_ref[...], 0.0).astype(jnp.bfloat16)     # (bt, H)

    # ---- fc2 + log_softmax (padded columns have logits -1e30 -> exp == 0) ----
    logits = jnp.dot(hid, fw2_ref[...],
                     preferred_element_type=jnp.float32) + fb2_ref[...]  # (bt,128)
    m = jnp.max(logits, axis=-1, keepdims=True)
    s = logits - m
    lse = jnp.log(jnp.sum(jnp.exp(s), axis=-1, keepdims=True))
    o_ref[...] = s - lse


# ------------------------------- wrapper ------------------------------------ #

def _round_up(a, b):
    return -(-a // b) * b


def net_forward(x_nchw, params, *, batch_tile=128):
    """x_nchw: (N, 1, 28, 28) float32. Returns (N, 10) log-probabilities.

    batch_tile: multiple of 8; 128 fits all generations (~16 MiB scoped VMEM),
    256 is also fine on v6e / v7x.
    """
    N = x_nchw.shape[0]
    assert batch_tile % 8 == 0
    hidden = params["fw1"].shape[2]

    bt = min(batch_tile, _round_up(N, 8))
    bt = max(8, _round_up(bt, 8))
    n_tiles = -(-N // bt)
    n_pad = n_tiles * bt

    x = x_nchw.reshape(N, 28, 28).astype(jnp.float32)
    if n_pad != N:
        x = jnp.concatenate([x, jnp.zeros((n_pad - N, 28, 28), x.dtype)], axis=0)

    # Host-side row-im2col (layout plumbing only, no arithmetic):
    # x5[(t*24 + r)*bt + b, kh*28 + j] = x[t*bt + b, r + kh, j]
    xr = x.reshape(n_tiles, bt, 28, 28)
    rows = [xr[:, :, r:r + 5, :].reshape(n_tiles, bt, 140) for r in range(24)]
    x5 = jnp.stack(rows, axis=1).reshape(n_tiles * 24 * bt, 140).astype(jnp.bfloat16)

    # advisory cost estimate (MXU flops only; exp/log transcendentals)
    flops = 2 * n_tiles * (24 * bt * 140 * 512 + 5 * 8 * bt * 256 * 512
                           + 4 * bt * 256 * hidden + bt * hidden * 128)
    weight_bytes = sum(int(params[k].size) * params[k].dtype.itemsize
                       for k in ("w1b", "b1", "w2b", "b2", "fw1", "fb1", "fw2", "fb2"))
    bytes_accessed = int(x5.size) * 2 + weight_bytes + n_pad * 128 * 4
    cost = pl.CostEstimate(flops=flops, transcendentals=n_pad * 129,
                           bytes_accessed=bytes_accessed)

    out = pl.pallas_call(
        net_kernel,
        out_shape=jax.ShapeDtypeStruct((n_pad, 128), jnp.float32),
        grid=(n_tiles,),
        in_specs=[
            pl.BlockSpec((24 * bt, 140), lambda n: (n, 0)),
            pl.BlockSpec((140, 512), lambda n: (0, 0)),
            pl.BlockSpec((1, 256), lambda n: (0, 0)),
            pl.BlockSpec((5, 256, 512), lambda n: (0, 0, 0)),
            pl.BlockSpec((1, 256), lambda n: (0, 0)),
            pl.BlockSpec((4, 256, hidden), lambda n: (0, 0, 0)),
            pl.BlockSpec((1, hidden), lambda n: (0, 0)),
            pl.BlockSpec((hidden, 128), lambda n: (0, 0)),
            pl.BlockSpec((1, 128), lambda n: (0, 0)),
        ],
        out_specs=pl.BlockSpec((bt, 128), lambda n: (n, 0)),
        scratch_shapes=[
            pltpu.VMEM((24 * bt, 512), jnp.float32),   # conv1 pre-activation
            pltpu.VMEM((12 * bt, 256), jnp.bfloat16),  # pool1 output (conv2 LHS)
            pltpu.VMEM((8 * bt, 512), jnp.float32),    # conv2 accumulator
        ],
        compiler_params=pltpu.CompilerParams(
            dimension_semantics=("parallel",),
            vmem_limit_bytes=40 * 1024 * 1024),
        cost_estimate=cost,
    )(x5, params["w1b"], params["b1"], params["w2b"], params["b2"],
      params["fw1"], params["fb1"], params["fw2"], params["fb2"])

    return out[:N, :10]


# ------------------------------- params -------------------------------------- #

def init_params(hidden_size, key):
    ks = jax.random.split(key, 8)
    conv1_w = jax.random.normal(ks[0], (20, 1, 5, 5), jnp.float32) * 0.10   # OIHW
    conv1_b = jax.random.normal(ks[1], (20,), jnp.float32) * 0.10
    conv2_w = jax.random.normal(ks[2], (50, 20, 5, 5), jnp.float32) * 0.05
    conv2_b = jax.random.normal(ks[3], (50,), jnp.float32) * 0.05
    # LayerChoice: candidate 0 = Linear(800, hidden) with bias.
    fc1_w = jax.random.normal(ks[4], (hidden_size, 800), jnp.float32) * 0.02
    fc1_b = jax.random.normal(ks[5], (hidden_size,), jnp.float32) * 0.02
    fc2_w = jax.random.normal(ks[6], (10, hidden_size), jnp.float32) * 0.10
    fc2_b = jax.random.normal(ks[7], (10,), jnp.float32) * 0.10

    c1w = np.asarray(conv1_w)
    c2w = np.asarray(conv2_w)
    f1w = np.asarray(fc1_w)
    f2w = np.asarray(fc2_w)

    # conv1 banded weight: rows kh*28 + input_col, column blocks ordered
    # [even output col | odd output col], each block index = (w//2)*20 + c.
    w1b = np.zeros((140, 512), np.float32)
    for w in range(24):
        base = (w % 2) * 256 + (w // 2) * 20
        for kh in range(5):
            for kw in range(5):
                w1b[kh * 28 + w + kw, base:base + 20] = c1w[:, 0, kh, kw]

    b1p = np.zeros((1, 256), np.float32)
    for j in range(12):
        b1p[0, j * 20:(j + 1) * 20] = np.asarray(conv1_b)

    # conv2 banded weight per kh: K index = j*20 + ci (pooled col j, cin ci),
    # column blocks [even w | odd w], block index = (w//2)*50 + co.
    w2b = np.zeros((5, 256, 512), np.float32)
    for kh in range(5):
        for w in range(8):
            base = (w % 2) * 256 + (w // 2) * 50
            for kw in range(5):
                j = w + kw
                w2b[kh, j * 20:(j + 1) * 20, base:base + 50] = c2w[:, :, kh, kw].T

    b2p = np.zeros((1, 256), np.float32)
    for j in range(4):
        b2p[0, j * 50:(j + 1) * 50] = np.asarray(conv2_b)

    # fc1 weight per pooled row q: row index j*50 + co must match PyTorch flatten
    # index co*16 + q*4 + j (x.view(-1, 800) on a (N,50,4,4) tensor).
    f1 = f1w.reshape(hidden_size, 50, 4, 4)            # [m, c, h, w]
    fw1 = np.zeros((4, 256, hidden_size), np.float32)
    for q in range(4):
        blk = np.transpose(f1[:, :, q, :], (2, 1, 0))  # (w, c, m)
        fw1[q, :200, :] = blk.reshape(200, hidden_size)

    fw2 = np.zeros((hidden_size, 128), np.float32)
    fw2[:, :10] = f2w.T
    fb2 = np.full((1, 128), -1e30, np.float32)
    fb2[0, :10] = np.asarray(fc2_b)

    kparams = {
        "w1b": jnp.asarray(w1b, jnp.bfloat16),
        "b1": jnp.asarray(b1p),
        "w2b": jnp.asarray(w2b, jnp.bfloat16),
        "b2": jnp.asarray(b2p),
        "fw1": jnp.asarray(fw1, jnp.bfloat16),
        "fb1": jnp.asarray(fc1_b).reshape(1, hidden_size),
        "fw2": jnp.asarray(fw2, jnp.bfloat16),
        "fb2": jnp.asarray(fb2),
    }
    raw = {"conv1_w": conv1_w, "conv1_b": conv1_b, "conv2_w": conv2_w, "conv2_b": conv2_b,
           "fc1_w": fc1_w, "fc1_b": fc1_b, "fc2_w": fc2_w, "fc2_b": fc2_b}
    return kparams, raw


# ------------------------------ reference ------------------------------------ #

def net_reference(x_nchw, p):
    dn = ("NCHW", "OIHW", "NCHW")
    hi = lax.Precision.HIGHEST
    y = lax.conv_general_dilated(x_nchw.astype(jnp.float32), p["conv1_w"], (1, 1), "VALID",
                                 dimension_numbers=dn, precision=hi)
    y = jax.nn.relu(y + p["conv1_b"][None, :, None, None])
    y = lax.reduce_window(y, -jnp.inf, lax.max, (1, 1, 2, 2), (1, 1, 2, 2), "VALID")
    y = lax.conv_general_dilated(y, p["conv2_w"], (1, 1), "VALID",
                                 dimension_numbers=dn, precision=hi)
    y = jax.nn.relu(y + p["conv2_b"][None, :, None, None])
    y = lax.reduce_window(y, -jnp.inf, lax.max, (1, 1, 2, 2), (1, 1, 2, 2), "VALID")
    y = y.reshape(y.shape[0], 800)
    y = jax.nn.relu(jnp.dot(y, p["fc1_w"].T, precision=hi) + p["fc1_b"])
    y = jnp.dot(y, p["fc2_w"].T, precision=hi) + p["fc2_b"]
    return jax.nn.log_softmax(y, axis=-1)


# -------------------------------- main ---------------------------------------- #

if __name__ == "__main__":
    hidden_size = 32
    key = jax.random.PRNGKey(0)
    k_x, k_p = jax.random.split(key)

    # Spatial size 28 is required by the module (flatten assumes 4*4*50).
    x = jax.random.normal(k_x, (2, 1, 28, 28), jnp.float32)
    kparams, raw = init_params(hidden_size, k_p)

    out = net_forward(x, kparams)
    out = jax.block_until_ready(out)

    assert out.shape == (2, 10), out.shape
    assert bool(jnp.all(jnp.isfinite(out))), "non-finite output"
    row_sums = jnp.exp(out).sum(axis=1)
    assert jnp.allclose(row_sums, 1.0, atol=1e-3), row_sums

    # Pure-JAX f32 reference (kernel uses bf16 matmul operands -> loose tolerance).
    ref = net_reference(x, raw)
    max_err = float(jnp.max(jnp.abs(out - ref)))
    assert max_err < 5e-2, f"max abs err vs reference: {max_err}"

    print("KERNEL_OK")
</pallas_src>

<mosaic_0001>
module attributes {stable_mosaic.version = 11 : i64} {
  func.func @net_kernel(%arg0: i32, %arg1: memref<192x140xbf16, #tpu.memory_space<vmem>>, %arg2: memref<140x512xbf16, #tpu.memory_space<vmem>>, %arg3: memref<1x256xf32, #tpu.memory_space<vmem>>, %arg4: memref<5x256x512xbf16, #tpu.memory_space<vmem>>, %arg5: memref<1x256xf32, #tpu.memory_space<vmem>>, %arg6: memref<4x256x32xbf16, #tpu.memory_space<vmem>>, %arg7: memref<1x32xf32, #tpu.memory_space<vmem>>, %arg8: memref<32x128xbf16, #tpu.memory_space<vmem>>, %arg9: memref<1x128xf32, #tpu.memory_space<vmem>>, %arg10: memref<8x128xf32, #tpu.memory_space<vmem>>, %arg11: memref<192x512xf32, #tpu.memory_space<vmem>>, %arg12: memref<96x256xbf16, #tpu.memory_space<vmem>>, %arg13: memref<64x512xf32, #tpu.memory_space<vmem>>) attributes {dimension_semantics = [#tpu.dimension_semantics<parallel>], iteration_bounds = array<i64: 1>, scalar_prefetch = 0 : i64, scratch_operands = 3 : i64, tpu.core_type = #tpu.core_type<tc>, window_params = [{transform_indices = @transform_0, window_bounds = array<i64: 192, 140>}, {pipeline_mode = #tpu.pipeline_mode<synchronous>, transform_indices = @transform_1, window_bounds = array<i64: 140, 512>}, {pipeline_mode = #tpu.pipeline_mode<synchronous>, transform_indices = @transform_2, window_bounds = array<i64: 1, 256>}, {pipeline_mode = #tpu.pipeline_mode<synchronous>, transform_indices = @transform_3, window_bounds = array<i64: 5, 256, 512>}, {pipeline_mode = #tpu.pipeline_mode<synchronous>, transform_indices = @transform_4, window_bounds = array<i64: 1, 256>}, {pipeline_mode = #tpu.pipeline_mode<synchronous>, transform_indices = @transform_5, window_bounds = array<i64: 4, 256, 32>}, {pipeline_mode = #tpu.pipeline_mode<synchronous>, transform_indices = @transform_6, window_bounds = array<i64: 1, 32>}, {pipeline_mode = #tpu.pipeline_mode<synchronous>, transform_indices = @transform_7, window_bounds = array<i64: 32, 128>}, {pipeline_mode = #tpu.pipeline_mode<synchronous>, transform_indices = @transform_8, window_bounds = array<i64: 1, 128>}, {transform_indices = @transform_9, window_bounds = array<i64: 8, 128>}]} {
    %c0 = arith.constant 0 : index
    %c0_0 = arith.constant 0 : index
    %0 = vector.load %arg1[%c0, %c0_0] : memref<192x140xbf16, #tpu.memory_space<vmem>>, vector<192x140xbf16>
    %c0_1 = arith.constant 0 : index
    %c0_2 = arith.constant 0 : index
    %1 = vector.load %arg2[%c0_1, %c0_2] : memref<140x512xbf16, #tpu.memory_space<vmem>>, vector<140x512xbf16>
    %cst = arith.constant dense<0.000000e+00> : vector<192x512xf32>
    %2 = tpu.matmul %0, %1, %cst {dimension_numbers = #tpu.dot_dimension_numbers<[1], [0], [0], [1], [0, 0, 1, 1], [], []>} : vector<192x140xbf16>, vector<140x512xbf16>, vector<192x512xf32> -> vector<192x512xf32>
    %c0_3 = arith.constant 0 : index
    %c0_4 = arith.constant 0 : index
    %3 = vector.load %arg11[%c0_3, %c0_4] : memref<192x512xf32, #tpu.memory_space<vmem>>, vector<192x512xf32>
    tpu.vector_store %arg11[%c0_3, %c0_4], %2 {strides = array<i32>} : memref<192x512xf32, #tpu.memory_space<vmem>>, vector<192x512xf32>,
    %c0_5 = arith.constant 0 : index
    %c0_6 = arith.constant 0 : index
    %4 = vector.load %arg3[%c0_5, %c0_6] : memref<1x256xf32, #tpu.memory_space<vmem>>, vector<1x256xf32>
    %c0_7 = arith.constant 0 : index
    %c0_8 = arith.constant 0 : index
    %5 = vector.load %arg11[%c0_7, %c0_8] : memref<192x512xf32, #tpu.memory_space<vmem>>, vector<8x512xf32>
    %c8 = arith.constant 8 : index
    %c0_9 = arith.constant 0 : index
    %6 = vector.load %arg11[%c8, %c0_9] : memref<192x512xf32, #tpu.memory_space<vmem>>, vector<8x512xf32>
    %7 = arith.maximumf %5, %6 : vector<8x512xf32>
    %8 = vector.extract_strided_slice %7 {offsets = [0, 0], sizes = [8, 256], strides = [1, 1]} : vector<8x512xf32> to vector<8x256xf32>
    %9 = vector.extract_strided_slice %7 {offsets = [0, 256], sizes = [8, 256], strides = [1, 1]} : vector<8x512xf32> to vector<8x256xf32>
    %10 = arith.maximumf %8, %9 : vector<8x256xf32>
    %11 = vector.broadcast %4 : vector<1x256xf32> to vector<8x256xf32>
    %12 = arith.addf %10, %11 : vector<8x256xf32>
    %cst_10 = arith.constant 0.000000e+00 : f32
    %13 = vector.broadcast %cst_10 : f32 to vector<8x256xf32>
    %14 = arith.maximumf %12, %13 : vector<8x256xf32>
    %15 = arith.truncf %14 : vector<8x256xf32> to vector<8x256xbf16>
    %c0_11 = arith.constant 0 : index
    %c0_12 = arith.constant 0 : index
    %16 = vector.load %arg12[%c0_11, %c0_12] : memref<96x256xbf16, #tpu.memory_space<vmem>>, vector<8x256xbf16>
    tpu.vector_store %arg12[%c0_11, %c0_12], %15 {strides = array<i32>} : memref<96x256xbf16, #tpu.memory_space<vmem>>, vector<8x256xbf16>,
    %c16 = arith.constant 16 : index
    %c0_13 = arith.constant 0 : index
    %17 = vector.load %arg11[%c16, %c0_13] : memref<192x512xf32, #tpu.memory_space<vmem>>, vector<8x512xf32>
    %c24 = arith.constant 24 : index
    %c0_14 = arith.constant 0 : index
    %18 = vector.load %arg11[%c24, %c0_14] : memref<192x512xf32, #tpu.memory_space<vmem>>, vector<8x512xf32>
    %19 = arith.maximumf %17, %18 : vector<8x512xf32>
    %20 = vector.extract_strided_slice %19 {offsets = [0, 0], sizes = [8, 256], strides = [1, 1]} : vector<8x512xf32> to vector<8x256xf32>
    %21 = vector.extract_strided_slice %19 {offsets = [0, 256], sizes = [8, 256], strides = [1, 1]} : vector<8x512xf32> to vector<8x256xf32>
    %22 = arith.maximumf %20, %21 : vector<8x256xf32>
    %23 = vector.broadcast %4 : vector<1x256xf32> to vector<8x256xf32>
    %24 = arith.addf %22, %23 : vector<8x256xf32>
    %cst_15 = arith.constant 0.000000e+00 : f32
    %25 = vector.broadcast %cst_15 : f32 to vector<8x256xf32>
    %26 = arith.maximumf %24, %25 : vector<8x256xf32>
    %27 = arith.truncf %26 : vector<8x256xf32> to vector<8x256xbf16>
    %c8_16 = arith.constant 8 : index
    %c0_17 = arith.constant 0 : index
    %28 = vector.load %arg12[%c8_16, %c0_17] : memref<96x256xbf16, #tpu.memory_space<vmem>>, vector<8x256xbf16>
    tpu.vector_store %arg12[%c8_16, %c0_17], %27 {strides = array<i32>} : memref<96x256xbf16, #tpu.memory_space<vmem>>, vector<8x256xbf16>,
    %c32 = arith.constant 32 : index
    %c0_18 = arith.constant 0 : index
    %29 = vector.load %arg11[%c32, %c0_18] : memref<192x512xf32, #tpu.memory_space<vmem>>, vector<8x512xf32>
    %c40 = arith.constant 40 : index
    %c0_19 = arith.constant 0 : index
    %30 = vector.load %arg11[%c40, %c0_19] : memref<192x512xf32, #tpu.memory_space<vmem>>, vector<8x512xf32>
    %31 = arith.maximumf %29, %30 : vector<8x512xf32>
    %32 = vector.extract_strided_slice %31 {offsets = [0, 0], sizes = [8, 256], strides = [1, 1]} : vector<8x512xf32> to vector<8x256xf32>
    %33 = vector.extract_strided_slice %31 {offsets = [0, 256], sizes = [8, 256], strides = [1, 1]} : vector<8x512xf32> to vector<8x256xf32>
    %34 = arith.maximumf %32, %33 : vector<8x256xf32>
    %35 = vector.broadcast %4 : vector<1x256xf32> to vector<8x256xf32>
    %36 = arith.addf %34, %35 : vector<8x256xf32>
    %cst_20 = arith.constant 0.000000e+00 : f32
    %37 = vector.broadcast %cst_20 : f32 to vector<8x256xf32>
    %38 = arith.maximumf %36, %37 : vector<8x256xf32>
    %39 = arith.truncf %38 : vector<8x256xf32> to vector<8x256xbf16>
    %c16_21 = arith.constant 16 : index
    %c0_22 = arith.constant 0 : index
    %40 = vector.load %arg12[%c16_21, %c0_22] : memref<96x256xbf16, #tpu.memory_space<vmem>>, vector<8x256xbf16>
    tpu.vector_store %arg12[%c16_21, %c0_22], %39 {strides = array<i32>} : memref<96x256xbf16, #tpu.memory_space<vmem>>, vector<8x256xbf16>,
    %c48 = arith.constant 48 : index
    %c0_23 = arith.constant 0 : index
    %41 = vector.load %arg11[%c48, %c0_23] : memref<192x512xf32, #tpu.memory_space<vmem>>, vector<8x512xf32>
    %c56 = arith.constant 56 : index
    %c0_24 = arith.constant 0 : index
    %42 = vector.load %arg11[%c56, %c0_24] : memref<192x512xf32, #tpu.memory_space<vmem>>, vector<8x512xf32>
    %43 = arith.maximumf %41, %42 : vector<8x512xf32>
    %44 = vector.extract_strided_slice %43 {offsets = [0, 0], sizes = [8, 256], strides = [1, 1]} : vector<8x512xf32> to vector<8x256xf32>
    %45 = vector.extract_strided_slice %43 {offsets = [0, 256], sizes = [8, 256], strides = [1, 1]} : vector<8x512xf32> to vector<8x256xf32>
    %46 = arith.maximumf %44, %45 : vector<8x256xf32>
    %47 = vector.broadcast %4 : vector<1x256xf32> to vector<8x256xf32>
    %48 = arith.addf %46, %47 : vector<8x256xf32>
    %cst_25 = arith.constant 0.000000e+00 : f32
    %49 = vector.broadcast %cst_25 : f32 to vector<8x256xf32>
    %50 = arith.maximumf %48, %49 : vector<8x256xf32>
    %51 = arith.truncf %50 : vector<8x256xf32> to vector<8x256xbf16>
    %c24_26 = arith.constant 24 : index
    %c0_27 = arith.constant 0 : index
    %52 = vector.load %arg12[%c24_26, %c0_27] : memref<96x256xbf16, #tpu.memory_space<vmem>>, vector<8x256xbf16>
    tpu.vector_store %arg12[%c24_26, %c0_27], %51 {strides = array<i32>} : memref<96x256xbf16, #tpu.memory_space<vmem>>, vector<8x256xbf16>,
    %c64 = arith.constant 64 : index
    %c0_28 = arith.constant 0 : index
    %53 = vector.load %arg11[%c64, %c0_28] : memref<192x512xf32, #tpu.memory_space<vmem>>, vector<8x512xf32>
    %c72 = arith.constant 72 : index
    %c0_29 = arith.constant 0 : index
    %54 = vector.load %arg11[%c72, %c0_29] : memref<192x512xf32, #tpu.memory_space<vmem>>, vector<8x512xf32>
    %55 = arith.maximumf %53, %54 : vector<8x512xf32>
    %56 = vector.extract_strided_slice %55 {offsets = [0, 0], sizes = [8, 256], strides = [1, 1]} : vector<8x512xf32> to vector<8x256xf32>
    %57 = vector.extract_strided_slice %55 {offsets = [0, 256], sizes = [8, 256], strides = [1, 1]} : vector<8x512xf32> to vector<8x256xf32>
    %58 = arith.maximumf %56, %57 : vector<8x256xf32>
    %59 = vector.broadcast %4 : vector<1x256xf32> to vector<8x256xf32>
    %60 = arith.addf %58, %59 : vector<8x256xf32>
    %cst_30 = arith.constant 0.000000e+00 : f32
    %61 = vector.broadcast %cst_30 : f32 to vector<8x256xf32>
    %62 = arith.maximumf %60, %61 : vector<8x256xf32>
    %63 = arith.truncf %62 : vector<8x256xf32> to vector<8x256xbf16>
    %c32_31 = arith.constant 32 : index
    %c0_32 = arith.constant 0 : index
    %64 = vector.load %arg12[%c32_31, %c0_32] : memref<96x256xbf16, #tpu.memory_space<vmem>>, vector<8x256xbf16>
    tpu.vector_store %arg12[%c32_31, %c0_32], %63 {strides = array<i32>} : memref<96x256xbf16, #tpu.memory_space<vmem>>, vector<8x256xbf16>,
    %c80 = arith.constant 80 : index
    %c0_33 = arith.constant 0 : index
    %65 = vector.load %arg11[%c80, %c0_33] : memref<192x512xf32, #tpu.memory_space<vmem>>, vector<8x512xf32>
    %c88 = arith.constant 88 : index
    %c0_34 = arith.constant 0 : index
    %66 = vector.load %arg11[%c88, %c0_34] : memref<192x512xf32, #tpu.memory_space<vmem>>, vector<8x512xf32>
    %67 = arith.maximumf %65, %66 : vector<8x512xf32>
    %68 = vector.extract_strided_slice %67 {offsets = [0, 0], sizes = [8, 256], strides = [1, 1]} : vector<8x512xf32> to vector<8x256xf32>
    %69 = vector.extract_strided_slice %67 {offsets = [0, 256], sizes = [8, 256], strides = [1, 1]} : vector<8x512xf32> to vector<8x256xf32>
    %70 = arith.maximumf %68, %69 : vector<8x256xf32>
    %71 = vector.broadcast %4 : vector<1x256xf32> to vector<8x256xf32>
    %72 = arith.addf %70, %71 : vector<8x256xf32>
    %cst_35 = arith.constant 0.000000e+00 : f32
    %73 = vector.broadcast %cst_35 : f32 to vector<8x256xf32>
    %74 = arith.maximumf %72, %73 : vector<8x256xf32>
    %75 = arith.truncf %74 : vector<8x256xf32> to vector<8x256xbf16>
    %c40_36 = arith.constant 40 : index
    %c0_37 = arith.constant 0 : index
    %76 = vector.load %arg12[%c40_36, %c0_37] : memref<96x256xbf16, #tpu.memory_space<vmem>>, vector<8x256xbf16>
    tpu.vector_store %arg12[%c40_36, %c0_37], %75 {strides = array<i32>} : memref<96x256xbf16, #tpu.memory_space<vmem>>, vector<8x256xbf16>,
    %c96 = arith.constant 96 : index
    %c0_38 = arith.constant 0 : index
    %77 = vector.load %arg11[%c96, %c0_38] : memref<192x512xf32, #tpu.memory_space<vmem>>, vector<8x512xf32>
    %c104 = arith.constant 104 : index
    %c0_39 = arith.constant 0 : index
    %78 = vector.load %arg11[%c104, %c0_39] : memref<192x512xf32, #tpu.memory_space<vmem>>, vector<8x512xf32>
    %79 = arith.maximumf %77, %78 : vector<8x512xf32>
    %80 = vector.extract_strided_slice %79 {offsets = [0, 0], sizes = [8, 256], strides = [1, 1]} : vector<8x512xf32> to vector<8x256xf32>
    %81 = vector.extract_strided_slice %79 {offsets = [0, 256], sizes = [8, 256], strides = [1, 1]} : vector<8x512xf32> to vector<8x256xf32>
    %82 = arith.maximumf %80, %81 : vector<8x256xf32>
    %83 = vector.broadcast %4 : vector<1x256xf32> to vector<8x256xf32>
    %84 = arith.addf %82, %83 : vector<8x256xf32>
    %cst_40 = arith.constant 0.000000e+00 : f32
    %85 = vector.broadcast %cst_40 : f32 to vector<8x256xf32>
    %86 = arith.maximumf %84, %85 : vector<8x256xf32>
    %87 = arith.truncf %86 : vector<8x256xf32> to vector<8x256xbf16>
    %c48_41 = arith.constant 48 : index
    %c0_42 = arith.constant 0 : index
    %88 = vector.load %arg12[%c48_41, %c0_42] : memref<96x256xbf16, #tpu.memory_space<vmem>>, vector<8x256xbf16>
    tpu.vector_store %arg12[%c48_41, %c0_42], %87 {strides = array<i32>} : memref<96x256xbf16, #tpu.memory_space<vmem>>, vector<8x256xbf16>,
    %c112 = arith.constant 112 : index
    %c0_43 = arith.constant 0 : index
    %89 = vector.load %arg11[%c112, %c0_43] : memref<192x512xf32, #tpu.memory_space<vmem>>, vector<8x512xf32>
    %c120 = arith.constant 120 : index
    %c0_44 = arith.constant 0 : index
    %90 = vector.load %arg11[%c120, %c0_44] : memref<192x512xf32, #tpu.memory_space<vmem>>, vector<8x512xf32>
    %91 = arith.maximumf %89, %90 : vector<8x512xf32>
    %92 = vector.extract_strided_slice %91 {offsets = [0, 0], sizes = [8, 256], strides = [1, 1]} : vector<8x512xf32> to vector<8x256xf32>
    %93 = vector.extract_strided_slice %91 {offsets = [0, 256], sizes = [8, 256], strides = [1, 1]} : vector<8x512xf32> to vector<8x256xf32>
    %94 = arith.maximumf %92, %93 : vector<8x256xf32>
    %95 = vector.broadcast %4 : vector<1x256xf32> to vector<8x256xf32>
    %96 = arith.addf %94, %95 : vector<8x256xf32>
    %cst_45 = arith.constant 0.000000e+00 : f32
    %97 = vector.broadcast %cst_45 : f32 to vector<8x256xf32>
    %98 = arith.maximumf %96, %97 : vector<8x256xf32>
    %99 = arith.truncf %98 : vector<8x256xf32> to vector<8x256xbf16>
    %c56_46 = arith.constant 56 : index
    %c0_47 = arith.constant 0 : index
    %100 = vector.load %arg12[%c56_46, %c0_47] : memref<96x256xbf16, #tpu.memory_space<vmem>>, vector<8x256xbf16>
    tpu.vector_store %arg12[%c56_46, %c0_47], %99 {strides = array<i32>} : memref<96x256xbf16, #tpu.memory_space<vmem>>, vector<8x256xbf16>,
    %c128 = arith.constant 128 : index
    %c0_48 = arith.constant 0 : index
    %101 = vector.load %arg11[%c128, %c0_48] : memref<192x512xf32, #tpu.memory_space<vmem>>, vector<8x512xf32>
    %c136 = arith.constant 136 : index
    %c0_49 = arith.constant 0 : index
    %102 = vector.load %arg11[%c136, %c0_49] : memref<192x512xf32, #tpu.memory_space<vmem>>, vector<8x512xf32>
    %103 = arith.maximumf %101, %102 : vector<8x512xf32>
    %104 = vector.extract_strided_slice %103 {offsets = [0, 0], sizes = [8, 256], strides = [1, 1]} : vector<8x512xf32> to vector<8x256xf32>
    %105 = vector.extract_strided_slice %103 {offsets = [0, 256], sizes = [8, 256], strides = [1, 1]} : vector<8x512xf32> to vector<8x256xf32>
    %106 = arith.maximumf %104, %105 : vector<8x256xf32>
    %107 = vector.broadcast %4 : vector<1x256xf32> to vector<8x256xf32>
    %108 = arith.addf %106, %107 : vector<8x256xf32>
    %cst_50 = arith.constant 0.000000e+00 : f32
    %109 = vector.broadcast %cst_50 : f32 to vector<8x256xf32>
    %110 = arith.maximumf %108, %109 : vector<8x256xf32>
    %111 = arith.truncf %110 : vector<8x256xf32> to vector<8x256xbf16>
    %c64_51 = arith.constant 64 : index
    %c0_52 = arith.constant 0 : index
    %112 = vector.load %arg12[%c64_51, %c0_52] : memref<96x256xbf16, #tpu.memory_space<vmem>>, vector<8x256xbf16>
    tpu.vector_store %arg12[%c64_51, %c0_52], %111 {strides = array<i32>} : memref<96x256xbf16, #tpu.memory_space<vmem>>, vector<8x256xbf16>,
    %c144 = arith.constant 144 : index
    %c0_53 = arith.constant 0 : index
    %113 = vector.load %arg11[%c144, %c0_53] : memref<192x512xf32, #tpu.memory_space<vmem>>, vector<8x512xf32>
    %c152 = arith.constant 152 : index
    %c0_54 = arith.constant 0 : index
    %114 = vector.load %arg11[%c152, %c0_54] : memref<192x512xf32, #tpu.memory_space<vmem>>, vector<8x512xf32>
    %115 = arith.maximumf %113, %114 : vector<8x512xf32>
    %116 = vector.extract_strided_slice %115 {offsets = [0, 0], sizes = [8, 256], strides = [1, 1]} : vector<8x512xf32> to vector<8x256xf32>
    %117 = vector.extract_strided_slice %115 {offsets = [0, 256], sizes = [8, 256], strides = [1, 1]} : vector<8x512xf32> to vector<8x256xf32>
    %118 = arith.maximumf %116, %117 : vector<8x256xf32>
    %119 = vector.broadcast %4 : vector<1x256xf32> to vector<8x256xf32>
    %120 = arith.addf %118, %119 : vector<8x256xf32>
    %cst_55 = arith.constant 0.000000e+00 : f32
    %121 = vector.broadcast %cst_55 : f32 to vector<8x256xf32>
    %122 = arith.maximumf %120, %121 : vector<8x256xf32>
    %123 = arith.truncf %122 : vector<8x256xf32> to vector<8x256xbf16>
    %c72_56 = arith.constant 72 : index
    %c0_57 = arith.constant 0 : index
    %124 = vector.load %arg12[%c72_56, %c0_57] : memref<96x256xbf16, #tpu.memory_space<vmem>>, vector<8x256xbf16>
    tpu.vector_store %arg12[%c72_56, %c0_57], %123 {strides = array<i32>} : memref<96x256xbf16, #tpu.memory_space<vmem>>, vector<8x256xbf16>,
    %c160 = arith.constant 160 : index
    %c0_58 = arith.constant 0 : index
    %125 = vector.load %arg11[%c160, %c0_58] : memref<192x512xf32, #tpu.memory_space<vmem>>, vector<8x512xf32>
    %c168 = arith.constant 168 : index
    %c0_59 = arith.constant 0 : index
    %126 = vector.load %arg11[%c168, %c0_59] : memref<192x512xf32, #tpu.memory_space<vmem>>, vector<8x512xf32>
    %127 = arith.maximumf %125, %126 : vector<8x512xf32>
    %128 = vector.extract_strided_slice %127 {offsets = [0, 0], sizes = [8, 256], strides = [1, 1]} : vector<8x512xf32> to vector<8x256xf32>
    %129 = vector.extract_strided_slice %127 {offsets = [0, 256], sizes = [8, 256], strides = [1, 1]} : vector<8x512xf32> to vector<8x256xf32>
    %130 = arith.maximumf %128, %129 : vector<8x256xf32>
    %131 = vector.broadcast %4 : vector<1x256xf32> to vector<8x256xf32>
    %132 = arith.addf %130, %131 : vector<8x256xf32>
    %cst_60 = arith.constant 0.000000e+00 : f32
    %133 = vector.broadcast %cst_60 : f32 to vector<8x256xf32>
    %134 = arith.maximumf %132, %133 : vector<8x256xf32>
    %135 = arith.truncf %134 : vector<8x256xf32> to vector<8x256xbf16>
    %c80_61 = arith.constant 80 : index
    %c0_62 = arith.constant 0 : index
    %136 = vector.load %arg12[%c80_61, %c0_62] : memref<96x256xbf16, #tpu.memory_space<vmem>>, vector<8x256xbf16>
    tpu.vector_store %arg12[%c80_61, %c0_62], %135 {strides = array<i32>} : memref<96x256xbf16, #tpu.memory_space<vmem>>, vector<8x256xbf16>,
    %c176 = arith.constant 176 : index
    %c0_63 = arith.constant 0 : index
    %137 = vector.load %arg11[%c176, %c0_63] : memref<192x512xf32, #tpu.memory_space<vmem>>, vector<8x512xf32>
    %c184 = arith.constant 184 : index
    %c0_64 = arith.constant 0 : index
    %138 = vector.load %arg11[%c184, %c0_64] : memref<192x512xf32, #tpu.memory_space<vmem>>, vector<8x512xf32>
    %139 = arith.maximumf %137, %138 : vector<8x512xf32>
    %140 = vector.extract_strided_slice %139 {offsets = [0, 0], sizes = [8, 256], strides = [1, 1]} : vector<8x512xf32> to vector<8x256xf32>
    %141 = vector.extract_strided_slice %139 {offsets = [0, 256], sizes = [8, 256], strides = [1, 1]} : vector<8x512xf32> to vector<8x256xf32>
    %142 = arith.maximumf %140, %141 : vector<8x256xf32>
    %143 = vector.broadcast %4 : vector<1x256xf32> to vector<8x256xf32>
    %144 = arith.addf %142, %143 : vector<8x256xf32>
    %cst_65 = arith.constant 0.000000e+00 : f32
    %145 = vector.broadcast %cst_65 : f32 to vector<8x256xf32>
    %146 = arith.maximumf %144, %145 : vector<8x256xf32>
    %147 = arith.truncf %146 : vector<8x256xf32> to vector<8x256xbf16>
    %c88_66 = arith.constant 88 : index
    %c0_67 = arith.constant 0 : index
    %148 = vector.load %arg12[%c88_66, %c0_67] : memref<96x256xbf16, #tpu.memory_space<vmem>>, vector<8x256xbf16>
    tpu.vector_store %arg12[%c88_66, %c0_67], %147 {strides = array<i32>} : memref<96x256xbf16, #tpu.memory_space<vmem>>, vector<8x256xbf16>,
    %c0_68 = arith.constant 0 : index
    %c0_69 = arith.constant 0 : index
    %149 = vector.load %arg12[%c0_68, %c0_69] : memref<96x256xbf16, #tpu.memory_space<vmem>>, vector<64x256xbf16>
    %c0_70 = arith.constant 0 : index
    %c0_71 = arith.constant 0 : index
    %c0_72 = arith.constant 0 : index
    %150 = vector.load %arg4[%c0_70, %c0_71, %c0_72] : memref<5x256x512xbf16, #tpu.memory_space<vmem>>, vector<1x256x512xbf16>
    %151 = vector.shape_cast %150 : vector<1x256x512xbf16> to vector<256x512xbf16>
    %cst_73 = arith.constant dense<0.000000e+00> : vector<64x512xf32>
    %152 = tpu.matmul %149, %151, %cst_73 {dimension_numbers = #tpu.dot_dimension_numbers<[1], [0], [0], [1], [0, 0, 1, 1], [], []>} : vector<64x256xbf16>, vector<256x512xbf16>, vector<64x512xf32> -> vector<64x512xf32>
    %c0_74 = arith.constant 0 : index
    %c0_75 = arith.constant 0 : index
    %153 = vector.load %arg13[%c0_74, %c0_75] : memref<64x512xf32, #tpu.memory_space<vmem>>, vector<64x512xf32>
    tpu.vector_store %arg13[%c0_74, %c0_75], %152 {strides = array<i32>} : memref<64x512xf32, #tpu.memory_space<vmem>>, vector<64x512xf32>,
    %c8_76 = arith.constant 8 : index
    %c0_77 = arith.constant 0 : index
    %154 = vector.load %arg12[%c8_76, %c0_77] : memref<96x256xbf16, #tpu.memory_space<vmem>>, vector<64x256xbf16>
    %c1 = arith.constant 1 : index
    %c0_78 = arith.constant 0 : index
    %c0_79 = arith.constant 0 : index
    %155 = vector.load %arg4[%c1, %c0_78, %c0_79] : memref<5x256x512xbf16, #tpu.memory_space<vmem>>, vector<1x256x512xbf16>
    %156 = vector.shape_cast %155 : vector<1x256x512xbf16> to vector<256x512xbf16>
    %cst_80 = arith.constant dense<0.000000e+00> : vector<64x512xf32>
    %157 = tpu.matmul %154, %156, %cst_80 {dimension_numbers = #tpu.dot_dimension_numbers<[1], [0], [0], [1], [0, 0, 1, 1], [], []>} : vector<64x256xbf16>, vector<256x512xbf16>, vector<64x512xf32> -> vector<64x512xf32>
    %c0_81 = arith.constant 0 : index
    %c0_82 = arith.constant 0 : index
    %158 = vector.load %arg13[%c0_81, %c0_82] : memref<64x512xf32, #tpu.memory_space<vmem>>, vector<64x512xf32>
    %159 = arith.addf %158, %157 : vector<64x512xf32>
    %c0_83 = arith.constant 0 : index
    %c0_84 = arith.constant 0 : index
    %160 = vector.load %arg13[%c0_83, %c0_84] : memref<64x512xf32, #tpu.memory_space<vmem>>, vector<64x512xf32>
    tpu.vector_store %arg13[%c0_83, %c0_84], %159 {strides = array<i32>} : memref<64x512xf32, #tpu.memory_space<vmem>>, vector<64x512xf32>,
    %c16_85 = arith.constant 16 : index
    %c0_86 = arith.constant 0 : index
    %161 = vector.load %arg12[%c16_85, %c0_86] : memref<96x256xbf16, #tpu.memory_space<vmem>>, vector<64x256xbf16>
    %c2 = arith.constant 2 : index
    %c0_87 = arith.constant 0 : index
    %c0_88 = arith.constant 0 : index
    %162 = vector.load %arg4[%c2, %c0_87, %c0_88] : memref<5x256x512xbf16, #tpu.memory_space<vmem>>, vector<1x256x512xbf16>
    %163 = vector.shape_cast %162 : vector<1x256x512xbf16> to vector<256x512xbf16>
    %cst_89 = arith.constant dense<0.000000e+00> : vector<64x512xf32>
    %164 = tpu.matmul %161, %163, %cst_89 {dimension_numbers = #tpu.dot_dimension_numbers<[1], [0], [0], [1], [0, 0, 1, 1], [], []>} : vector<64x256xbf16>, vector<256x512xbf16>, vector<64x512xf32> -> vector<64x512xf32>
    %c0_90 = arith.constant 0 : index
    %c0_91 = arith.constant 0 : index
    %165 = vector.load %arg13[%c0_90, %c0_91] : memref<64x512xf32, #tpu.memory_space<vmem>>, vector<64x512xf32>
    %166 = arith.addf %165, %164 : vector<64x512xf32>
    %c0_92 = arith.constant 0 : index
    %c0_93 = arith.constant 0 : index
    %167 = vector.load %arg13[%c0_92, %c0_93] : memref<64x512xf32, #tpu.memory_space<vmem>>, vector<64x512xf32>
    tpu.vector_store %arg13[%c0_92, %c0_93], %166 {strides = array<i32>} : memref<64x512xf32, #tpu.memory_space<vmem>>, vector<64x512xf32>,
    %c24_94 = arith.constant 24 : index
    %c0_95 = arith.constant 0 : index
    %168 = vector.load %arg12[%c24_94, %c0_95] : memref<96x256xbf16, #tpu.memory_space<vmem>>, vector<64x256xbf16>
    %c3 = arith.constant 3 : index
    %c0_96 = arith.constant 0 : index
    %c0_97 = arith.constant 0 : index
    %169 = vector.load %arg4[%c3, %c0_96, %c0_97] : memref<5x256x512xbf16, #tpu.memory_space<vmem>>, vector<1x256x512xbf16>
    %170 = vector.shape_cast %169 : vector<1x256x512xbf16> to vector<256x512xbf16>
    %cst_98 = arith.constant dense<0.000000e+00> : vector<64x512xf32>
    %171 = tpu.matmul %168, %170, %cst_98 {dimension_numbers = #tpu.dot_dimension_numbers<[1], [0], [0], [1], [0, 0, 1, 1], [], []>} : vector<64x256xbf16>, vector<256x512xbf16>, vector<64x512xf32> -> vector<64x512xf32>
    %c0_99 = arith.constant 0 : index
    %c0_100 = arith.constant 0 : index
    %172 = vector.load %arg13[%c0_99, %c0_100] : memref<64x512xf32, #tpu.memory_space<vmem>>, vector<64x512xf32>
    %173 = arith.addf %172, %171 : vector<64x512xf32>
    %c0_101 = arith.constant 0 : index
    %c0_102 = arith.constant 0 : index
    %174 = vector.load %arg13[%c0_101, %c0_102] : memref<64x512xf32, #tpu.memory_space<vmem>>, vector<64x512xf32>
    tpu.vector_store %arg13[%c0_101, %c0_102], %173 {strides = array<i32>} : memref<64x512xf32, #tpu.memory_space<vmem>>, vector<64x512xf32>,
    %c32_103 = arith.constant 32 : index
    %c0_104 = arith.constant 0 : index
    %175 = vector.load %arg12[%c32_103, %c0_104] : memref<96x256xbf16, #tpu.memory_space<vmem>>, vector<64x256xbf16>
    %c4 = arith.constant 4 : index
    %c0_105 = arith.constant 0 : index
    %c0_106 = arith.constant 0 : index
    %176 = vector.load %arg4[%c4, %c0_105, %c0_106] : memref<5x256x512xbf16, #tpu.memory_space<vmem>>, vector<1x256x512xbf16>
    %177 = vector.shape_cast %176 : vector<1x256x512xbf16> to vector<256x512xbf16>
    %cst_107 = arith.constant dense<0.000000e+00> : vector<64x512xf32>
    %178 = tpu.matmul %175, %177, %cst_107 {dimension_numbers = #tpu.dot_dimension_numbers<[1], [0], [0], [1], [0, 0, 1, 1], [], []>} : vector<64x256xbf16>, vector<256x512xbf16>, vector<64x512xf32> -> vector<64x512xf32>
    %c0_108 = arith.constant 0 : index
    %c0_109 = arith.constant 0 : index
    %179 = vector.load %arg13[%c0_108, %c0_109] : memref<64x512xf32, #tpu.memory_space<vmem>>, vector<64x512xf32>
    %180 = arith.addf %179, %178 : vector<64x512xf32>
    %c0_110 = arith.constant 0 : index
    %c0_111 = arith.constant 0 : index
    %181 = vector.load %arg13[%c0_110, %c0_111] : memref<64x512xf32, #tpu.memory_space<vmem>>, vector<64x512xf32>
    tpu.vector_store %arg13[%c0_110, %c0_111], %180 {strides = array<i32>} : memref<64x512xf32, #tpu.memory_space<vmem>>, vector<64x512xf32>,
    %c0_112 = arith.constant 0 : index
    %c0_113 = arith.constant 0 : index
    %182 = vector.load %arg5[%c0_112, %c0_113] : memref<1x256xf32, #tpu.memory_space<vmem>>, vector<1x256xf32>
    %cst_114 = arith.constant 0.000000e+00 : f32
    %183 = vector.broadcast %cst_114 : f32 to vector<8x32xf32>
    %c0_115 = arith.constant 0 : index
    %c0_116 = arith.constant 0 : index
    %184 = vector.load %arg13[%c0_115, %c0_116] : memref<64x512xf32, #tpu.memory_space<vmem>>, vector<8x512xf32>
    %c8_117 = arith.constant 8 : index
    %c0_118 = arith.constant 0 : index
    %185 = vector.load %arg13[%c8_117, %c0_118] : memref<64x512xf32, #tpu.memory_space<vmem>>, vector<8x512xf32>
    %186 = arith.maximumf %184, %185 : vector<8x512xf32>
    %187 = vector.extract_strided_slice %186 {offsets = [0, 0], sizes = [8, 256], strides = [1, 1]} : vector<8x512xf32> to vector<8x256xf32>
    %188 = vector.extract_strided_slice %186 {offsets = [0, 256], sizes = [8, 256], strides = [1, 1]} : vector<8x512xf32> to vector<8x256xf32>
    %189 = arith.maximumf %187, %188 : vector<8x256xf32>
    %190 = vector.broadcast %182 : vector<1x256xf32> to vector<8x256xf32>
    %191 = arith.addf %189, %190 : vector<8x256xf32>
    %cst_119 = arith.constant 0.000000e+00 : f32
    %192 = vector.broadcast %cst_119 : f32 to vector<8x256xf32>
    %193 = arith.maximumf %191, %192 : vector<8x256xf32>
    %194 = arith.truncf %193 : vector<8x256xf32> to vector<8x256xbf16>
    %c0_120 = arith.constant 0 : index
    %c0_121 = arith.constant 0 : index
    %c0_122 = arith.constant 0 : index
    %195 = vector.load %arg6[%c0_120, %c0_121, %c0_122] : memref<4x256x32xbf16, #tpu.memory_space<vmem>>, vector<1x256x32xbf16>
    %196 = vector.shape_cast %195 : vector<1x256x32xbf16> to vector<256x32xbf16>
    %cst_123 = arith.constant dense<0.000000e+00> : vector<8x32xf32>
    %197 = tpu.matmul %194, %196, %cst_123 {dimension_numbers = #tpu.dot_dimension_numbers<[1], [0], [0], [1], [0, 0, 1, 1], [], []>} : vector<8x256xbf16>, vector<256x32xbf16>, vector<8x32xf32> -> vector<8x32xf32>
    %198 = arith.addf %183, %197 : vector<8x32xf32>
    %c16_124 = arith.constant 16 : index
    %c0_125 = arith.constant 0 : index
    %199 = vector.load %arg13[%c16_124, %c0_125] : memref<64x512xf32, #tpu.memory_space<vmem>>, vector<8x512xf32>
    %c24_126 = arith.constant 24 : index
    %c0_127 = arith.constant 0 : index
    %200 = vector.load %arg13[%c24_126, %c0_127] : memref<64x512xf32, #tpu.memory_space<vmem>>, vector<8x512xf32>
    %201 = arith.maximumf %199, %200 : vector<8x512xf32>
    %202 = vector.extract_strided_slice %201 {offsets = [0, 0], sizes = [8, 256], strides = [1, 1]} : vector<8x512xf32> to vector<8x256xf32>
    %203 = vector.extract_strided_slice %201 {offsets = [0, 256], sizes = [8, 256], strides = [1, 1]} : vector<8x512xf32> to vector<8x256xf32>
    %204 = arith.maximumf %202, %203 : vector<8x256xf32>
    %205 = vector.broadcast %182 : vector<1x256xf32> to vector<8x256xf32>
    %206 = arith.addf %204, %205 : vector<8x256xf32>
    %cst_128 = arith.constant 0.000000e+00 : f32
    %207 = vector.broadcast %cst_128 : f32 to vector<8x256xf32>
    %208 = arith.maximumf %206, %207 : vector<8x256xf32>
    %209 = arith.truncf %208 : vector<8x256xf32> to vector<8x256xbf16>
    %c1_129 = arith.constant 1 : index
    %c0_130 = arith.constant 0 : index
    %c0_131 = arith.constant 0 : index
    %210 = vector.load %arg6[%c1_129, %c0_130, %c0_131] : memref<4x256x32xbf16, #tpu.memory_space<vmem>>, vector<1x256x32xbf16>
    %211 = vector.shape_cast %210 : vector<1x256x32xbf16> to vector<256x32xbf16>
    %cst_132 = arith.constant dense<0.000000e+00> : vector<8x32xf32>
    %212 = tpu.matmul %209, %211, %cst_132 {dimension_numbers = #tpu.dot_dimension_numbers<[1], [0], [0], [1], [0, 0, 1, 1], [], []>} : vector<8x256xbf16>, vector<256x32xbf16>, vector<8x32xf32> -> vector<8x32xf32>
    %213 = arith.addf %198, %212 : vector<8x32xf32>
    %c32_133 = arith.constant 32 : index
    %c0_134 = arith.constant 0 : index
    %214 = vector.load %arg13[%c32_133, %c0_134] : memref<64x512xf32, #tpu.memory_space<vmem>>, vector<8x512xf32>
    %c40_135 = arith.constant 40 : index
    %c0_136 = arith.constant 0 : index
    %215 = vector.load %arg13[%c40_135, %c0_136] : memref<64x512xf32, #tpu.memory_space<vmem>>, vector<8x512xf32>
    %216 = arith.maximumf %214, %215 : vector<8x512xf32>
    %217 = vector.extract_strided_slice %216 {offsets = [0, 0], sizes = [8, 256], strides = [1, 1]} : vector<8x512xf32> to vector<8x256xf32>
    %218 = vector.extract_strided_slice %216 {offsets = [0, 256], sizes = [8, 256], strides = [1, 1]} : vector<8x512xf32> to vector<8x256xf32>
    %219 = arith.maximumf %217, %218 : vector<8x256xf32>
    %220 = vector.broadcast %182 : vector<1x256xf32> to vector<8x256xf32>
    %221 = arith.addf %219, %220 : vector<8x256xf32>
    %cst_137 = arith.constant 0.000000e+00 : f32
    %222 = vector.broadcast %cst_137 : f32 to vector<8x256xf32>
    %223 = arith.maximumf %221, %222 : vector<8x256xf32>
    %224 = arith.truncf %223 : vector<8x256xf32> to vector<8x256xbf16>
    %c2_138 = arith.constant 2 : index
    %c0_139 = arith.constant 0 : index
    %c0_140 = arith.constant 0 : index
    %225 = vector.load %arg6[%c2_138, %c0_139, %c0_140] : memref<4x256x32xbf16, #tpu.memory_space<vmem>>, vector<1x256x32xbf16>
    %226 = vector.shape_cast %225 : vector<1x256x32xbf16> to vector<256x32xbf16>
    %cst_141 = arith.constant dense<0.000000e+00> : vector<8x32xf32>
    %227 = tpu.matmul %224, %226, %cst_141 {dimension_numbers = #tpu.dot_dimension_numbers<[1], [0], [0], [1], [0, 0, 1, 1], [], []>} : vector<8x256xbf16>, vector<256x32xbf16>, vector<8x32xf32> -> vector<8x32xf32>
    %228 = arith.addf %213, %227 : vector<8x32xf32>
    %c48_142 = arith.constant 48 : index
    %c0_143 = arith.constant 0 : index
    %229 = vector.load %arg13[%c48_142, %c0_143] : memref<64x512xf32, #tpu.memory_space<vmem>>, vector<8x512xf32>
    %c56_144 = arith.constant 56 : index
    %c0_145 = arith.constant 0 : index
    %230 = vector.load %arg13[%c56_144, %c0_145] : memref<64x512xf32, #tpu.memory_space<vmem>>, vector<8x512xf32>
    %231 = arith.maximumf %229, %230 : vector<8x512xf32>
    %232 = vector.extract_strided_slice %231 {offsets = [0, 0], sizes = [8, 256], strides = [1, 1]} : vector<8x512xf32> to vector<8x256xf32>
    %233 = vector.extract_strided_slice %231 {offsets = [0, 256], sizes = [8, 256], strides = [1, 1]} : vector<8x512xf32> to vector<8x256xf32>
    %234 = arith.maximumf %232, %233 : vector<8x256xf32>
    %235 = vector.broadcast %182 : vector<1x256xf32> to vector<8x256xf32>
    %236 = arith.addf %234, %235 : vector<8x256xf32>
    %cst_146 = arith.constant 0.000000e+00 : f32
    %237 = vector.broadcast %cst_146 : f32 to vector<8x256xf32>
    %238 = arith.maximumf %236, %237 : vector<8x256xf32>
    %239 = arith.truncf %238 : vector<8x256xf32> to vector<8x256xbf16>
    %c3_147 = arith.constant 3 : index
    %c0_148 = arith.constant 0 : index
    %c0_149 = arith.constant 0 : index
    %240 = vector.load %arg6[%c3_147, %c0_148, %c0_149] : memref<4x256x32xbf16, #tpu.memory_space<vmem>>, vector<1x256x32xbf16>
    %241 = vector.shape_cast %240 : vector<1x256x32xbf16> to vector<256x32xbf16>
    %cst_150 = arith.constant dense<0.000000e+00> : vector<8x32xf32>
    %242 = tpu.matmul %239, %241, %cst_150 {dimension_numbers = #tpu.dot_dimension_numbers<[1], [0], [0], [1], [0, 0, 1, 1], [], []>} : vector<8x256xbf16>, vector<256x32xbf16>, vector<8x32xf32> -> vector<8x32xf32>
    %243 = arith.addf %228, %242 : vector<8x32xf32>
    %c0_151 = arith.constant 0 : index
    %c0_152 = arith.constant 0 : index
    %244 = vector.load %arg7[%c0_151, %c0_152] : memref<1x32xf32, #tpu.memory_space<vmem>>, vector<1x32xf32>
    %245 = vector.broadcast %244 : vector<1x32xf32> to vector<8x32xf32>
    %246 = arith.addf %243, %245 : vector<8x32xf32>
    %cst_153 = arith.constant 0.000000e+00 : f32
    %247 = vector.broadcast %cst_153 : f32 to vector<8x32xf32>
    %248 = arith.maximumf %246, %247 : vector<8x32xf32>
    %249 = arith.truncf %248 : vector<8x32xf32> to vector<8x32xbf16>
    %c0_154 = arith.constant 0 : index
    %c0_155 = arith.constant 0 : index
    %250 = vector.load %arg8[%c0_154, %c0_155] : memref<32x128xbf16, #tpu.memory_space<vmem>>, vector<32x128xbf16>
    %cst_156 = arith.constant dense<0.000000e+00> : vector<8x128xf32>
    %251 = tpu.matmul %249, %250, %cst_156 {dimension_numbers = #tpu.dot_dimension_numbers<[1], [0], [0], [1], [0, 0, 1, 1], [], []>} : vector<8x32xbf16>, vector<32x128xbf16>, vector<8x128xf32> -> vector<8x128xf32>
    %c0_157 = arith.constant 0 : index
    %c0_158 = arith.constant 0 : index
    %252 = vector.load %arg9[%c0_157, %c0_158] : memref<1x128xf32, #tpu.memory_space<vmem>>, vector<1x128xf32>
    %253 = vector.broadcast %252 : vector<1x128xf32> to vector<8x128xf32>
    %254 = arith.addf %251, %253 : vector<8x128xf32>
    %cst_159 = arith.constant dense<0xFF800000> : vector<8xf32>
    %255 = vector.multi_reduction <maximumf>, %254, %cst_159 [1] : vector<8x128xf32> to vector<8xf32>
    %256 = vector.shape_cast %255 : vector<8xf32> to vector<8x1xf32>
    %257 = vector.broadcast %256 : vector<8x1xf32> to vector<8x128xf32>
    %258 = arith.subf %254, %257 : vector<8x128xf32>
    %259 = math.exp %258 : vector<8x128xf32>
    %cst_160 = arith.constant dense<0.000000e+00> : vector<8xf32>
    %260 = vector.multi_reduction <add>, %259, %cst_160 [1] : vector<8x128xf32> to vector<8xf32>
    %261 = vector.shape_cast %260 : vector<8xf32> to vector<8x1xf32>
    %262 = math.log %261 : vector<8x1xf32>
    %263 = vector.broadcast %262 : vector<8x1xf32> to vector<8x128xf32>
    %264 = arith.subf %258, %263 : vector<8x128xf32>
    %c0_161 = arith.constant 0 : index
    %c0_162 = arith.constant 0 : index
    %265 = vector.load %arg10[%c0_161, %c0_162] : memref<8x128xf32, #tpu.memory_space<vmem>>, vector<8x128xf32>
    tpu.vector_store %arg10[%c0_161, %c0_162], %264 {strides = array<i32>} : memref<8x128xf32, #tpu.memory_space<vmem>>, vector<8x128xf32>,
    return
  }
  func.func @transform_0(%arg0: i32) -> (i32, i32) {
    %c0_i32 = arith.constant 0 : i32
    %c0_i32_0 = arith.constant 0 : i32
    return %arg0, %c0_i32 : i32, i32
  }
  func.func @transform_1(%arg0: i32) -> (i32, i32) {
    %c0_i32 = arith.constant 0 : i32
    %c0_i32_0 = arith.constant 0 : i32
    %c0_i32_1 = arith.constant 0 : i32
    return %c0_i32, %c0_i32_0 : i32, i32
  }
  func.func @transform_2(%arg0: i32) -> (i32, i32) {
    %c0_i32 = arith.constant 0 : i32
    %c0_i32_0 = arith.constant 0 : i32
    %c0_i32_1 = arith.constant 0 : i32
    return %c0_i32, %c0_i32_0 : i32, i32
  }
  func.func @transform_3(%arg0: i32) -> (i32, i32, i32) {
    %c0_i32 = arith.constant 0 : i32
    %c0_i32_0 = arith.constant 0 : i32
    %c0_i32_1 = arith.constant 0 : i32
    %c0_i32_2 = arith.constant 0 : i32
    return %c0_i32, %c0_i32_0, %c0_i32_1 : i32, i32, i32
  }
  func.func @transform_4(%arg0: i32) -> (i32, i32) {
    %c0_i32 = arith.constant 0 : i32
    %c0_i32_0 = arith.constant 0 : i32
    %c0_i32_1 = arith.constant 0 : i32
    return %c0_i32, %c0_i32_0 : i32, i32
  }
  func.func @transform_5(%arg0: i32) -> (i32, i32, i32) {
    %c0_i32 = arith.constant 0 : i32
    %c0_i32_0 = arith.constant 0 : i32
    %c0_i32_1 = arith.constant 0 : i32
    %c0_i32_2 = arith.constant 0 : i32
    return %c0_i32, %c0_i32_0, %c0_i32_1 : i32, i32, i32
  }
  func.func @transform_6(%arg0: i32) -> (i32, i32) {
    %c0_i32 = arith.constant 0 : i32
    %c0_i32_0 = arith.constant 0 : i32
    %c0_i32_1 = arith.constant 0 : i32
    return %c0_i32, %c0_i32_0 : i32, i32
  }
  func.func @transform_7(%arg0: i32) -> (i32, i32) {
    %c0_i32 = arith.constant 0 : i32
    %c0_i32_0 = arith.constant 0 : i32
    %c0_i32_1 = arith.constant 0 : i32
    return %c0_i32, %c0_i32_0 : i32, i32
  }
  func.func @transform_8(%arg0: i32) -> (i32, i32) {
    %c0_i32 = arith.constant 0 : i32
    %c0_i32_0 = arith.constant 0 : i32
    %c0_i32_1 = arith.constant 0 : i32
    return %c0_i32, %c0_i32_0 : i32, i32
  }
  func.func @transform_9(%arg0: i32) -> (i32, i32) {
    %c0_i32 = arith.constant 0 : i32
    %c0_i32_0 = arith.constant 0 : i32
    return %arg0, %c0_i32 : i32, i32
  }
}

</mosaic_0001>

<llo_original>
// kernel: tpu_custom_call.1
$region0: #{tpu_custom_call.1}
  #allocation0 [shape = 'u32[]', space=smem, size = 0x4, offset = 0x4, fixed_abs, tag = 'smem constant byte address 0x4 - core index']
  #allocation1 [shape = 'u32[144,128]{1,0:T(1,128)}', space=vmem, size = 0x12000, scoped, tag = 'internal scratch']
  #allocation2 [shape = 'f32[192,512]{1,0:T(8,128)}', space=vmem, size = 0x60000, scoped, tag = 'scratch operand']
  #allocation3 [shape = 'bf16[96,256]{1,0:T(16,128)(2,1)}', space=vmem, size = 0xc000, scoped, tag = 'scratch operand']
  #allocation4 [shape = 'f32[64,512]{1,0:T(8,128)}', space=vmem, size = 0x20000, scoped, tag = 'scratch operand']
  %s0 = inlined_call_operand.vmem [shape: bf16[192,140], index: 0, kind: input, shape index: {}]
  %s1 = inlined_call_operand.hbm [shape: bf16[140,512], index: 1, kind: input, shape index: {}]
  %s2 = inlined_call_operand.hbm [shape: f32[1,256], index: 2, kind: input, shape index: {}]
  %s3 = inlined_call_operand.hbm [shape: bf16[5,256,512], index: 3, kind: input, shape index: {}]
  %s4 = inlined_call_operand.hbm [shape: f32[1,256], index: 4, kind: input, shape index: {}]
  %s5 = inlined_call_operand.vmem [shape: bf16[4,256,32], index: 5, kind: input, shape index: {}]
  %s6 = inlined_call_operand.hbm [shape: f32[1,32], index: 6, kind: input, shape index: {}]
  %s7 = inlined_call_operand.hbm [shape: bf16[32,128], index: 7, kind: input, shape index: {}]
  %s8 = inlined_call_operand.hbm [shape: f32[1,128], index: 8, kind: input, shape index: {}]
  %s9 = inlined_call_operand.hbm [shape: f32[8,128], index: 9, kind: output, shape index: {}]
  %s10 = sld [smem:[#allocation0]]
  $region74: #{tpu_custom_call.1} parent=0
    _
  %s12 = ssub.s32 1, %s10
  %s13 = scalar_select 0, %s12, %s10
  $region1: #{tpu_custom_call.1} parent=0
    #allocation5 [shape = 'u8[147456]{0}', space=vmem, size = 0x24000, scoped, tag = 'input window, operand 1, single buffered']
    #allocation6 [shape = 's32[1]{0}', space=sflag, size = 0x4, scoped, tag = 'scoped memory for tpu_custom_call.1']
    #allocation7 [shape = 's32[1]{0}', space=sflag, size = 0x4, scoped, tag = 'scoped memory for tpu_custom_call.1']
    #allocation8 [shape = 'u8[1024]{0}', space=vmem, size = 0x400, scoped, tag = 'input window, operand 2, single buffered']
    #allocation9 [shape = 's32[1]{0}', space=sflag, size = 0x4, scoped, tag = 'scoped memory for tpu_custom_call.1']
    #allocation10 [shape = 'u8[1310720]{0}', space=vmem, size = 0x140000, scoped, tag = 'input window, operand 3, single buffered']
    #allocation11 [shape = 'u8[1024]{0}', space=vmem, size = 0x400, scoped, tag = 'input window, operand 4, single buffered']
    #allocation12 [shape = 's32[1]{0}', space=sflag, size = 0x4, scoped, tag = 'scoped memory for tpu_custom_call.1']
    #allocation13 [shape = 'u8[512]{0}', space=vmem, size = 0x400, scoped, tag = 'input window, operand 6, single buffered']
    #allocation14 [shape = 'u8[8192]{0}', space=vmem, size = 0x2000, scoped, tag = 'input window, operand 7, single buffered']
    #allocation15 [shape = 's32[1]{0}', space=sflag, size = 0x4, scoped, tag = 'scoped memory for tpu_custom_call.1']
    #allocation16 [shape = 'u8[512]{0}', space=vmem, size = 0x400, scoped, tag = 'input window, operand 8, single buffered']
    #allocation17 [shape = 'u8[4096]{0}', space=vmem, size = 0x1000, scoped, tag = 'output window, operand 0, single buffered']
    %14 = vsyncpa [#allocation6], 0
    %15 = vsyncpa [#allocation9], 0
    %16 = vsyncpa [#allocation12], 0
    %17 = vsyncpa [#allocation15], 0
    %18 = vsyncpa [#allocation7], 0
    // Predicated region
    $region2: #{tpu_custom_call.1} parent=1 // pred_check
      _
    $region3: #{tpu_custom_call.1} parent=1 // pred_check_branch
      %20 = sbr.rel (0) target = $region5
    $region4: #{tpu_custom_call.1} parent=1 // pred_region
      _
    $region5: #{tpu_custom_call.1} parent=1 // pred_fallthru
      _
    // Predicated region
    $region6: #{tpu_custom_call.1} parent=1 // pred_check
      _
    $region7: #{tpu_custom_call.1} parent=1 // pred_check_branch
      %22 = sbr.rel (0) target = $region9
    $region8: #{tpu_custom_call.1} parent=1 // pred_region
      %s24 = ssub.s32 4608, 4608
      %25 = vsyncadd [#allocation6], %s24
      %s26 = sshll.u32 [#allocation5], 4
      %s27 = int_to_ptr.vmem [resolvable:$true] %s26
      %32 = dma.hbm_to_vmem [thread:$0]  %s1, 4608, %s27, [#allocation6], 256, 256, 16
    $region9: #{tpu_custom_call.1} parent=1 // pred_fallthru
      _
    // Predicated region
    $region10: #{tpu_custom_call.1} parent=1 // pred_check
      _
    $region11: #{tpu_custom_call.1} parent=1 // pred_check_branch
      %34 = sbr.rel (0) target = $region13
    $region12: #{tpu_custom_call.1} parent=1 // pred_region
      %s36 = ssub.s32 32, 32
      %37 = vsyncadd [#allocation9], %s36
      %s39 = sshll.u32 [#allocation8], 4
      %s40 = int_to_ptr.vmem [resolvable:$true] %s39
      %42 = dma.hbm_to_vmem [thread:$0]  %s2, 32, %s40, [#allocation9]
    $region13: #{tpu_custom_call.1} parent=1 // pred_fallthru
      _
    // Predicated region
    $region14: #{tpu_custom_call.1} parent=1 // pred_check
      _
    $region15: #{tpu_custom_call.1} parent=1 // pred_check_branch
      %44 = sbr.rel (0) target = $region17
    $region16: #{tpu_custom_call.1} parent=1 // pred_region
      %s46 = ssub.s32 40960, 40960
      %47 = vsyncadd [#allocation9], %s46
      %s48 = sshll.u32 [#allocation10], 4
      %s49 = int_to_ptr.vmem [resolvable:$true] %s48
      %54 = dma.hbm_to_vmem [thread:$0]  %s3, 40960, %s49, [#allocation9], 256, 256, 16
    $region17: #{tpu_custom_call.1} parent=1 // pred_fallthru
      _
    // Predicated region
    $region18: #{tpu_custom_call.1} parent=1 // pred_check
      _
    $region19: #{tpu_custom_call.1} parent=1 // pred_check_branch
      %56 = sbr.rel (0) target = $region21
    $region20: #{tpu_custom_call.1} parent=1 // pred_region
      %s58 = ssub.s32 32, 32
      %59 = vsyncadd [#allocation12], %s58
      %s61 = sshll.u32 [#allocation11], 4
      %s62 = int_to_ptr.vmem [resolvable:$true] %s61
      %64 = dma.hbm_to_vmem [thread:$0]  %s4, 32, %s62, [#allocation12]
    $region21: #{tpu_custom_call.1} parent=1 // pred_fallthru
      _
    // Predicated region
    $region22: #{tpu_custom_call.1} parent=1 // pred_check
      _
    $region23: #{tpu_custom_call.1} parent=1 // pred_check_branch
      %66 = sbr.rel (0) target = $region25
    $region24: #{tpu_custom_call.1} parent=1 // pred_region
      _
    $region25: #{tpu_custom_call.1} parent=1 // pred_fallthru
      _
    // Predicated region
    $region26: #{tpu_custom_call.1} parent=1 // pred_check
      _
    $region27: #{tpu_custom_call.1} parent=1 // pred_check_branch
      %68 = sbr.rel (0) target = $region29
    $region28: #{tpu_custom_call.1} parent=1 // pred_region
      %s70 = ssub.s32 16, 16
      %71 = vsyncadd [#allocation12], %s70
      %s73 = sshll.u32 [#allocation13], 4
      %s74 = int_to_ptr.vmem [resolvable:$true] %s73
      %76 = dma.hbm_to_vmem [thread:$0]  %s6, 16, %s74, [#allocation12]
    $region29: #{tpu_custom_call.1} parent=1 // pred_fallthru
      _
    // Predicated region
    $region30: #{tpu_custom_call.1} parent=1 // pred_check
      _
    $region31: #{tpu_custom_call.1} parent=1 // pred_check_branch
      %78 = sbr.rel (0) target = $region33
    $region32: #{tpu_custom_call.1} parent=1 // pred_region
      %s80 = ssub.s32 256, 256
      %81 = vsyncadd [#allocation15], %s80
      %s82 = sshll.u32 [#allocation14], 4
      %s83 = int_to_ptr.vmem [resolvable:$true] %s82
      %88 = dma.hbm_to_vmem [thread:$0]  %s7, 256, %s83, [#allocation15], 64, 64, 4
    $region33: #{tpu_custom_call.1} parent=1 // pred_fallthru
      _
    // Predicated region
    $region34: #{tpu_custom_call.1} parent=1 // pred_check
      _
    $region35: #{tpu_custom_call.1} parent=1 // pred_check_branch
      %90 = sbr.rel (0) target = $region37
    $region36: #{tpu_custom_call.1} parent=1 // pred_region
      %s92 = ssub.s32 16, 16
      %93 = vsyncadd [#allocation15], %s92
      %s95 = sshll.u32 [#allocation16], 4
      %s96 = int_to_ptr.vmem [resolvable:$true] %s95
      %98 = dma.hbm_to_vmem [thread:$0]  %s8, 16, %s96, [#allocation15]
    $region37: #{tpu_custom_call.1} parent=1 // pred_fallthru
      _
    // Predicated region
    $region38: #{tpu_custom_call.1} parent=1 // pred_check
      _
    $region39: #{tpu_custom_call.1} parent=1 // pred_check_branch
      %100 = sbr.rel (0) target = $region41
    $region40: #{tpu_custom_call.1} parent=1 // pred_region
      %101 = dma.done [#allocation6], 4608
    $region41: #{tpu_custom_call.1} parent=1 // pred_fallthru
      _
    // Predicated region
    $region42: #{tpu_custom_call.1} parent=1 // pred_check
      _
    $region43: #{tpu_custom_call.1} parent=1 // pred_check_branch
      %103 = sbr.rel (0) target = $region45
    $region44: #{tpu_custom_call.1} parent=1 // pred_region
      %104 = dma.done [#allocation9], 32
    $region45: #{tpu_custom_call.1} parent=1 // pred_fallthru
      _
    // Predicated region
    $region46: #{tpu_custom_call.1} parent=1 // pred_check
      _
    $region47: #{tpu_custom_call.1} parent=1 // pred_check_branch
      %106 = sbr.rel (0) target = $region49
    $region48: #{tpu_custom_call.1} parent=1 // pred_region
      %107 = dma.done [#allocation9], 40960
    $region49: #{tpu_custom_call.1} parent=1 // pred_fallthru
      _
    // Predicated region
    $region50: #{tpu_custom_call.1} parent=1 // pred_check
      _
    $region51: #{tpu_custom_call.1} parent=1 // pred_check_branch
      %109 = sbr.rel (0) target = $region53
    $region52: #{tpu_custom_call.1} parent=1 // pred_region
      %110 = dma.done [#allocation12], 32
    $region53: #{tpu_custom_call.1} parent=1 // pred_fallthru
      _
    // Predicated region
    $region54: #{tpu_custom_call.1} parent=1 // pred_check
      _
    $region55: #{tpu_custom_call.1} parent=1 // pred_check_branch
      %112 = sbr.rel (0) target = $region57
    $region56: #{tpu_custom_call.1} parent=1 // pred_region
      %113 = dma.done [#allocation12], 16
    $region57: #{tpu_custom_call.1} parent=1 // pred_fallthru
      _
    // Predicated region
    $region58: #{tpu_custom_call.1} parent=1 // pred_check
      _
    $region59: #{tpu_custom_call.1} parent=1 // pred_check_branch
      %115 = sbr.rel (0) target = $region61
    $region60: #{tpu_custom_call.1} parent=1 // pred_region
      %116 = dma.done [#allocation15], 256
    $region61: #{tpu_custom_call.1} parent=1 // pred_fallthru
      _
    // Predicated region
    $region62: #{tpu_custom_call.1} parent=1 // pred_check
      _
    $region63: #{tpu_custom_call.1} parent=1 // pred_check_branch
      %118 = sbr.rel (0) target = $region65
    $region64: #{tpu_custom_call.1} parent=1 // pred_region
      %119 = dma.done [#allocation15], 16
    $region65: #{tpu_custom_call.1} parent=1 // pred_fallthru
      _
    %v121 = vld [vmem:[%s0] sm:$0xff]
    %v122 = vld [vmem:[%s0 + $0x8] sm:$0xff]
    %v123 = vld [vmem:[%s0 + $0x10] sm:$0xff]
    %v124 = vld [vmem:[%s0 + $0x18] sm:$0xff]
    %v125 = vld [vmem:[%s0 + $0x20] sm:$0xff]
    %v126 = vld [vmem:[%s0 + $0x28] sm:$0xff]
    %v127 = vld [vmem:[%s0 + $0x30] sm:$0xff]
    %v128 = vld [vmem:[%s0 + $0x38] sm:$0xff]
    %v129 = vld [vmem:[%s0 + $0x40] sm:$0xff]
    %v130 = vld [vmem:[%s0 + $0x48] sm:$0xff]
    %v131 = vld [vmem:[%s0 + $0x50] sm:$0xff]
    %v132 = vld [vmem:[%s0 + $0x58] sm:$0xff]
    %v133 = vld [vmem:[%s0 + $0x60] sm:$0xff]
    %v134 = vld [vmem:[%s0 + $0x68] sm:$0xff]
    %v135 = vld [vmem:[%s0 + $0x70] sm:$0xff]
    %v136 = vld [vmem:[%s0 + $0x78] sm:$0xff]
    %v137 = vld [vmem:[%s0 + $0x80] sm:$0xff]
    %v138 = vld [vmem:[%s0 + $0x88] sm:$0xff]
    %v139 = vld [vmem:[%s0 + $0x90] sm:$0xff]
    %v140 = vld [vmem:[%s0 + $0x98] sm:$0xff]
    %v141 = vld [vmem:[%s0 + $0xa0] sm:$0xff]
    %v142 = vld [vmem:[%s0 + $0xa8] sm:$0xff]
    %v143 = vld [vmem:[%s0 + $0xb0] sm:$0xff]
    %v144 = vld [vmem:[%s0 + $0xb8] sm:$0xff]
    %v145 = vld [vmem:[#allocation5] sm:$0xff]
    %v146 = vld [vmem:[#allocation5 + $0x8] sm:$0xff]
    %v147 = vld [vmem:[#allocation5 + $0x10] sm:$0xff]
    %v148 = vld [vmem:[#allocation5 + $0x18] sm:$0xff]
    %v149 = vld [vmem:[#allocation5 + $0x20] sm:$0xff]
    %v150 = vld [vmem:[#allocation5 + $0x28] sm:$0xff]
    %v151 = vld [vmem:[#allocation5 + $0x30] sm:$0xff]
    %v152 = vld [vmem:[#allocation5 + $0x38] sm:$0xff]
    %v153 = vld [vmem:[#allocation5 + $0x40] sm:$0xff]
    %v154 = vld [vmem:[#allocation5 + $0x48] sm:$0xff]
    %v155 = vld [vmem:[#allocation5 + $0x50] sm:$0xff]
    %v156 = vld [vmem:[#allocation5 + $0x58] sm:$0xff]
    %v157 = vld [vmem:[#allocation5 + $0x60] sm:$0xff]
    %v158 = vld [vmem:[#allocation5 + $0x68] sm:$0xff]
    %v159 = vld [vmem:[#allocation5 + $0x70] sm:$0xff]
    %v160 = vld [vmem:[#allocation5 + $0x78] sm:$0xff]
    %v161 = vld [vmem:[#allocation5 + $0x80] sm:$0xff]
    %v162 = vld [vmem:[#allocation5 + $0x88] sm:$0xff]
    %v163 = vld [vmem:[#allocation5 + $0x90] sm:$0xff]
    %v164 = vld [vmem:[#allocation5 + $0x98] sm:$0xff]
    %v165 = vld [vmem:[#allocation5 + $0xa0] sm:$0xff]
    %v166 = vld [vmem:[#allocation5 + $0xa8] sm:$0xff]
    %v167 = vld [vmem:[#allocation5 + $0xb0] sm:$0xff]
    %v168 = vld [vmem:[#allocation5 + $0xb8] sm:$0xff]
    %v169 = vld [vmem:[#allocation5 + $0xc0] sm:$0xff]
    %v170 = vld [vmem:[#allocation5 + $0xc8] sm:$0xff]
    %v171 = vld [vmem:[#allocation5 + $0xd0] sm:$0xff]
    %v172 = vld [vmem:[#allocation5 + $0xd8] sm:$0xff]
    %v173 = vld [vmem:[#allocation5 + $0xe0] sm:$0xff]
    %v174 = vld [vmem:[#allocation5 + $0xe8] sm:$0xff]
    %v175 = vld [vmem:[#allocation5 + $0xf0] sm:$0xff]
    %v176 = vld [vmem:[#allocation5 + $0xf8] sm:$0xff]
    %v177 = vld [vmem:[#allocation5 + $0x100] sm:$0xff]
    %v178 = vld [vmem:[#allocation5 + $0x108] sm:$0xff]
    %v179 = vld [vmem:[#allocation5 + $0x110] sm:$0x33]
    %v180 = vld [vmem:[#allocation5 + $0x118] sm:$0x33]
    %v205 = vunpack.c.l.b16 %v121
    %v206 = vunpack.c.h.b16 %v121
    %v207 = vunpack.c.l.b16 %v122
    %v208 = vunpack.c.h.b16 %v122
    %v209 = vunpack.c.l.b16 %v123
    %v210 = vunpack.c.h.b16 %v123
    %v211 = vunpack.c.l.b16 %v124
    %v212 = vunpack.c.h.b16 %v124
    %v213 = vunpack.c.l.b16 %v125
    %v214 = vunpack.c.h.b16 %v125
    %v215 = vunpack.c.l.b16 %v126
    %v216 = vunpack.c.h.b16 %v126
    %v217 = vunpack.c.l.b16 %v127
    %v218 = vunpack.c.h.b16 %v127
    %v219 = vunpack.c.l.b16 %v128
    %v220 = vunpack.c.h.b16 %v128
    %v221 = vunpack.c.l.b16 %v129
    %v222 = vunpack.c.h.b16 %v129
    %v223 = vunpack.c.l.b16 %v130
    %v224 = vunpack.c.h.b16 %v130
    %v225 = vunpack.c.l.b16 %v131
    %v226 = vunpack.c.h.b16 %v131
    %v227 = vunpack.c.l.b16 %v132
    %v228 = vunpack.c.h.b16 %v132
    %v229 = vunpack.c.l.b16 %v133
    %v230 = vunpack.c.h.b16 %v133
    %v231 = vunpack.c.l.b16 %v134
    %v232 = vunpack.c.h.b16 %v134
    %v233 = vunpack.c.l.b16 %v135
    %v234 = vunpack.c.h.b16 %v135
    %v235 = vunpack.c.l.b16 %v136
    %v236 = vunpack.c.h.b16 %v136
    %v237 = vunpack.c.l.b16 %v137
    %v238 = vunpack.c.h.b16 %v137
    %v239 = vunpack.c.l.b16 %v138
    %v240 = vunpack.c.h.b16 %v138
    %v241 = vunpack.c.l.b16 %v139
    %v242 = vunpack.c.h.b16 %v139
    %v243 = vunpack.c.l.b16 %v140
    %v244 = vunpack.c.h.b16 %v140
    %v245 = vunpack.c.l.b16 %v141
    %v246 = vunpack.c.h.b16 %v141
    %v247 = vunpack.c.l.b16 %v142
    %v248 = vunpack.c.h.b16 %v142
    %v249 = vunpack.c.l.b16 %v143
    %v250 = vunpack.c.h.b16 %v143
    %v251 = vunpack.c.l.b16 %v144
    %v252 = vunpack.c.h.b16 %v144
    %v253 = vpack.c.b16 %v207, %v205
    %v254 = vpack.c.b16 %v208, %v206
    %v255 = vpack.c.b16 %v211, %v209
    %v256 = vpack.c.b16 %v212, %v210
    %v257 = vpack.c.b16 %v215, %v213
    %v258 = vpack.c.b16 %v216, %v214
    %v259 = vpack.c.b16 %v219, %v217
    %v260 = vpack.c.b16 %v220, %v218
    %v261 = vpack.c.b16 %v223, %v221
    %v262 = vpack.c.b16 %v224, %v222
    %v263 = vpack.c.b16 %v227, %v225
    %v264 = vpack.c.b16 %v228, %v226
    %v265 = vpack.c.b16 %v231, %v229
    %v266 = vpack.c.b16 %v232, %v230
    %v267 = vpack.c.b16 %v235, %v233
    %v268 = vpack.c.b16 %v236, %v234
    %v269 = vpack.c.b16 %v239, %v237
    %v270 = vpack.c.b16 %v240, %v238
    %v271 = vpack.c.b16 %v243, %v241
    %v272 = vpack.c.b16 %v244, %v242
    %v273 = vpack.c.b16 %v247, %v245
    %v274 = vpack.c.b16 %v248, %v246
    %v275 = vpack.c.b16 %v251, %v249
    %v276 = vpack.c.b16 %v252, %v250
    %v325 = vunpack.c.l.b16 %v145
    %v326 = vunpack.c.h.b16 %v145
    %v327 = vunpack.c.l.b16 %v146
    %v328 = vunpack.c.h.b16 %v146
    %v329 = vunpack.c.l.b16 %v147
    %v330 = vunpack.c.h.b16 %v147
    %v331 = vunpack.c.l.b16 %v148
    %v332 = vunpack.c.h.b16 %v148
    %v333 = vunpack.c.l.b16 %v149
    %v334 = vunpack.c.h.b16 %v149
    %v335 = vunpack.c.l.b16 %v150
    %v336 = vunpack.c.h.b16 %v150
    %v337 = vunpack.c.l.b16 %v151
    %v338 = vunpack.c.h.b16 %v151
    %v339 = vunpack.c.l.b16 %v152
    %v340 = vunpack.c.h.b16 %v152
    %v341 = vunpack.c.l.b16 %v153
    %v342 = vunpack.c.h.b16 %v153
    %v343 = vunpack.c.l.b16 %v154
    %v344 = vunpack.c.h.b16 %v154
    %v345 = vunpack.c.l.b16 %v155
    %v346 = vunpack.c.h.b16 %v155
    %v347 = vunpack.c.l.b16 %v156
    %v348 = vunpack.c.h.b16 %v156
    %v349 = vunpack.c.l.b16 %v157
    %v350 = vunpack.c.h.b16 %v157
    %v351 = vunpack.c.l.b16 %v158
    %v352 = vunpack.c.h.b16 %v158
    %v353 = vunpack.c.l.b16 %v159
    %v354 = vunpack.c.h.b16 %v159
    %v355 = vunpack.c.l.b16 %v160
    %v356 = vunpack.c.h.b16 %v160
    %v357 = vunpack.c.l.b16 %v161
    %v358 = vunpack.c.h.b16 %v161
    %v359 = vunpack.c.l.b16 %v162
    %v360 = vunpack.c.h.b16 %v162
    %v361 = vunpack.c.l.b16 %v163
    %v362 = vunpack.c.h.b16 %v163
    %v363 = vunpack.c.l.b16 %v164
    %v364 = vunpack.c.h.b16 %v164
    %v365 = vunpack.c.l.b16 %v165
    %v366 = vunpack.c.h.b16 %v165
    %v367 = vunpack.c.l.b16 %v166
    %v368 = vunpack.c.h.b16 %v166
    %v369 = vunpack.c.l.b16 %v167
    %v370 = vunpack.c.h.b16 %v167
    %v371 = vunpack.c.l.b16 %v168
    %v372 = vunpack.c.h.b16 %v168
    %v373 = vunpack.c.l.b16 %v169
    %v374 = vunpack.c.h.b16 %v169
    %v375 = vunpack.c.l.b16 %v170
    %v376 = vunpack.c.h.b16 %v170
    %v377 = vunpack.c.l.b16 %v171
    %v378 = vunpack.c.h.b16 %v171
    %v379 = vunpack.c.l.b16 %v172
    %v380 = vunpack.c.h.b16 %v172
    %v381 = vunpack.c.l.b16 %v173
    %v382 = vunpack.c.h.b16 %v173
    %v383 = vunpack.c.l.b16 %v174
    %v384 = vunpack.c.h.b16 %v174
    %v385 = vunpack.c.l.b16 %v175
    %v386 = vunpack.c.h.b16 %v175
    %v387 = vunpack.c.l.b16 %v176
    %v388 = vunpack.c.h.b16 %v176
    %v389 = vunpack.c.l.b16 %v177
    %v390 = vunpack.c.h.b16 %v177
    %v391 = vunpack.c.l.b16 %v178
    %v392 = vunpack.c.h.b16 %v178
    %v393 = vunpack.c.l.b16 %v179
    %v394 = vunpack.c.h.b16 %v179
    %v395 = vunpack.c.l.b16 %v180
    %v396 = vunpack.c.h.b16 %v180
    %v397 = vpack.c.b16 %v329, %v325
    %v398 = vpack.c.b16 %v330, %v326
    %v399 = vpack.c.b16 %v331, %v327
    %v400 = vpack.c.b16 %v332, %v328
    %v401 = vpack.c.b16 %v337, %v333
    %v402 = vpack.c.b16 %v338, %v334
    %v403 = vpack.c.b16 %v339, %v335
    %v404 = vpack.c.b16 %v340, %v336
    %v405 = vpack.c.b16 %v345, %v341
    %v406 = vpack.c.b16 %v346, %v342
    %v407 = vpack.c.b16 %v347, %v343
    %v408 = vpack.c.b16 %v348, %v344
    %v409 = vpack.c.b16 %v353, %v349
    %v410 = vpack.c.b16 %v354, %v350
    %v411 = vpack.c.b16 %v355, %v351
    %v412 = vpack.c.b16 %v356, %v352
    %v413 = vpack.c.b16 %v361, %v357
    %v414 = vpack.c.b16 %v362, %v358
    %v415 = vpack.c.b16 %v363, %v359
    %v416 = vpack.c.b16 %v364, %v360
    %v417 = vpack.c.b16 %v369, %v365
    %v418 = vpack.c.b16 %v370, %v366
    %v419 = vpack.c.b16 %v371, %v367
    %v420 = vpack.c.b16 %v372, %v368
    %v421 = vpack.c.b16 %v377, %v373
    %v422 = vpack.c.b16 %v378, %v374
    %v423 = vpack.c.b16 %v379, %v375
    %v424 = vpack.c.b16 %v380, %v376
    %v425 = vpack.c.b16 %v385, %v381
    %v426 = vpack.c.b16 %v386, %v382
    %v427 = vpack.c.b16 %v387, %v383
    %v428 = vpack.c.b16 %v388, %v384
    %v429 = vpack.c.b16 %v393, %v389
    %v430 = vpack.c.b16 %v394, %v390
    %v431 = vpack.c.b16 %v395, %v391
    %v432 = vpack.c.b16 %v396, %v392
    %vm465 = vcmask 97280
    %v467 = vsel %vm465, %v254, 0
    %v470 = vsel %vm465, %v256, 0
    %v473 = vsel %vm465, %v258, 0
    %v476 = vsel %vm465, %v260, 0
    %v479 = vsel %vm465, %v262, 0
    %v482 = vsel %vm465, %v264, 0
    %v485 = vsel %vm465, %v266, 0
    %v488 = vsel %vm465, %v268, 0
    %v491 = vsel %vm465, %v270, 0
    %v494 = vsel %vm465, %v272, 0
    %v497 = vsel %vm465, %v274, 0
    %v500 = vsel %vm465, %v276, 0
    %vm502 = vcmask 1045504
    %v504 = vsel %vm502, %v429, 0
    %v507 = vsel %vm502, %v430, 0
    %v510 = vsel %vm502, %v431, 0
    %v513 = vsel %vm502, %v432, 0
    %515 = vmatprep.subr.bf16.mxu0 %v398
    %516 = vmatpush1.bf16.msra.mxu0 %v397
    %517 = vmatprep.subr.bf16.mxu0 %v402
    %518 = vmatpush1.bf16.msra.mxu0 %v401
    %519 = vmatprep.subr.bf16.mxu0 %v406
    %520 = vmatpush1.bf16.msra.mxu0 %v405
    %521 = vmatprep.subr.bf16.mxu0 %v410
    %522 = vmatpush1.bf16.msra.mxu0 %v409
    %523 = vmatprep.subr.bf16.mxu0 %v414
    %524 = vmatpush1.bf16.msra.mxu0 %v413
    %525 = vmatprep.subr.bf16.mxu0 %v418
    %526 = vmatpush1.bf16.msra.mxu0 %v417
    %527 = vmatprep.subr.bf16.mxu0 %v422
    %528 = vmatpush1.bf16.msra.mxu0 %v421
    %529 = vmatprep.subr.bf16.mxu0 %v426
    %530 = vmatpush1.bf16.msra.mxu0 %v425
    %531 = vmatprep.subr.bf16.mxu0 %v507
    %532 = vmatpush1.bf16.msra.mxu0 %v504
    %533 = vmatprep.subr.bf16.mxu0 0
    %534 = vmatpush1.bf16.msra.mxu0 0
    %535 = vmatprep.subr.bf16.mxu0 0
    %536 = vmatpush1.bf16.msra.mxu0 0
    %537 = vmatprep.subr.bf16.mxu0 0
    %538 = vmatpush1.bf16.msra.mxu0 0
    %539 = vmatprep.subr.bf16.mxu0 0
    %540 = vmatpush1.bf16.msra.mxu0 0
    %541 = vmatprep.subr.bf16.mxu0 0
    %542 = vmatpush1.bf16.msra.mxu0 0
    %543 = vmatprep.subr.bf16.mxu0 0
    %544 = vmatpush1.bf16.msra.mxu0 0
    %545 = vmatprep.subr.bf16.mxu0 0
    %546 = vmatpush1.bf16.msra.mxu0 0
    %547 = vmatprep.mubr.bf16.mxu0 %v467
    %548 = vmatmul.mubr.bf16.gmra.mrb[0].mxu0 %v253
    %v549 = vpop.f32.mrb[0].mxu0
    %v550 = vadd.f32 0.0, %v549
    %v551 = vpop.f32.mrb[0].mxu0
    %v552 = vadd.f32 0.0, %v551
    %v553 = vpop.f32.mrb[0].mxu0
    %v554 = vadd.f32 0.0, %v553
    %v555 = vpop.f32.mrb[0].mxu0
    %v556 = vadd.f32 0.0, %v555
    %557 = vmatprep.mubr.bf16.mxu0 %v470
    %558 = vmatmul.mubr.bf16.gmra.mrb[0].mxu0 %v255
    %v559 = vpop.f32.mrb[0].mxu0
    %v560 = vadd.f32 0.0, %v559
    %v561 = vpop.f32.mrb[0].mxu0
    %v562 = vadd.f32 0.0, %v561
    %v563 = vpop.f32.mrb[0].mxu0
    %v564 = vadd.f32 0.0, %v563
    %v565 = vpop.f32.mrb[0].mxu0
    %v566 = vadd.f32 0.0, %v565
    %567 = vmatprep.mubr.bf16.mxu0 %v473
    %568 = vmatmul.mubr.bf16.gmra.mrb[0].mxu0 %v257
    %v569 = vpop.f32.mrb[0].mxu0
    %v570 = vadd.f32 0.0, %v569
    %v571 = vpop.f32.mrb[0].mxu0
    %v572 = vadd.f32 0.0, %v571
    %v573 = vpop.f32.mrb[0].mxu0
    %v574 = vadd.f32 0.0, %v573
    %v575 = vpop.f32.mrb[0].mxu0
    %v576 = vadd.f32 0.0, %v575
    %577 = vmatprep.mubr.bf16.mxu0 %v476
    %578 = vmatmul.mubr.bf16.gmra.mrb[0].mxu0 %v259
    %v579 = vpop.f32.mrb[0].mxu0
    %v580 = vadd.f32 0.0, %v579
    %v581 = vpop.f32.mrb[0].mxu0
    %v582 = vadd.f32 0.0, %v581
    %v583 = vpop.f32.mrb[0].mxu0
    %v584 = vadd.f32 0.0, %v583
    %v585 = vpop.f32.mrb[0].mxu0
    %v586 = vadd.f32 0.0, %v585
    %587 = vmatprep.mubr.bf16.mxu0 %v479
    %588 = vmatmul.mubr.bf16.gmra.mrb[0].mxu0 %v261
    %v589 = vpop.f32.mrb[0].mxu0
    %v590 = vadd.f32 0.0, %v589
    %v591 = vpop.f32.mrb[0].mxu0
    %v592 = vadd.f32 0.0, %v591
    %v593 = vpop.f32.mrb[0].mxu0
    %v594 = vadd.f32 0.0, %v593
    %v595 = vpop.f32.mrb[0].mxu0
    %v596 = vadd.f32 0.0, %v595
    %597 = vmatprep.mubr.bf16.mxu0 %v482
    %598 = vmatmul.mubr.bf16.gmra.mrb[0].mxu0 %v263
    %v599 = vpop.f32.mrb[0].mxu0
    %v600 = vadd.f32 0.0, %v599
    %v601 = vpop.f32.mrb[0].mxu0
    %v602 = vadd.f32 0.0, %v601
    %v603 = vpop.f32.mrb[0].mxu0
    %v604 = vadd.f32 0.0, %v603
    %v605 = vpop.f32.mrb[0].mxu0
    %v606 = vadd.f32 0.0, %v605
    %607 = vmatprep.mubr.bf16.mxu0 %v485
    %608 = vmatmul.mubr.bf16.gmra.mrb[0].mxu0 %v265
    %v609 = vpop.f32.mrb[0].mxu0
    %v610 = vadd.f32 0.0, %v609
    %v611 = vpop.f32.mrb[0].mxu0
    %v612 = vadd.f32 0.0, %v611
    %v613 = vpop.f32.mrb[0].mxu0
    %v614 = vadd.f32 0.0, %v613
    %v615 = vpop.f32.mrb[0].mxu0
    %v616 = vadd.f32 0.0, %v615
    %617 = vmatprep.mubr.bf16.mxu0 %v488
    %618 = vmatmul.mubr.bf16.gmra.mrb[0].mxu0 %v267
    %v619 = vpop.f32.mrb[0].mxu0
    %v620 = vadd.f32 0.0, %v619
    %v621 = vpop.f32.mrb[0].mxu0
    %v622 = vadd.f32 0.0, %v621
    %v623 = vpop.f32.mrb[0].mxu0
    %v624 = vadd.f32 0.0, %v623
    %v625 = vpop.f32.mrb[0].mxu0
    %v626 = vadd.f32 0.0, %v625
    %627 = vmatprep.mubr.bf16.mxu0 %v491
    %628 = vmatmul.mubr.bf16.gmra.mrb[0].mxu0 %v269
    %v629 = vpop.f32.mrb[0].mxu0
    %v630 = vadd.f32 0.0, %v629
    %v631 = vpop.f32.mrb[0].mxu0
    %v632 = vadd.f32 0.0, %v631
    %v633 = vpop.f32.mrb[0].mxu0
    %v634 = vadd.f32 0.0, %v633
    %v635 = vpop.f32.mrb[0].mxu0
    %v636 = vadd.f32 0.0, %v635
    %637 = vmatprep.mubr.bf16.mxu0 %v494
    %638 = vmatmul.mubr.bf16.gmra.mrb[0].mxu0 %v271
    %v639 = vpop.f32.mrb[0].mxu0
    %v640 = vadd.f32 0.0, %v639
    %v641 = vpop.f32.mrb[0].mxu0
    %v642 = vadd.f32 0.0, %v641
    %v643 = vpop.f32.mrb[0].mxu0
    %v644 = vadd.f32 0.0, %v643
    %v645 = vpop.f32.mrb[0].mxu0
    %v646 = vadd.f32 0.0, %v645
    %647 = vmatprep.mubr.bf16.mxu0 %v497
    %648 = vmatmul.mubr.bf16.gmra.mrb[0].mxu0 %v273
    %v649 = vpop.f32.mrb[0].mxu0
    %v650 = vadd.f32 0.0, %v649
    %v651 = vpop.f32.mrb[0].mxu0
    %v652 = vadd.f32 0.0, %v651
    %v653 = vpop.f32.mrb[0].mxu0
    %v654 = vadd.f32 0.0, %v653
    %v655 = vpop.f32.mrb[0].mxu0
    %v656 = vadd.f32 0.0, %v655
    %657 = vmatprep.mubr.bf16.mxu0 %v500
    %658 = vmatmul.mubr.bf16.gmra.mrb[0].mxu0 %v275
    %v659 = vpop.f32.mrb[0].mxu0
    %v660 = vadd.f32 0.0, %v659
    %v661 = vpop.f32.mrb[0].mxu0
    %v662 = vadd.f32 0.0, %v661
    %v663 = vpop.f32.mrb[0].mxu0
    %v664 = vadd.f32 0.0, %v663
    %v665 = vpop.f32.mrb[0].mxu0
    %v666 = vadd.f32 0.0, %v665
    %667 = vdwg.mxu0
    %668 = vmatprep.subr.bf16.mxu0 %v400
    %669 = vmatpush1.bf16.msra.mxu0 %v399
    %670 = vmatprep.subr.bf16.mxu0 %v404
    %671 = vmatpush1.bf16.msra.mxu0 %v403
    %672 = vmatprep.subr.bf16.mxu0 %v408
    %673 = vmatpush1.bf16.msra.mxu0 %v407
    %674 = vmatprep.subr.bf16.mxu0 %v412
    %675 = vmatpush1.bf16.msra.mxu0 %v411
    %676 = vmatprep.subr.bf16.mxu0 %v416
    %677 = vmatpush1.bf16.msra.mxu0 %v415
    %678 = vmatprep.subr.bf16.mxu0 %v420
    %679 = vmatpush1.bf16.msra.mxu0 %v419
    %680 = vmatprep.subr.bf16.mxu0 %v424
    %681 = vmatpush1.bf16.msra.mxu0 %v423
    %682 = vmatprep.subr.bf16.mxu0 %v428
    %683 = vmatpush1.bf16.msra.mxu0 %v427
    %684 = vmatprep.subr.bf16.mxu0 %v513
    %685 = vmatpush1.bf16.msra.mxu0 %v510
    %686 = vmatprep.subr.bf16.mxu0 0
    %687 = vmatpush1.bf16.msra.mxu0 0
    %688 = vmatprep.subr.bf16.mxu0 0
    %689 = vmatpush1.bf16.msra.mxu0 0
    %690 = vmatprep.subr.bf16.mxu0 0
    %691 = vmatpush1.bf16.msra.mxu0 0
    %692 = vmatprep.subr.bf16.mxu0 0
    %693 = vmatpush1.bf16.msra.mxu0 0
    %694 = vmatprep.subr.bf16.mxu0 0
    %695 = vmatpush1.bf16.msra.mxu0 0
    %696 = vmatprep.subr.bf16.mxu0 0
    %697 = vmatpush1.bf16.msra.mxu0 0
    %698 = vmatprep.subr.bf16.mxu0 0
    %699 = vmatpush1.bf16.msra.mxu0 0
    %700 = vmatprep.mubr.bf16.mxu0 %v467
    %701 = vmatmul.mubr.bf16.gmra.mrb[0].mxu0 %v253
    %v702 = vpop.f32.mrb[0].mxu0
    %v703 = vadd.f32 0.0, %v702
    %v704 = vpop.f32.mrb[0].mxu0
    %v705 = vadd.f32 0.0, %v704
    %v706 = vpop.f32.mrb[0].mxu0
    %v707 = vadd.f32 0.0, %v706
    %v708 = vpop.f32.mrb[0].mxu0
    %v709 = vadd.f32 0.0, %v708
    %710 = vmatprep.mubr.bf16.mxu0 %v470
    %711 = vmatmul.mubr.bf16.gmra.mrb[0].mxu0 %v255
    %v712 = vpop.f32.mrb[0].mxu0
    %v713 = vadd.f32 0.0, %v712
    %v714 = vpop.f32.mrb[0].mxu0
    %v715 = vadd.f32 0.0, %v714
    %v716 = vpop.f32.mrb[0].mxu0
    %v717 = vadd.f32 0.0, %v716
    %v718 = vpop.f32.mrb[0].mxu0
    %v719 = vadd.f32 0.0, %v718
    %720 = vmatprep.mubr.bf16.mxu0 %v473
    %721 = vmatmul.mubr.bf16.gmra.mrb[0].mxu0 %v257
    %v722 = vpop.f32.mrb[0].mxu0
    %v723 = vadd.f32 0.0, %v722
    %v724 = vpop.f32.mrb[0].mxu0
    %v725 = vadd.f32 0.0, %v724
    %v726 = vpop.f32.mrb[0].mxu0
    %v727 = vadd.f32 0.0, %v726
    %v728 = vpop.f32.mrb[0].mxu0
    %v729 = vadd.f32 0.0, %v728
    %730 = vmatprep.mubr.bf16.mxu0 %v476
    %731 = vmatmul.mubr.bf16.gmra.mrb[0].mxu0 %v259
    %v732 = vpop.f32.mrb[0].mxu0
    %v733 = vadd.f32 0.0, %v732
    %v734 = vpop.f32.mrb[0].mxu0
    %v735 = vadd.f32 0.0, %v734
    %v736 = vpop.f32.mrb[0].mxu0
    %v737 = vadd.f32 0.0, %v736
    %v738 = vpop.f32.mrb[0].mxu0
    %v739 = vadd.f32 0.0, %v738
    %740 = vmatprep.mubr.bf16.mxu0 %v479
    %741 = vmatmul.mubr.bf16.gmra.mrb[0].mxu0 %v261
    %v742 = vpop.f32.mrb[0].mxu0
    %v743 = vadd.f32 0.0, %v742
    %v744 = vpop.f32.mrb[0].mxu0
    %v745 = vadd.f32 0.0, %v744
    %v746 = vpop.f32.mrb[0].mxu0
    %v747 = vadd.f32 0.0, %v746
    %v748 = vpop.f32.mrb[0].mxu0
    %v749 = vadd.f32 0.0, %v748
    %750 = vmatprep.mubr.bf16.mxu0 %v482
    %751 = vmatmul.mubr.bf16.gmra.mrb[0].mxu0 %v263
    %v752 = vpop.f32.mrb[0].mxu0
    %v753 = vadd.f32 0.0, %v752
    %v754 = vpop.f32.mrb[0].mxu0
    %v755 = vadd.f32 0.0, %v754
    %v756 = vpop.f32.mrb[0].mxu0
    %v757 = vadd.f32 0.0, %v756
    %v758 = vpop.f32.mrb[0].mxu0
    %v759 = vadd.f32 0.0, %v758
    %760 = vmatprep.mubr.bf16.mxu0 %v485
    %761 = vmatmul.mubr.bf16.gmra.mrb[0].mxu0 %v265
    %v762 = vpop.f32.mrb[0].mxu0
    %v763 = vadd.f32 0.0, %v762
    %v764 = vpop.f32.mrb[0].mxu0
    %v765 = vadd.f32 0.0, %v764
    %v766 = vpop.f32.mrb[0].mxu0
    %v767 = vadd.f32 0.0, %v766
    %v768 = vpop.f32.mrb[0].mxu0
    %v769 = vadd.f32 0.0, %v768
    %770 = vmatprep.mubr.bf16.mxu0 %v488
    %771 = vmatmul.mubr.bf16.gmra.mrb[0].mxu0 %v267
    %v772 = vpop.f32.mrb[0].mxu0
    %v773 = vadd.f32 0.0, %v772
    %v774 = vpop.f32.mrb[0].mxu0
    %v775 = vadd.f32 0.0, %v774
    %v776 = vpop.f32.mrb[0].mxu0
    %v777 = vadd.f32 0.0, %v776
    %v778 = vpop.f32.mrb[0].mxu0
    %v779 = vadd.f32 0.0, %v778
    %780 = vmatprep.mubr.bf16.mxu0 %v491
    %781 = vmatmul.mubr.bf16.gmra.mrb[0].mxu0 %v269
    %v782 = vpop.f32.mrb[0].mxu0
    %v783 = vadd.f32 0.0, %v782
    %v784 = vpop.f32.mrb[0].mxu0
    %v785 = vadd.f32 0.0, %v784
    %v786 = vpop.f32.mrb[0].mxu0
    %v787 = vadd.f32 0.0, %v786
    %v788 = vpop.f32.mrb[0].mxu0
    %v789 = vadd.f32 0.0, %v788
    %790 = vmatprep.mubr.bf16.mxu0 %v494
    %791 = vmatmul.mubr.bf16.gmra.mrb[0].mxu0 %v271
    %v792 = vpop.f32.mrb[0].mxu0
    %v793 = vadd.f32 0.0, %v792
    %v794 = vpop.f32.mrb[0].mxu0
    %v795 = vadd.f32 0.0, %v794
    %v796 = vpop.f32.mrb[0].mxu0
    %v797 = vadd.f32 0.0, %v796
    %v798 = vpop.f32.mrb[0].mxu0
    %v799 = vadd.f32 0.0, %v798
    %800 = vmatprep.mubr.bf16.mxu0 %v497
    %801 = vmatmul.mubr.bf16.gmra.mrb[0].mxu0 %v273
    %v802 = vpop.f32.mrb[0].mxu0
    %v803 = vadd.f32 0.0, %v802
    %v804 = vpop.f32.mrb[0].mxu0
    %v805 = vadd.f32 0.0, %v804
    %v806 = vpop.f32.mrb[0].mxu0
    %v807 = vadd.f32 0.0, %v806
    %v808 = vpop.f32.mrb[0].mxu0
    %v809 = vadd.f32 0.0, %v808
    %810 = vmatprep.mubr.bf16.mxu0 %v500
    %811 = vmatmul.mubr.bf16.gmra.mrb[0].mxu0 %v275
    %v812 = vpop.f32.mrb[0].mxu0
    %v813 = vadd.f32 0.0, %v812
    %v814 = vpop.f32.mrb[0].mxu0
    %v815 = vadd.f32 0.0, %v814
    %v816 = vpop.f32.mrb[0].mxu0
    %v817 = vadd.f32 0.0, %v816
    %v818 = vpop.f32.mrb[0].mxu0
    %v819 = vadd.f32 0.0, %v818
    %820 = vdwg.mxu0
    %821 = vst [vmem:[#allocation2] sm:$0xff] %v550
    %822 = vst [vmem:[#allocation2 + $0x8] sm:$0xff] %v552
    %823 = vst [vmem:[#allocation2 + $0x10] sm:$0xff] %v703
    %824 = vst [vmem:[#allocation2 + $0x18] sm:$0xff] %v705
    %825 = vst [vmem:[#allocation2 + $0x20] sm:$0xff] %v554
    %826 = vst [vmem:[#allocation2 + $0x28] sm:$0xff] %v556
    %827 = vst [vmem:[#allocation2 + $0x30] sm:$0xff] %v707
    %828 = vst [vmem:[#allocation2 + $0x38] sm:$0xff] %v709
    %829 = vst [vmem:[#allocation2 + $0x40] sm:$0xff] %v560
    %830 = vst [vmem:[#allocation2 + $0x48] sm:$0xff] %v562
    %831 = vst [vmem:[#allocation2 + $0x50] sm:$0xff] %v713
    %832 = vst [vmem:[#allocation2 + $0x58] sm:$0xff] %v715
    %833 = vst [vmem:[#allocation2 + $0x60] sm:$0xff] %v564
    %834 = vst [vmem:[#allocation2 + $0x68] sm:$0xff] %v566
    %835 = vst [vmem:[#allocation2 + $0x70] sm:$0xff] %v717
    %836 = vst [vmem:[#allocation2 + $0x78] sm:$0xff] %v719
    %837 = vst [vmem:[#allocation2 + $0x80] sm:$0xff] %v570
    %838 = vst [vmem:[#allocation2 + $0x88] sm:$0xff] %v572
    %839 = vst [vmem:[#allocation2 + $0x90] sm:$0xff] %v723
    %840 = vst [vmem:[#allocation2 + $0x98] sm:$0xff] %v725
    %841 = vst [vmem:[#allocation2 + $0xa0] sm:$0xff] %v574
    %842 = vst [vmem:[#allocation2 + $0xa8] sm:$0xff] %v576
    %843 = vst [vmem:[#allocation2 + $0xb0] sm:$0xff] %v727
    %844 = vst [vmem:[#allocation2 + $0xb8] sm:$0xff] %v729
    %845 = vst [vmem:[#allocation2 + $0xc0] sm:$0xff] %v580
    %846 = vst [vmem:[#allocation2 + $0xc8] sm:$0xff] %v582
    %847 = vst [vmem:[#allocation2 + $0xd0] sm:$0xff] %v733
    %848 = vst [vmem:[#allocation2 + $0xd8] sm:$0xff] %v735
    %849 = vst [vmem:[#allocation2 + $0xe0] sm:$0xff] %v584
    %850 = vst [vmem:[#allocation2 + $0xe8] sm:$0xff] %v586
    %851 = vst [vmem:[#allocation2 + $0xf0] sm:$0xff] %v737
    %852 = vst [vmem:[#allocation2 + $0xf8] sm:$0xff] %v739
    %853 = vst [vmem:[#allocation2 + $0x100] sm:$0xff] %v590
    %854 = vst [vmem:[#allocation2 + $0x108] sm:$0xff] %v592
    %855 = vst [vmem:[#allocation2 + $0x110] sm:$0xff] %v743
    %856 = vst [vmem:[#allocation2 + $0x118] sm:$0xff] %v745
    %857 = vst [vmem:[#allocation2 + $0x120] sm:$0xff] %v594
    %858 = vst [vmem:[#allocation2 + $0x128] sm:$0xff] %v596
    %859 = vst [vmem:[#allocation2 + $0x130] sm:$0xff] %v747
    %860 = vst [vmem:[#allocation2 + $0x138] sm:$0xff] %v749
    %861 = vst [vmem:[#allocation2 + $0x140] sm:$0xff] %v600
    %862 = vst [vmem:[#allocation2 + $0x148] sm:$0xff] %v602
    %863 = vst [vmem:[#allocation2 + $0x150] sm:$0xff] %v753
    %864 = vst [vmem:[#allocation2 + $0x158] sm:$0xff] %v755
    %865 = vst [vmem:[#allocation2 + $0x160] sm:$0xff] %v604
    %866 = vst [vmem:[#allocation2 + $0x168] sm:$0xff] %v606
    %867 = vst [vmem:[#allocation2 + $0x170] sm:$0xff] %v757
    %868 = vst [vmem:[#allocation2 + $0x178] sm:$0xff] %v759
    %869 = vst [vmem:[#allocation2 + $0x180] sm:$0xff] %v610
    %870 = vst [vmem:[#allocation2 + $0x188] sm:$0xff] %v612
    %871 = vst [vmem:[#allocation2 + $0x190] sm:$0xff] %v763
    %872 = vst [vmem:[#allocation2 + $0x198] sm:$0xff] %v765
    %873 = vst [vmem:[#allocation2 + $0x1a0] sm:$0xff] %v614
    %874 = vst [vmem:[#allocation2 + $0x1a8] sm:$0xff] %v616
    %875 = vst [vmem:[#allocation2 + $0x1b0] sm:$0xff] %v767
    %876 = vst [vmem:[#allocation2 + $0x1b8] sm:$0xff] %v769
    %877 = vst [vmem:[#allocation2 + $0x1c0] sm:$0xff] %v620
    %878 = vst [vmem:[#allocation2 + $0x1c8] sm:$0xff] %v622
    %879 = vst [vmem:[#allocation2 + $0x1d0] sm:$0xff] %v773
    %880 = vst [vmem:[#allocation2 + $0x1d8] sm:$0xff] %v775
    %881 = vst [vmem:[#allocation2 + $0x1e0] sm:$0xff] %v624
    %882 = vst [vmem:[#allocation2 + $0x1e8] sm:$0xff] %v626
    %883 = vst [vmem:[#allocation2 + $0x1f0] sm:$0xff] %v777
    %884 = vst [vmem:[#allocation2 + $0x1f8] sm:$0xff] %v779
    %885 = vst [vmem:[#allocation2 + $0x200] sm:$0xff] %v630
    %886 = vst [vmem:[#allocation2 + $0x208] sm:$0xff] %v632
    %887 = vst [vmem:[#allocation2 + $0x210] sm:$0xff] %v783
    %888 = vst [vmem:[#allocation2 + $0x218] sm:$0xff] %v785
    %889 = vst [vmem:[#allocation2 + $0x220] sm:$0xff] %v634
    %890 = vst [vmem:[#allocation2 + $0x228] sm:$0xff] %v636
    %891 = vst [vmem:[#allocation2 + $0x230] sm:$0xff] %v787
    %892 = vst [vmem:[#allocation2 + $0x238] sm:$0xff] %v789
    %893 = vst [vmem:[#allocation2 + $0x240] sm:$0xff] %v640
    %894 = vst [vmem:[#allocation2 + $0x248] sm:$0xff] %v642
    %895 = vst [vmem:[#allocation2 + $0x250] sm:$0xff] %v793
    %896 = vst [vmem:[#allocation2 + $0x258] sm:$0xff] %v795
    %897 = vst [vmem:[#allocation2 + $0x260] sm:$0xff] %v644
    %898 = vst [vmem:[#allocation2 + $0x268] sm:$0xff] %v646
    %899 = vst [vmem:[#allocation2 + $0x270] sm:$0xff] %v797
    %900 = vst [vmem:[#allocation2 + $0x278] sm:$0xff] %v799
    %901 = vst [vmem:[#allocation2 + $0x280] sm:$0xff] %v650
    %902 = vst [vmem:[#allocation2 + $0x288] sm:$0xff] %v652
    %903 = vst [vmem:[#allocation2 + $0x290] sm:$0xff] %v803
    %904 = vst [vmem:[#allocation2 + $0x298] sm:$0xff] %v805
    %905 = vst [vmem:[#allocation2 + $0x2a0] sm:$0xff] %v654
    %906 = vst [vmem:[#allocation2 + $0x2a8] sm:$0xff] %v656
    %907 = vst [vmem:[#allocation2 + $0x2b0] sm:$0xff] %v807
    %908 = vst [vmem:[#allocation2 + $0x2b8] sm:$0xff] %v809
    %909 = vst [vmem:[#allocation2 + $0x2c0] sm:$0xff] %v660
    %910 = vst [vmem:[#allocation2 + $0x2c8] sm:$0xff] %v662
    %911 = vst [vmem:[#allocation2 + $0x2d0] sm:$0xff] %v813
    %912 = vst [vmem:[#allocation2 + $0x2d8] sm:$0xff] %v815
    %913 = vst [vmem:[#allocation2 + $0x2e0] sm:$0xff] %v664
    %914 = vst [vmem:[#allocation2 + $0x2e8] sm:$0xff] %v666
    %915 = vst [vmem:[#allocation2 + $0x2f0] sm:$0xff] %v817
    %916 = vst [vmem:[#allocation2 + $0x2f8] sm:$0xff] %v819
    %v917 = vld [vmem:[#allocation8] sm:$0x3]
    %v918 = vld [vmem:[#allocation2] sm:$0xff]
    %v919 = vld [vmem:[#allocation2 + $0x8] sm:$0xff]
    %v920 = vld [vmem:[#allocation2 + $0x10] sm:$0xff]
    %v921 = vld [vmem:[#allocation2 + $0x18] sm:$0xff]
    %v922 = vld [vmem:[#allocation2 + $0x20] sm:$0xff]
    %v923 = vld [vmem:[#allocation2 + $0x28] sm:$0xff]
    %v924 = vld [vmem:[#allocation2 + $0x30] sm:$0xff]
    %v925 = vld [vmem:[#allocation2 + $0x38] sm:$0xff]
    %v926 = vmax.f32 %v918, %v922
    %v927 = vmax.f32 %v919, %v923
    %v928 = vmax.f32 %v920, %v924
    %v929 = vmax.f32 %v921, %v925
    %v930 = vmax.f32 %v926, %v928
    %v931 = vmax.f32 %v927, %v929
    %v933 = vlaneseq
    %v934 = vshrl.u32 %v933, 7
    %v935 = vsub.s32 0, %v934
    %v936 = vrot.slane %v917, %v935
    %v937 = vlaneseq
    %v938 = vshrl.u32 %v937, 7
    %v939 = vsub.s32 1, %v938
    %v940 = vrot.slane %v917, %v939
    %v943 = vadd.f32 %v930, %v936
    %v944 = vadd.f32 %v931, %v940
    %v945 = vmax.f32 %v943, 0.0
    %v946 = vmax.f32 %v944, 0.0
    %v947 = vpack.c.bf16 %v945, %v945
    %v948 = vpack.c.bf16 %v946, %v946
    %949 = vst [vmem:[#allocation3] sm:$0xf] %v947
    %950 = vst [vmem:[#allocation3 + $0x8] sm:$0xf] %v948
    %v951 = vld [vmem:[#allocation2 + $0x40] sm:$0xff]
    %v952 = vld [vmem:[#allocation2 + $0x48] sm:$0xff]
    %v953 = vld [vmem:[#allocation2 + $0x50] sm:$0xff]
    %v954 = vld [vmem:[#allocation2 + $0x58] sm:$0xff]
    %v955 = vld [vmem:[#allocation2 + $0x60] sm:$0xff]
    %v956 = vld [vmem:[#allocation2 + $0x68] sm:$0xff]
    %v957 = vld [vmem:[#allocation2 + $0x70] sm:$0xff]
    %v958 = vld [vmem:[#allocation2 + $0x78] sm:$0xff]
    %v959 = vmax.f32 %v951, %v955
    %v960 = vmax.f32 %v952, %v956
    %v961 = vmax.f32 %v953, %v957
    %v962 = vmax.f32 %v954, %v958
    %v963 = vmax.f32 %v959, %v961
    %v964 = vmax.f32 %v960, %v962
    %v965 = vadd.f32 %v963, %v936
    %v966 = vadd.f32 %v964, %v940
    %v967 = vmax.f32 %v965, 0.0
    %v968 = vmax.f32 %v966, 0.0
    %v969 = vpack.c.bf16 %v967, %v967
    %v970 = vpack.c.bf16 %v968, %v968
    %v973 = vrot.slane %v969, 4
    %v974 = vrot.slane %v970, 4
    %977 = vst [vmem:[#allocation3] sm:$0xf0] %v973
    %978 = vst [vmem:[#allocation3 + $0x8] sm:$0xf0] %v974
    %v979 = vld [vmem:[#allocation2 + $0x80] sm:$0xff]
    %v980 = vld [vmem:[#allocation2 + $0x88] sm:$0xff]
    %v981 = vld [vmem:[#allocation2 + $0x90] sm:$0xff]
    %v982 = vld [vmem:[#allocation2 + $0x98] sm:$0xff]
    %v983 = vld [vmem:[#allocation2 + $0xa0] sm:$0xff]
    %v984 = vld [vmem:[#allocation2 + $0xa8] sm:$0xff]
    %v985 = vld [vmem:[#allocation2 + $0xb0] sm:$0xff]
    %v986 = vld [vmem:[#allocation2 + $0xb8] sm:$0xff]
    %v987 = vmax.f32 %v979, %v983
    %v988 = vmax.f32 %v980, %v984
    %v989 = vmax.f32 %v981, %v985
    %v990 = vmax.f32 %v982, %v986
    %v991 = vmax.f32 %v987, %v989
    %v992 = vmax.f32 %v988, %v990
    %v993 = vadd.f32 %v991, %v936
    %v994 = vadd.f32 %v992, %v940
    %v995 = vmax.f32 %v993, 0.0
    %v996 = vmax.f32 %v994, 0.0
    %v997 = vpack.c.bf16 %v995, %v995
    %v998 = vpack.c.bf16 %v996, %v996
    %999 = vst [vmem:[#allocation3 + $0x10] sm:$0xf] %v997
    %1000 = vst [vmem:[#allocation3 + $0x18] sm:$0xf] %v998
    %v1001 = vld [vmem:[#allocation2 + $0xc0] sm:$0xff]
    %v1002 = vld [vmem:[#allocation2 + $0xc8] sm:$0xff]
    %v1003 = vld [vmem:[#allocation2 + $0xd0] sm:$0xff]
    %v1004 = vld [vmem:[#allocation2 + $0xd8] sm:$0xff]
    %v1005 = vld [vmem:[#allocation2 + $0xe0] sm:$0xff]
    %v1006 = vld [vmem:[#allocation2 + $0xe8] sm:$0xff]
    %v1007 = vld [vmem:[#allocation2 + $0xf0] sm:$0xff]
    %v1008 = vld [vmem:[#allocation2 + $0xf8] sm:$0xff]
    %v1009 = vmax.f32 %v1001, %v1005
    %v1010 = vmax.f32 %v1002, %v1006
    %v1011 = vmax.f32 %v1003, %v1007
    %v1012 = vmax.f32 %v1004, %v1008
    %v1013 = vmax.f32 %v1009, %v1011
    %v1014 = vmax.f32 %v1010, %v1012
    %v1015 = vadd.f32 %v1013, %v936
    %v1016 = vadd.f32 %v1014, %v940
    %v1017 = vmax.f32 %v1015, 0.0
    %v1018 = vmax.f32 %v1016, 0.0
    %v1019 = vpack.c.bf16 %v1017, %v1017
    %v1020 = vpack.c.bf16 %v1018, %v1018
    %v1023 = vrot.slane %v1019, 4
    %v1024 = vrot.slane %v1020, 4
    %1027 = vst [vmem:[#allocation3 + $0x10] sm:$0xf0] %v1023
    %1028 = vst [vmem:[#allocation3 + $0x18] sm:$0xf0] %v1024
    %v1029 = vld [vmem:[#allocation2 + $0x100] sm:$0xff]
    %v1030 = vld [vmem:[#allocation2 + $0x108] sm:$0xff]
    %v1031 = vld [vmem:[#allocation2 + $0x110] sm:$0xff]
    %v1032 = vld [vmem:[#allocation2 + $0x118] sm:$0xff]
    %v1033 = vld [vmem:[#allocation2 + $0x120] sm:$0xff]
    %v1034 = vld [vmem:[#allocation2 + $0x128] sm:$0xff]
    %v1035 = vld [vmem:[#allocation2 + $0x130] sm:$0xff]
    %v1036 = vld [vmem:[#allocation2 + $0x138] sm:$0xff]
    %v1037 = vmax.f32 %v1029, %v1033
    %v1038 = vmax.f32 %v1030, %v1034
    %v1039 = vmax.f32 %v1031, %v1035
    %v1040 = vmax.f32 %v1032, %v1036
    %v1041 = vmax.f32 %v1037, %v1039
    %v1042 = vmax.f32 %v1038, %v1040
    %v1043 = vadd.f32 %v1041, %v936
    %v1044 = vadd.f32 %v1042, %v940
    %v1045 = vmax.f32 %v1043, 0.0
    %v1046 = vmax.f32 %v1044, 0.0
    %v1047 = vpack.c.bf16 %v1045, %v1045
    %v1048 = vpack.c.bf16 %v1046, %v1046
    %1049 = vst [vmem:[#allocation3 + $0x20] sm:$0xf] %v1047
    %1050 = vst [vmem:[#allocation3 + $0x28] sm:$0xf] %v1048
    %v1051 = vld [vmem:[#allocation2 + $0x140] sm:$0xff]
    %v1052 = vld [vmem:[#allocation2 + $0x148] sm:$0xff]
    %v1053 = vld [vmem:[#allocation2 + $0x150] sm:$0xff]
    %v1054 = vld [vmem:[#allocation2 + $0x158] sm:$0xff]
    %v1055 = vld [vmem:[#allocation2 + $0x160] sm:$0xff]
    %v1056 = vld [vmem:[#allocation2 + $0x168] sm:$0xff]
    %v1057 = vld [vmem:[#allocation2 + $0x170] sm:$0xff]
    %v1058 = vld [vmem:[#allocation2 + $0x178] sm:$0xff]
    %v1059 = vmax.f32 %v1051, %v1055
    %v1060 = vmax.f32 %v1052, %v1056
    %v1061 = vmax.f32 %v1053, %v1057
    %v1062 = vmax.f32 %v1054, %v1058
    %v1063 = vmax.f32 %v1059, %v1061
    %v1064 = vmax.f32 %v1060, %v1062
    %v1065 = vadd.f32 %v1063, %v936
    %v1066 = vadd.f32 %v1064, %v940
    %v1067 = vmax.f32 %v1065, 0.0
    %v1068 = vmax.f32 %v1066, 0.0
    %v1069 = vpack.c.bf16 %v1067, %v1067
    %v1070 = vpack.c.bf16 %v1068, %v1068
    %v1073 = vrot.slane %v1069, 4
    %v1074 = vrot.slane %v1070, 4
    %1077 = vst [vmem:[#allocation3 + $0x20] sm:$0xf0] %v1073
    %1078 = vst [vmem:[#allocation3 + $0x28] sm:$0xf0] %v1074
    %v1079 = vld [vmem:[#allocation2 + $0x180] sm:$0xff]
    %v1080 = vld [vmem:[#allocation2 + $0x188] sm:$0xff]
    %v1081 = vld [vmem:[#allocation2 + $0x190] sm:$0xff]
    %v1082 = vld [vmem:[#allocation2 + $0x198] sm:$0xff]
    %v1083 = vld [vmem:[#allocation2 + $0x1a0] sm:$0xff]
    %v1084 = vld [vmem:[#allocation2 + $0x1a8] sm:$0xff]
    %v1085 = vld [vmem:[#allocation2 + $0x1b0] sm:$0xff]
    %v1086 = vld [vmem:[#allocation2 + $0x1b8] sm:$0xff]
    %v1087 = vmax.f32 %v1079, %v1083
    %v1088 = vmax.f32 %v1080, %v1084
    %v1089 = vmax.f32 %v1081, %v1085
    %v1090 = vmax.f32 %v1082, %v1086
    %v1091 = vmax.f32 %v1087, %v1089
    %v1092 = vmax.f32 %v1088, %v1090
    %v1093 = vadd.f32 %v1091, %v936
    %v1094 = vadd.f32 %v1092, %v940
    %v1095 = vmax.f32 %v1093, 0.0
    %v1096 = vmax.f32 %v1094, 0.0
    %v1097 = vpack.c.bf16 %v1095, %v1095
    %v1098 = vpack.c.bf16 %v1096, %v1096
    %1099 = vst [vmem:[#allocation3 + $0x30] sm:$0xf] %v1097
    %1100 = vst [vmem:[#allocation3 + $0x38] sm:$0xf] %v1098
    %v1101 = vld [vmem:[#allocation2 + $0x1c0] sm:$0xff]
    %v1102 = vld [vmem:[#allocation2 + $0x1c8] sm:$0xff]
    %v1103 = vld [vmem:[#allocation2 + $0x1d0] sm:$0xff]
    %v1104 = vld [vmem:[#allocation2 + $0x1d8] sm:$0xff]
    %v1105 = vld [vmem:[#allocation2 + $0x1e0] sm:$0xff]
    %v1106 = vld [vmem:[#allocation2 + $0x1e8] sm:$0xff]
    %v1107 = vld [vmem:[#allocation2 + $0x1f0] sm:$0xff]
    %v1108 = vld [vmem:[#allocation2 + $0x1f8] sm:$0xff]
    %v1109 = vmax.f32 %v1101, %v1105
    %v1110 = vmax.f32 %v1102, %v1106
    %v1111 = vmax.f32 %v1103, %v1107
    %v1112 = vmax.f32 %v1104, %v1108
    %v1113 = vmax.f32 %v1109, %v1111
    %v1114 = vmax.f32 %v1110, %v1112
    %v1115 = vadd.f32 %v1113, %v936
    %v1116 = vadd.f32 %v1114, %v940
    %v1117 = vmax.f32 %v1115, 0.0
    %v1118 = vmax.f32 %v1116, 0.0
    %v1119 = vpack.c.bf16 %v1117, %v1117
    %v1120 = vpack.c.bf16 %v1118, %v1118
    %v1123 = vrot.slane %v1119, 4
    %v1124 = vrot.slane %v1120, 4
    %1127 = vst [vmem:[#allocation3 + $0x30] sm:$0xf0] %v1123
    %1128 = vst [vmem:[#allocation3 + $0x38] sm:$0xf0] %v1124
    %v1129 = vld [vmem:[#allocation2 + $0x200] sm:$0xff]
    %v1130 = vld [vmem:[#allocation2 + $0x208] sm:$0xff]
    %v1131 = vld [vmem:[#allocation2 + $0x210] sm:$0xff]
    %v1132 = vld [vmem:[#allocation2 + $0x218] sm:$0xff]
    %v1133 = vld [vmem:[#allocation2 + $0x220] sm:$0xff]
    %v1134 = vld [vmem:[#allocation2 + $0x228] sm:$0xff]
    %v1135 = vld [vmem:[#allocation2 + $0x230] sm:$0xff]
    %v1136 = vld [vmem:[#allocation2 + $0x238] sm:$0xff]
    %v1137 = vmax.f32 %v1129, %v1133
    %v1138 = vmax.f32 %v1130, %v1134
    %v1139 = vmax.f32 %v1131, %v1135
    %v1140 = vmax.f32 %v1132, %v1136
    %v1141 = vmax.f32 %v1137, %v1139
    %v1142 = vmax.f32 %v1138, %v1140
    %v1143 = vadd.f32 %v1141, %v936
    %v1144 = vadd.f32 %v1142, %v940
    %v1145 = vmax.f32 %v1143, 0.0
    %v1146 = vmax.f32 %v1144, 0.0
    %v1147 = vpack.c.bf16 %v1145, %v1145
    %v1148 = vpack.c.bf16 %v1146, %v1146
    %1149 = vst [vmem:[#allocation3 + $0x40] sm:$0xf] %v1147
    %1150 = vst [vmem:[#allocation3 + $0x48] sm:$0xf] %v1148
    %v1151 = vld [vmem:[#allocation2 + $0x240] sm:$0xff]
    %v1152 = vld [vmem:[#allocation2 + $0x248] sm:$0xff]
    %v1153 = vld [vmem:[#allocation2 + $0x250] sm:$0xff]
    %v1154 = vld [vmem:[#allocation2 + $0x258] sm:$0xff]
    %v1155 = vld [vmem:[#allocation2 + $0x260] sm:$0xff]
    %v1156 = vld [vmem:[#allocation2 + $0x268] sm:$0xff]
    %v1157 = vld [vmem:[#allocation2 + $0x270] sm:$0xff]
    %v1158 = vld [vmem:[#allocation2 + $0x278] sm:$0xff]
    %v1159 = vmax.f32 %v1151, %v1155
    %v1160 = vmax.f32 %v1152, %v1156
    %v1161 = vmax.f32 %v1153, %v1157
    %v1162 = vmax.f32 %v1154, %v1158
    %v1163 = vmax.f32 %v1159, %v1161
    %v1164 = vmax.f32 %v1160, %v1162
    %v1165 = vadd.f32 %v1163, %v936
    %v1166 = vadd.f32 %v1164, %v940
    %v1167 = vmax.f32 %v1165, 0.0
    %v1168 = vmax.f32 %v1166, 0.0
    %v1169 = vpack.c.bf16 %v1167, %v1167
    %v1170 = vpack.c.bf16 %v1168, %v1168
    %v1173 = vrot.slane %v1169, 4
    %v1174 = vrot.slane %v1170, 4
    %1177 = vst [vmem:[#allocation3 + $0x40] sm:$0xf0] %v1173
    %1178 = vst [vmem:[#allocation3 + $0x48] sm:$0xf0] %v1174
    %v1179 = vld [vmem:[#allocation2 + $0x280] sm:$0xff]
    %v1180 = vld [vmem:[#allocation2 + $0x288] sm:$0xff]
    %v1181 = vld [vmem:[#allocation2 + $0x290] sm:$0xff]
    %v1182 = vld [vmem:[#allocation2 + $0x298] sm:$0xff]
    %v1183 = vld [vmem:[#allocation2 + $0x2a0] sm:$0xff]
    %v1184 = vld [vmem:[#allocation2 + $0x2a8] sm:$0xff]
    %v1185 = vld [vmem:[#allocation2 + $0x2b0] sm:$0xff]
    %v1186 = vld [vmem:[#allocation2 + $0x2b8] sm:$0xff]
    %v1187 = vmax.f32 %v1179, %v1183
    %v1188 = vmax.f32 %v1180, %v1184
    %v1189 = vmax.f32 %v1181, %v1185
    %v1190 = vmax.f32 %v1182, %v1186
    %v1191 = vmax.f32 %v1187, %v1189
    %v1192 = vmax.f32 %v1188, %v1190
    %v1193 = vadd.f32 %v1191, %v936
    %v1194 = vadd.f32 %v1192, %v940
    %v1195 = vmax.f32 %v1193, 0.0
    %v1196 = vmax.f32 %v1194, 0.0
    %v1197 = vpack.c.bf16 %v1195, %v1195
    %v1198 = vpack.c.bf16 %v1196, %v1196
    %1199 = vst [vmem:[#allocation3 + $0x50] sm:$0xf] %v1197
    %1200 = vst [vmem:[#allocation3 + $0x58] sm:$0xf] %v1198
    %v1201 = vld [vmem:[#allocation2 + $0x2c0] sm:$0xff]
    %v1202 = vld [vmem:[#allocation2 + $0x2c8] sm:$0xff]
    %v1203 = vld [vmem:[#allocation2 + $0x2d0] sm:$0xff]
    %v1204 = vld [vmem:[#allocation2 + $0x2d8] sm:$0xff]
    %v1205 = vld [vmem:[#allocation2 + $0x2e0] sm:$0xff]
    %v1206 = vld [vmem:[#allocation2 + $0x2e8] sm:$0xff]
    %v1207 = vld [vmem:[#allocation2 + $0x2f0] sm:$0xff]
    %v1208 = vld [vmem:[#allocation2 + $0x2f8] sm:$0xff]
    %v1209 = vmax.f32 %v1201, %v1205
    %v1210 = vmax.f32 %v1202, %v1206
    %v1211 = vmax.f32 %v1203, %v1207
    %v1212 = vmax.f32 %v1204, %v1208
    %v1213 = vmax.f32 %v1209, %v1211
    %v1214 = vmax.f32 %v1210, %v1212
    %v1215 = vadd.f32 %v1213, %v936
    %v1216 = vadd.f32 %v1214, %v940
    %v1217 = vmax.f32 %v1215, 0.0
    %v1218 = vmax.f32 %v1216, 0.0
    %v1219 = vpack.c.bf16 %v1217, %v1217
    %v1220 = vpack.c.bf16 %v1218, %v1218
    %v1223 = vrot.slane %v1219, 4
    %v1224 = vrot.slane %v1220, 4
    %1227 = vst [vmem:[#allocation3 + $0x50] sm:$0xf0] %v1223
    %1228 = vst [vmem:[#allocation3 + $0x58] sm:$0xf0] %v1224
    %v1229 = vld [vmem:[#allocation3] sm:$0xff]
    %v1230 = vld [vmem:[#allocation3 + $0x8] sm:$0xff]
    %v1231 = vld [vmem:[#allocation3 + $0x10] sm:$0xff]
    %v1232 = vld [vmem:[#allocation3 + $0x18] sm:$0xff]
    %v1233 = vld [vmem:[#allocation3 + $0x20] sm:$0xff]
    %v1234 = vld [vmem:[#allocation3 + $0x28] sm:$0xff]
    %v1235 = vld [vmem:[#allocation3 + $0x30] sm:$0xff]
    %v1236 = vld [vmem:[#allocation3 + $0x38] sm:$0xff]
    %v1237 = vld [vmem:[#allocation10] sm:$0xff]
    %v1238 = vld [vmem:[#allocation10 + $0x8] sm:$0xff]
    %v1239 = vld [vmem:[#allocation10 + $0x10] sm:$0xff]
    %v1240 = vld [vmem:[#allocation10 + $0x18] sm:$0xff]
    %v1241 = vld [vmem:[#allocation10 + $0x20] sm:$0xff]
    %v1242 = vld [vmem:[#allocation10 + $0x28] sm:$0xff]
    %v1243 = vld [vmem:[#allocation10 + $0x30] sm:$0xff]
    %v1244 = vld [vmem:[#allocation10 + $0x38] sm:$0xff]
    %v1245 = vld [vmem:[#allocation10 + $0x40] sm:$0xff]
    %v1246 = vld [vmem:[#allocation10 + $0x48] sm:$0xff]
    %v1247 = vld [vmem:[#allocation10 + $0x50] sm:$0xff]
    %v1248 = vld [vmem:[#allocation10 + $0x58] sm:$0xff]
    %v1249 = vld [vmem:[#allocation10 + $0x60] sm:$0xff]
    %v1250 = vld [vmem:[#allocation10 + $0x68] sm:$0xff]
    %v1251 = vld [vmem:[#allocation10 + $0x70] sm:$0xff]
    %v1252 = vld [vmem:[#allocation10 + $0x78] sm:$0xff]
    %v1253 = vld [vmem:[#allocation10 + $0x80] sm:$0xff]
    %v1254 = vld [vmem:[#allocation10 + $0x88] sm:$0xff]
    %v1255 = vld [vmem:[#allocation10 + $0x90] sm:$0xff]
    %v1256 = vld [vmem:[#allocation10 + $0x98] sm:$0xff]
    %v1257 = vld [vmem:[#allocation10 + $0xa0] sm:$0xff]
    %v1258 = vld [vmem:[#allocation10 + $0xa8] sm:$0xff]
    %v1259 = vld [vmem:[#allocation10 + $0xb0] sm:$0xff]
    %v1260 = vld [vmem:[#allocation10 + $0xb8] sm:$0xff]
    %v1261 = vld [vmem:[#allocation10 + $0xc0] sm:$0xff]
    %v1262 = vld [vmem:[#allocation10 + $0xc8] sm:$0xff]
    %v1263 = vld [vmem:[#allocation10 + $0xd0] sm:$0xff]
    %v1264 = vld [vmem:[#allocation10 + $0xd8] sm:$0xff]
    %v1265 = vld [vmem:[#allocation10 + $0xe0] sm:$0xff]
    %v1266 = vld [vmem:[#allocation10 + $0xe8] sm:$0xff]
    %v1267 = vld [vmem:[#allocation10 + $0xf0] sm:$0xff]
    %v1268 = vld [vmem:[#allocation10 + $0xf8] sm:$0xff]
    %v1269 = vld [vmem:[#allocation10 + $0x100] sm:$0xff]
    %v1270 = vld [vmem:[#allocation10 + $0x108] sm:$0xff]
    %v1271 = vld [vmem:[#allocation10 + $0x110] sm:$0xff]
    %v1272 = vld [vmem:[#allocation10 + $0x118] sm:$0xff]
    %v1273 = vld [vmem:[#allocation10 + $0x120] sm:$0xff]
    %v1274 = vld [vmem:[#allocation10 + $0x128] sm:$0xff]
    %v1275 = vld [vmem:[#allocation10 + $0x130] sm:$0xff]
    %v1276 = vld [vmem:[#allocation10 + $0x138] sm:$0xff]
    %v1277 = vld [vmem:[#allocation10 + $0x140] sm:$0xff]
    %v1278 = vld [vmem:[#allocation10 + $0x148] sm:$0xff]
    %v1279 = vld [vmem:[#allocation10 + $0x150] sm:$0xff]
    %v1280 = vld [vmem:[#allocation10 + $0x158] sm:$0xff]
    %v1281 = vld [vmem:[#allocation10 + $0x160] sm:$0xff]
    %v1282 = vld [vmem:[#allocation10 + $0x168] sm:$0xff]
    %v1283 = vld [vmem:[#allocation10 + $0x170] sm:$0xff]
    %v1284 = vld [vmem:[#allocation10 + $0x178] sm:$0xff]
    %v1285 = vld [vmem:[#allocation10 + $0x180] sm:$0xff]
    %v1286 = vld [vmem:[#allocation10 + $0x188] sm:$0xff]
    %v1287 = vld [vmem:[#allocation10 + $0x190] sm:$0xff]
    %v1288 = vld [vmem:[#allocation10 + $0x198] sm:$0xff]
    %v1289 = vld [vmem:[#allocation10 + $0x1a0] sm:$0xff]
    %v1290 = vld [vmem:[#allocation10 + $0x1a8] sm:$0xff]
    %v1291 = vld [vmem:[#allocation10 + $0x1b0] sm:$0xff]
    %v1292 = vld [vmem:[#allocation10 + $0x1b8] sm:$0xff]
    %v1293 = vld [vmem:[#allocation10 + $0x1c0] sm:$0xff]
    %v1294 = vld [vmem:[#allocation10 + $0x1c8] sm:$0xff]
    %v1295 = vld [vmem:[#allocation10 + $0x1d0] sm:$0xff]
    %v1296 = vld [vmem:[#allocation10 + $0x1d8] sm:$0xff]
    %v1297 = vld [vmem:[#allocation10 + $0x1e0] sm:$0xff]
    %v1298 = vld [vmem:[#allocation10 + $0x1e8] sm:$0xff]
    %v1299 = vld [vmem:[#allocation10 + $0x1f0] sm:$0xff]
    %v1300 = vld [vmem:[#allocation10 + $0x1f8] sm:$0xff]
    %v1365 = vunpack.c.l.b16 %v1237
    %v1366 = vunpack.c.h.b16 %v1237
    %v1367 = vunpack.c.l.b16 %v1238
    %v1368 = vunpack.c.h.b16 %v1238
    %v1369 = vunpack.c.l.b16 %v1239
    %v1370 = vunpack.c.h.b16 %v1239
    %v1371 = vunpack.c.l.b16 %v1240
    %v1372 = vunpack.c.h.b16 %v1240
    %v1373 = vunpack.c.l.b16 %v1241
    %v1374 = vunpack.c.h.b16 %v1241
    %v1375 = vunpack.c.l.b16 %v1242
    %v1376 = vunpack.c.h.b16 %v1242
    %v1377 = vunpack.c.l.b16 %v1243
    %v1378 = vunpack.c.h.b16 %v1243
    %v1379 = vunpack.c.l.b16 %v1244
    %v1380 = vunpack.c.h.b16 %v1244
    %v1381 = vunpack.c.l.b16 %v1245
    %v1382 = vunpack.c.h.b16 %v1245
    %v1383 = vunpack.c.l.b16 %v1246
    %v1384 = vunpack.c.h.b16 %v1246
    %v1385 = vunpack.c.l.b16 %v1247
    %v1386 = vunpack.c.h.b16 %v1247
    %v1387 = vunpack.c.l.b16 %v1248
    %v1388 = vunpack.c.h.b16 %v1248
    %v1389 = vunpack.c.l.b16 %v1249
    %v1390 = vunpack.c.h.b16 %v1249
    %v1391 = vunpack.c.l.b16 %v1250
    %v1392 = vunpack.c.h.b16 %v1250
    %v1393 = vunpack.c.l.b16 %v1251
    %v1394 = vunpack.c.h.b16 %v1251
    %v1395 = vunpack.c.l.b16 %v1252
    %v1396 = vunpack.c.h.b16 %v1252
    %v1397 = vunpack.c.l.b16 %v1253
    %v1398 = vunpack.c.h.b16 %v1253
    %v1399 = vunpack.c.l.b16 %v1254
    %v1400 = vunpack.c.h.b16 %v1254
    %v1401 = vunpack.c.l.b16 %v1255
    %v1402 = vunpack.c.h.b16 %v1255
    %v1403 = vunpack.c.l.b16 %v1256
    %v1404 = vunpack.c.h.b16 %v1256
    %v1405 = vunpack.c.l.b16 %v1257
    %v1406 = vunpack.c.h.b16 %v1257
    %v1407 = vunpack.c.l.b16 %v1258
    %v1408 = vunpack.c.h.b16 %v1258
    %v1409 = vunpack.c.l.b16 %v1259
    %v1410 = vunpack.c.h.b16 %v1259
    %v1411 = vunpack.c.l.b16 %v1260
    %v1412 = vunpack.c.h.b16 %v1260
    %v1413 = vunpack.c.l.b16 %v1261
    %v1414 = vunpack.c.h.b16 %v1261
    %v1415 = vunpack.c.l.b16 %v1262
    %v1416 = vunpack.c.h.b16 %v1262
    %v1417 = vunpack.c.l.b16 %v1263
    %v1418 = vunpack.c.h.b16 %v1263
    %v1419 = vunpack.c.l.b16 %v1264
    %v1420 = vunpack.c.h.b16 %v1264
    %v1421 = vunpack.c.l.b16 %v1265
    %v1422 = vunpack.c.h.b16 %v1265
    %v1423 = vunpack.c.l.b16 %v1266
    %v1424 = vunpack.c.h.b16 %v1266
    %v1425 = vunpack.c.l.b16 %v1267
    %v1426 = vunpack.c.h.b16 %v1267
    %v1427 = vunpack.c.l.b16 %v1268
    %v1428 = vunpack.c.h.b16 %v1268
    %v1429 = vunpack.c.l.b16 %v1269
    %v1430 = vunpack.c.h.b16 %v1269
    %v1431 = vunpack.c.l.b16 %v1270
    %v1432 = vunpack.c.h.b16 %v1270
    %v1433 = vunpack.c.l.b16 %v1271
    %v1434 = vunpack.c.h.b16 %v1271
    %v1435 = vunpack.c.l.b16 %v1272
    %v1436 = vunpack.c.h.b16 %v1272
    %v1437 = vunpack.c.l.b16 %v1273
    %v1438 = vunpack.c.h.b16 %v1273
    %v1439 = vunpack.c.l.b16 %v1274
    %v1440 = vunpack.c.h.b16 %v1274
    %v1441 = vunpack.c.l.b16 %v1275
    %v1442 = vunpack.c.h.b16 %v1275
    %v1443 = vunpack.c.l.b16 %v1276
    %v1444 = vunpack.c.h.b16 %v1276
    %v1445 = vunpack.c.l.b16 %v1277
    %v1446 = vunpack.c.h.b16 %v1277
    %v1447 = vunpack.c.l.b16 %v1278
    %v1448 = vunpack.c.h.b16 %v1278
    %v1449 = vunpack.c.l.b16 %v1279
    %v1450 = vunpack.c.h.b16 %v1279
    %v1451 = vunpack.c.l.b16 %v1280
    %v1452 = vunpack.c.h.b16 %v1280
    %v1453 = vunpack.c.l.b16 %v1281
    %v1454 = vunpack.c.h.b16 %v1281
    %v1455 = vunpack.c.l.b16 %v1282
    %v1456 = vunpack.c.h.b16 %v1282
    %v1457 = vunpack.c.l.b16 %v1283
    %v1458 = vunpack.c.h.b16 %v1283
    %v1459 = vunpack.c.l.b16 %v1284
    %v1460 = vunpack.c.h.b16 %v1284
    %v1461 = vunpack.c.l.b16 %v1285
    %v1462 = vunpack.c.h.b16 %v1285
    %v1463 = vunpack.c.l.b16 %v1286
    %v1464 = vunpack.c.h.b16 %v1286
    %v1465 = vunpack.c.l.b16 %v1287
    %v1466 = vunpack.c.h.b16 %v1287
    %v1467 = vunpack.c.l.b16 %v1288
    %v1468 = vunpack.c.h.b16 %v1288
    %v1469 = vunpack.c.l.b16 %v1289
    %v1470 = vunpack.c.h.b16 %v1289
    %v1471 = vunpack.c.l.b16 %v1290
    %v1472 = vunpack.c.h.b16 %v1290
    %v1473 = vunpack.c.l.b16 %v1291
    %v1474 = vunpack.c.h.b16 %v1291
    %v1475 = vunpack.c.l.b16 %v1292
    %v1476 = vunpack.c.h.b16 %v1292
    %v1477 = vunpack.c.l.b16 %v1293
    %v1478 = vunpack.c.h.b16 %v1293
    %v1479 = vunpack.c.l.b16 %v1294
    %v1480 = vunpack.c.h.b16 %v1294
    %v1481 = vunpack.c.l.b16 %v1295
    %v1482 = vunpack.c.h.b16 %v1295
    %v1483 = vunpack.c.l.b16 %v1296
    %v1484 = vunpack.c.h.b16 %v1296
    %v1485 = vunpack.c.l.b16 %v1297
    %v1486 = vunpack.c.h.b16 %v1297
    %v1487 = vunpack.c.l.b16 %v1298
    %v1488 = vunpack.c.h.b16 %v1298
    %v1489 = vunpack.c.l.b16 %v1299
    %v1490 = vunpack.c.h.b16 %v1299
    %v1491 = vunpack.c.l.b16 %v1300
    %v1492 = vunpack.c.h.b16 %v1300
    %v1493 = vpack.c.b16 %v1369, %v1365
    %v1494 = vpack.c.b16 %v1370, %v1366
    %v1495 = vpack.c.b16 %v1371, %v1367
    %v1496 = vpack.c.b16 %v1372, %v1368
    %v1497 = vpack.c.b16 %v1377, %v1373
    %v1498 = vpack.c.b16 %v1378, %v1374
    %v1499 = vpack.c.b16 %v1379, %v1375
    %v1500 = vpack.c.b16 %v1380, %v1376
    %v1501 = vpack.c.b16 %v1385, %v1381
    %v1502 = vpack.c.b16 %v1386, %v1382
    %v1503 = vpack.c.b16 %v1387, %v1383
    %v1504 = vpack.c.b16 %v1388, %v1384
    %v1505 = vpack.c.b16 %v1393, %v1389
    %v1506 = vpack.c.b16 %v1394, %v1390
    %v1507 = vpack.c.b16 %v1395, %v1391
    %v1508 = vpack.c.b16 %v1396, %v1392
    %v1509 = vpack.c.b16 %v1401, %v1397
    %v1510 = vpack.c.b16 %v1402, %v1398
    %v1511 = vpack.c.b16 %v1403, %v1399
    %v1512 = vpack.c.b16 %v1404, %v1400
    %v1513 = vpack.c.b16 %v1409, %v1405
    %v1514 = vpack.c.b16 %v1410, %v1406
    %v1515 = vpack.c.b16 %v1411, %v1407
    %v1516 = vpack.c.b16 %v1412, %v1408
    %v1517 = vpack.c.b16 %v1417, %v1413
    %v1518 = vpack.c.b16 %v1418, %v1414
    %v1519 = vpack.c.b16 %v1419, %v1415
    %v1520 = vpack.c.b16 %v1420, %v1416
    %v1521 = vpack.c.b16 %v1425, %v1421
    %v1522 = vpack.c.b16 %v1426, %v1422
    %v1523 = vpack.c.b16 %v1427, %v1423
    %v1524 = vpack.c.b16 %v1428, %v1424
    %v1525 = vpack.c.b16 %v1433, %v1429
    %v1526 = vpack.c.b16 %v1434, %v1430
    %v1527 = vpack.c.b16 %v1435, %v1431
    %v1528 = vpack.c.b16 %v1436, %v1432
    %v1529 = vpack.c.b16 %v1441, %v1437
    %v1530 = vpack.c.b16 %v1442, %v1438
    %v1531 = vpack.c.b16 %v1443, %v1439
    %v1532 = vpack.c.b16 %v1444, %v1440
    %v1533 = vpack.c.b16 %v1449, %v1445
    %v1534 = vpack.c.b16 %v1450, %v1446
    %v1535 = vpack.c.b16 %v1451, %v1447
    %v1536 = vpack.c.b16 %v1452, %v1448
    %v1537 = vpack.c.b16 %v1457, %v1453
    %v1538 = vpack.c.b16 %v1458, %v1454
    %v1539 = vpack.c.b16 %v1459, %v1455
    %v1540 = vpack.c.b16 %v1460, %v1456
    %v1541 = vpack.c.b16 %v1465, %v1461
    %v1542 = vpack.c.b16 %v1466, %v1462
    %v1543 = vpack.c.b16 %v1467, %v1463
    %v1544 = vpack.c.b16 %v1468, %v1464
    %v1545 = vpack.c.b16 %v1473, %v1469
    %v1546 = vpack.c.b16 %v1474, %v1470
    %v1547 = vpack.c.b16 %v1475, %v1471
    %v1548 = vpack.c.b16 %v1476, %v1472
    %v1549 = vpack.c.b16 %v1481, %v1477
    %v1550 = vpack.c.b16 %v1482, %v1478
    %v1551 = vpack.c.b16 %v1483, %v1479
    %v1552 = vpack.c.b16 %v1484, %v1480
    %v1553 = vpack.c.b16 %v1489, %v1485
    %v1554 = vpack.c.b16 %v1490, %v1486
    %v1555 = vpack.c.b16 %v1491, %v1487
    %v1556 = vpack.c.b16 %v1492, %v1488
    %1621 = vmatprep.subr.bf16.mxu0 %v1494
    %1622 = vmatpush1.bf16.msra.mxu0 %v1493
    %1623 = vmatprep.subr.bf16.mxu0 %v1498
    %1624 = vmatpush1.bf16.msra.mxu0 %v1497
    %1625 = vmatprep.subr.bf16.mxu0 %v1502
    %1626 = vmatpush1.bf16.msra.mxu0 %v1501
    %1627 = vmatprep.subr.bf16.mxu0 %v1506
    %1628 = vmatpush1.bf16.msra.mxu0 %v1505
    %1629 = vmatprep.subr.bf16.mxu0 %v1510
    %1630 = vmatpush1.bf16.msra.mxu0 %v1509
    %1631 = vmatprep.subr.bf16.mxu0 %v1514
    %1632 = vmatpush1.bf16.msra.mxu0 %v1513
    %1633 = vmatprep.subr.bf16.mxu0 %v1518
    %1634 = vmatpush1.bf16.msra.mxu0 %v1517
    %1635 = vmatprep.subr.bf16.mxu0 %v1522
    %1636 = vmatpush1.bf16.msra.mxu0 %v1521
    %1637 = vmatprep.subr.bf16.mxu0 %v1526
    %1638 = vmatpush1.bf16.msra.mxu0 %v1525
    %1639 = vmatprep.subr.bf16.mxu0 %v1530
    %1640 = vmatpush1.bf16.msra.mxu0 %v1529
    %1641 = vmatprep.subr.bf16.mxu0 %v1534
    %1642 = vmatpush1.bf16.msra.mxu0 %v1533
    %1643 = vmatprep.subr.bf16.mxu0 %v1538
    %1644 = vmatpush1.bf16.msra.mxu0 %v1537
    %1645 = vmatprep.subr.bf16.mxu0 %v1542
    %1646 = vmatpush1.bf16.msra.mxu0 %v1541
    %1647 = vmatprep.subr.bf16.mxu0 %v1546
    %1648 = vmatpush1.bf16.msra.mxu0 %v1545
    %1649 = vmatprep.subr.bf16.mxu0 %v1550
    %1650 = vmatpush1.bf16.msra.mxu0 %v1549
    %1651 = vmatprep.subr.bf16.mxu0 %v1554
    %1652 = vmatpush1.bf16.msra.mxu0 %v1553
    %1653 = vmatprep.mubr.bf16.mxu0 %v1230
    %1654 = vmatmul.mubr.bf16.gmra.mrb[0].mxu0 %v1229
    %v1655 = vpop.f32.mrb[0].mxu0
    %v1656 = vadd.f32 0.0, %v1655
    %v1657 = vpop.f32.mrb[0].mxu0
    %v1658 = vadd.f32 0.0, %v1657
    %v1659 = vpop.f32.mrb[0].mxu0
    %v1660 = vadd.f32 0.0, %v1659
    %v1661 = vpop.f32.mrb[0].mxu0
    %v1662 = vadd.f32 0.0, %v1661
    %1663 = vmatprep.mubr.bf16.mxu0 %v1232
    %1664 = vmatmul.mubr.bf16.gmra.mrb[0].mxu0 %v1231
    %v1665 = vpop.f32.mrb[0].mxu0
    %v1666 = vadd.f32 0.0, %v1665
    %v1667 = vpop.f32.mrb[0].mxu0
    %v1668 = vadd.f32 0.0, %v1667
    %v1669 = vpop.f32.mrb[0].mxu0
    %v1670 = vadd.f32 0.0, %v1669
    %v1671 = vpop.f32.mrb[0].mxu0
    %v1672 = vadd.f32 0.0, %v1671
    %1673 = vmatprep.mubr.bf16.mxu0 %v1234
    %1674 = vmatmul.mubr.bf16.gmra.mrb[0].mxu0 %v1233
    %v1675 = vpop.f32.mrb[0].mxu0
    %v1676 = vadd.f32 0.0, %v1675
    %v1677 = vpop.f32.mrb[0].mxu0
    %v1678 = vadd.f32 0.0, %v1677
    %v1679 = vpop.f32.mrb[0].mxu0
    %v1680 = vadd.f32 0.0, %v1679
    %v1681 = vpop.f32.mrb[0].mxu0
    %v1682 = vadd.f32 0.0, %v1681
    %1683 = vmatprep.mubr.bf16.mxu0 %v1236
    %1684 = vmatmul.mubr.bf16.gmra.mrb[0].mxu0 %v1235
    %v1685 = vpop.f32.mrb[0].mxu0
    %v1686 = vadd.f32 0.0, %v1685
    %v1687 = vpop.f32.mrb[0].mxu0
    %v1688 = vadd.f32 0.0, %v1687
    %v1689 = vpop.f32.mrb[0].mxu0
    %v1690 = vadd.f32 0.0, %v1689
    %v1691 = vpop.f32.mrb[0].mxu0
    %v1692 = vadd.f32 0.0, %v1691
    %1693 = vdwg.mxu0
    %1694 = vmatprep.subr.bf16.mxu0 %v1496
    %1695 = vmatpush1.bf16.msra.mxu0 %v1495
    %1696 = vmatprep.subr.bf16.mxu0 %v1500
    %1697 = vmatpush1.bf16.msra.mxu0 %v1499
    %1698 = vmatprep.subr.bf16.mxu0 %v1504
    %1699 = vmatpush1.bf16.msra.mxu0 %v1503
    %1700 = vmatprep.subr.bf16.mxu0 %v1508
    %1701 = vmatpush1.bf16.msra.mxu0 %v1507
    %1702 = vmatprep.subr.bf16.mxu0 %v1512
    %1703 = vmatpush1.bf16.msra.mxu0 %v1511
    %1704 = vmatprep.subr.bf16.mxu0 %v1516
    %1705 = vmatpush1.bf16.msra.mxu0 %v1515
    %1706 = vmatprep.subr.bf16.mxu0 %v1520
    %1707 = vmatpush1.bf16.msra.mxu0 %v1519
    %1708 = vmatprep.subr.bf16.mxu0 %v1524
    %1709 = vmatpush1.bf16.msra.mxu0 %v1523
    %1710 = vmatprep.subr.bf16.mxu0 %v1528
    %1711 = vmatpush1.bf16.msra.mxu0 %v1527
    %1712 = vmatprep.subr.bf16.mxu0 %v1532
    %1713 = vmatpush1.bf16.msra.mxu0 %v1531
    %1714 = vmatprep.subr.bf16.mxu0 %v1536
    %1715 = vmatpush1.bf16.msra.mxu0 %v1535
    %1716 = vmatprep.subr.bf16.mxu0 %v1540
    %1717 = vmatpush1.bf16.msra.mxu0 %v1539
    %1718 = vmatprep.subr.bf16.mxu0 %v1544
    %1719 = vmatpush1.bf16.msra.mxu0 %v1543
    %1720 = vmatprep.subr.bf16.mxu0 %v1548
    %1721 = vmatpush1.bf16.msra.mxu0 %v1547
    %1722 = vmatprep.subr.bf16.mxu0 %v1552
    %1723 = vmatpush1.bf16.msra.mxu0 %v1551
    %1724 = vmatprep.subr.bf16.mxu0 %v1556
    %1725 = vmatpush1.bf16.msra.mxu0 %v1555
    %1726 = vmatprep.mubr.bf16.mxu0 %v1230
    %1727 = vmatmul.mubr.bf16.gmra.mrb[0].mxu0 %v1229
    %v1728 = vpop.f32.mrb[0].mxu0
    %v1729 = vadd.f32 0.0, %v1728
    %v1730 = vpop.f32.mrb[0].mxu0
    %v1731 = vadd.f32 0.0, %v1730
    %v1732 = vpop.f32.mrb[0].mxu0
    %v1733 = vadd.f32 0.0, %v1732
    %v1734 = vpop.f32.mrb[0].mxu0
    %v1735 = vadd.f32 0.0, %v1734
    %1736 = vmatprep.mubr.bf16.mxu0 %v1232
    %1737 = vmatmul.mubr.bf16.gmra.mrb[0].mxu0 %v1231
    %v1738 = vpop.f32.mrb[0].mxu0
    %v1739 = vadd.f32 0.0, %v1738
    %v1740 = vpop.f32.mrb[0].mxu0
    %v1741 = vadd.f32 0.0, %v1740
    %v1742 = vpop.f32.mrb[0].mxu0
    %v1743 = vadd.f32 0.0, %v1742
    %v1744 = vpop.f32.mrb[0].mxu0
    %v1745 = vadd.f32 0.0, %v1744
    %1746 = vmatprep.mubr.bf16.mxu0 %v1234
    %1747 = vmatmul.mubr.bf16.gmra.mrb[0].mxu0 %v1233
    %v1748 = vpop.f32.mrb[0].mxu0
    %v1749 = vadd.f32 0.0, %v1748
    %v1750 = vpop.f32.mrb[0].mxu0
    %v1751 = vadd.f32 0.0, %v1750
    %v1752 = vpop.f32.mrb[0].mxu0
    %v1753 = vadd.f32 0.0, %v1752
    %v1754 = vpop.f32.mrb[0].mxu0
    %v1755 = vadd.f32 0.0, %v1754
    %1756 = vmatprep.mubr.bf16.mxu0 %v1236
    %1757 = vmatmul.mubr.bf16.gmra.mrb[0].mxu0 %v1235
    %v1758 = vpop.f32.mrb[0].mxu0
    %v1759 = vadd.f32 0.0, %v1758
    %v1760 = vpop.f32.mrb[0].mxu0
    %v1761 = vadd.f32 0.0, %v1760
    %v1762 = vpop.f32.mrb[0].mxu0
    %v1763 = vadd.f32 0.0, %v1762
    %v1764 = vpop.f32.mrb[0].mxu0
    %v1765 = vadd.f32 0.0, %v1764
    %1766 = vdwg.mxu0
    %1767 = vst [vmem:[#allocation4] sm:$0xff] %v1656
    %1768 = vst [vmem:[#allocation4 + $0x8] sm:$0xff] %v1658
    %1769 = vst [vmem:[#allocation4 + $0x10] sm:$0xff] %v1729
    %1770 = vst [vmem:[#allocation4 + $0x18] sm:$0xff] %v1731
    %1771 = vst [vmem:[#allocation4 + $0x20] sm:$0xff] %v1660
    %1772 = vst [vmem:[#allocation4 + $0x28] sm:$0xff] %v1662
    %1773 = vst [vmem:[#allocation4 + $0x30] sm:$0xff] %v1733
    %1774 = vst [vmem:[#allocation4 + $0x38] sm:$0xff] %v1735
    %1775 = vst [vmem:[#allocation4 + $0x40] sm:$0xff] %v1666
    %1776 = vst [vmem:[#allocation4 + $0x48] sm:$0xff] %v1668
    %1777 = vst [vmem:[#allocation4 + $0x50] sm:$0xff] %v1739
    %1778 = vst [vmem:[#allocation4 + $0x58] sm:$0xff] %v1741
    %1779 = vst [vmem:[#allocation4 + $0x60] sm:$0xff] %v1670
    %1780 = vst [vmem:[#allocation4 + $0x68] sm:$0xff] %v1672
    %1781 = vst [vmem:[#allocation4 + $0x70] sm:$0xff] %v1743
    %1782 = vst [vmem:[#allocation4 + $0x78] sm:$0xff] %v1745
    %1783 = vst [vmem:[#allocation4 + $0x80] sm:$0xff] %v1676
    %1784 = vst [vmem:[#allocation4 + $0x88] sm:$0xff] %v1678
    %1785 = vst [vmem:[#allocation4 + $0x90] sm:$0xff] %v1749
    %1786 = vst [vmem:[#allocation4 + $0x98] sm:$0xff] %v1751
    %1787 = vst [vmem:[#allocation4 + $0xa0] sm:$0xff] %v1680
    %1788 = vst [vmem:[#allocation4 + $0xa8] sm:$0xff] %v1682
    %1789 = vst [vmem:[#allocation4 + $0xb0] sm:$0xff] %v1753
    %1790 = vst [vmem:[#allocation4 + $0xb8] sm:$0xff] %v1755
    %1791 = vst [vmem:[#allocation4 + $0xc0] sm:$0xff] %v1686
    %1792 = vst [vmem:[#allocation4 + $0xc8] sm:$0xff] %v1688
    %1793 = vst [vmem:[#allocation4 + $0xd0] sm:$0xff] %v1759
    %1794 = vst [vmem:[#allocation4 + $0xd8] sm:$0xff] %v1761
    %1795 = vst [vmem:[#allocation4 + $0xe0] sm:$0xff] %v1690
    %1796 = vst [vmem:[#allocation4 + $0xe8] sm:$0xff] %v1692
    %1797 = vst [vmem:[#allocation4 + $0xf0] sm:$0xff] %v1763
    %1798 = vst [vmem:[#allocation4 + $0xf8] sm:$0xff] %v1765
    %v1799 = vld [vmem:[#allocation3] sm:$0xf0]
    %v1800 = vld [vmem:[#allocation3 + $0x8] sm:$0xf0]
    %v1801 = vld [vmem:[#allocation3 + $0x10] sm:$0xff]
    %v1802 = vld [vmem:[#allocation3 + $0x18] sm:$0xff]
    %v1803 = vld [vmem:[#allocation3 + $0x20] sm:$0xff]
    %v1804 = vld [vmem:[#allocation3 + $0x28] sm:$0xff]
    %v1805 = vld [vmem:[#allocation3 + $0x30] sm:$0xff]
    %v1806 = vld [vmem:[#allocation3 + $0x38] sm:$0xff]
    %v1807 = vld [vmem:[#allocation3 + $0x40] sm:$0xf]
    %v1808 = vld [vmem:[#allocation3 + $0x48] sm:$0xf]
    %s1809 = scalar_lea.vmem [#allocation10], 512
    %v1810 = vld [vmem:[%s1809] sm:$0xff]
    %v1811 = vld [vmem:[%s1809 + $0x8] sm:$0xff]
    %v1812 = vld [vmem:[%s1809 + $0x10] sm:$0xff]
    %v1813 = vld [vmem:[%s1809 + $0x18] sm:$0xff]
    %v1814 = vld [vmem:[%s1809 + $0x20] sm:$0xff]
    %v1815 = vld [vmem:[%s1809 + $0x28] sm:$0xff]
    %v1816 = vld [vmem:[%s1809 + $0x30] sm:$0xff]
    %v1817 = vld [vmem:[%s1809 + $0x38] sm:$0xff]
    %v1818 = vld [vmem:[%s1809 + $0x40] sm:$0xff]
    %v1819 = vld [vmem:[%s1809 + $0x48] sm:$0xff]
    %v1820 = vld [vmem:[%s1809 + $0x50] sm:$0xff]
    %v1821 = vld [vmem:[%s1809 + $0x58] sm:$0xff]
    %v1822 = vld [vmem:[%s1809 + $0x60] sm:$0xff]
    %v1823 = vld [vmem:[%s1809 + $0x68] sm:$0xff]
    %v1824 = vld [vmem:[%s1809 + $0x70] sm:$0xff]
    %v1825 = vld [vmem:[%s1809 + $0x78] sm:$0xff]
    %v1826 = vld [vmem:[%s1809 + $0x80] sm:$0xff]
    %v1827 = vld [vmem:[%s1809 + $0x88] sm:$0xff]
    %v1828 = vld [vmem:[%s1809 + $0x90] sm:$0xff]
    %v1829 = vld [vmem:[%s1809 + $0x98] sm:$0xff]
    %v1830 = vld [vmem:[%s1809 + $0xa0] sm:$0xff]
    %v1831 = vld [vmem:[%s1809 + $0xa8] sm:$0xff]
    %v1832 = vld [vmem:[%s1809 + $0xb0] sm:$0xff]
    %v1833 = vld [vmem:[%s1809 + $0xb8] sm:$0xff]
    %v1834 = vld [vmem:[%s1809 + $0xc0] sm:$0xff]
    %v1835 = vld [vmem:[%s1809 + $0xc8] sm:$0xff]
    %v1836 = vld [vmem:[%s1809 + $0xd0] sm:$0xff]
    %v1837 = vld [vmem:[%s1809 + $0xd8] sm:$0xff]
    %v1838 = vld [vmem:[%s1809 + $0xe0] sm:$0xff]
    %v1839 = vld [vmem:[%s1809 + $0xe8] sm:$0xff]
    %v1840 = vld [vmem:[%s1809 + $0xf0] sm:$0xff]
    %v1841 = vld [vmem:[%s1809 + $0xf8] sm:$0xff]
    %v1842 = vld [vmem:[%s1809 + $0x100] sm:$0xff]
    %v1843 = vld [vmem:[%s1809 + $0x108] sm:$0xff]
    %v1844 = vld [vmem:[%s1809 + $0x110] sm:$0xff]
    %v1845 = vld [vmem:[%s1809 + $0x118] sm:$0xff]
    %v1846 = vld [vmem:[%s1809 + $0x120] sm:$0xff]
    %v1847 = vld [vmem:[%s1809 + $0x128] sm:$0xff]
    %v1848 = vld [vmem:[%s1809 + $0x130] sm:$0xff]
    %v1849 = vld [vmem:[%s1809 + $0x138] sm:$0xff]
    %v1850 = vld [vmem:[%s1809 + $0x140] sm:$0xff]
    %v1851 = vld [vmem:[%s1809 + $0x148] sm:$0xff]
    %v1852 = vld [vmem:[%s1809 + $0x150] sm:$0xff]
    %v1853 = vld [vmem:[%s1809 + $0x158] sm:$0xff]
    %v1854 = vld [vmem:[%s1809 + $0x160] sm:$0xff]
    %v1855 = vld [vmem:[%s1809 + $0x168] sm:$0xff]
    %v1856 = vld [vmem:[%s1809 + $0x170] sm:$0xff]
    %v1857 = vld [vmem:[%s1809 + $0x178] sm:$0xff]
    %v1858 = vld [vmem:[%s1809 + $0x180] sm:$0xff]
    %v1859 = vld [vmem:[%s1809 + $0x188] sm:$0xff]
    %v1860 = vld [vmem:[%s1809 + $0x190] sm:$0xff]
    %v1861 = vld [vmem:[%s1809 + $0x198] sm:$0xff]
    %v1862 = vld [vmem:[%s1809 + $0x1a0] sm:$0xff]
    %v1863 = vld [vmem:[%s1809 + $0x1a8] sm:$0xff]
    %v1864 = vld [vmem:[%s1809 + $0x1b0] sm:$0xff]
    %v1865 = vld [vmem:[%s1809 + $0x1b8] sm:$0xff]
    %v1866 = vld [vmem:[%s1809 + $0x1c0] sm:$0xff]
    %v1867 = vld [vmem:[%s1809 + $0x1c8] sm:$0xff]
    %v1868 = vld [vmem:[%s1809 + $0x1d0] sm:$0xff]
    %v1869 = vld [vmem:[%s1809 + $0x1d8] sm:$0xff]
    %v1870 = vld [vmem:[%s1809 + $0x1e0] sm:$0xff]
    %v1871 = vld [vmem:[%s1809 + $0x1e8] sm:$0xff]
    %v1872 = vld [vmem:[%s1809 + $0x1f0] sm:$0xff]
    %v1873 = vld [vmem:[%s1809 + $0x1f8] sm:$0xff]
    %vm1884 = vcmask 1043456
    %v1885 = vrot.slane %v1799, 4
    %v1886 = vrot.slane %v1801, 4
    %v1887 = vsel %vm1884, %v1885, %v1886
    %v1888 = vrot.slane %v1800, 4
    %v1889 = vrot.slane %v1802, 4
    %v1890 = vsel %vm1884, %v1888, %v1889
    %v1891 = vrot.slane %v1803, 4
    %v1892 = vsel %vm1884, %v1886, %v1891
    %v1893 = vrot.slane %v1804, 4
    %v1894 = vsel %vm1884, %v1889, %v1893
    %v1895 = vrot.slane %v1805, 4
    %v1896 = vsel %vm1884, %v1891, %v1895
    %v1897 = vrot.slane %v1806, 4
    %v1898 = vsel %vm1884, %v1893, %v1897
    %v1899 = vrot.slane %v1807, 4
    %v1900 = vsel %vm1884, %v1895, %v1899
    %v1901 = vrot.slane %v1808, 4
    %v1902 = vsel %vm1884, %v1897, %v1901
    %v1975 = vunpack.c.l.b16 %v1810
    %v1976 = vunpack.c.h.b16 %v1810
    %v1977 = vunpack.c.l.b16 %v1811
    %v1978 = vunpack.c.h.b16 %v1811
    %v1979 = vunpack.c.l.b16 %v1812
    %v1980 = vunpack.c.h.b16 %v1812
    %v1981 = vunpack.c.l.b16 %v1813
    %v1982 = vunpack.c.h.b16 %v1813
    %v1983 = vunpack.c.l.b16 %v1814
    %v1984 = vunpack.c.h.b16 %v1814
    %v1985 = vunpack.c.l.b16 %v1815
    %v1986 = vunpack.c.h.b16 %v1815
    %v1987 = vunpack.c.l.b16 %v1816
    %v1988 = vunpack.c.h.b16 %v1816
    %v1989 = vunpack.c.l.b16 %v1817
    %v1990 = vunpack.c.h.b16 %v1817
    %v1991 = vunpack.c.l.b16 %v1818
    %v1992 = vunpack.c.h.b16 %v1818
    %v1993 = vunpack.c.l.b16 %v1819
    %v1994 = vunpack.c.h.b16 %v1819
    %v1995 = vunpack.c.l.b16 %v1820
    %v1996 = vunpack.c.h.b16 %v1820
    %v1997 = vunpack.c.l.b16 %v1821
    %v1998 = vunpack.c.h.b16 %v1821
    %v1999 = vunpack.c.l.b16 %v1822
    %v2000 = vunpack.c.h.b16 %v1822
    %v2001 = vunpack.c.l.b16 %v1823
    %v2002 = vunpack.c.h.b16 %v1823
    %v2003 = vunpack.c.l.b16 %v1824
    %v2004 = vunpack.c.h.b16 %v1824
    %v2005 = vunpack.c.l.b16 %v1825
    %v2006 = vunpack.c.h.b16 %v1825
    %v2007 = vunpack.c.l.b16 %v1826
    %v2008 = vunpack.c.h.b16 %v1826
    %v2009 = vunpack.c.l.b16 %v1827
    %v2010 = vunpack.c.h.b16 %v1827
    %v2011 = vunpack.c.l.b16 %v1828
    %v2012 = vunpack.c.h.b16 %v1828
    %v2013 = vunpack.c.l.b16 %v1829
    %v2014 = vunpack.c.h.b16 %v1829
    %v2015 = vunpack.c.l.b16 %v1830
    %v2016 = vunpack.c.h.b16 %v1830
    %v2017 = vunpack.c.l.b16 %v1831
    %v2018 = vunpack.c.h.b16 %v1831
    %v2019 = vunpack.c.l.b16 %v1832
    %v2020 = vunpack.c.h.b16 %v1832
    %v2021 = vunpack.c.l.b16 %v1833
    %v2022 = vunpack.c.h.b16 %v1833
    %v2023 = vunpack.c.l.b16 %v1834
    %v2024 = vunpack.c.h.b16 %v1834
    %v2025 = vunpack.c.l.b16 %v1835
    %v2026 = vunpack.c.h.b16 %v1835
    %v2027 = vunpack.c.l.b16 %v1836
    %v2028 = vunpack.c.h.b16 %v1836
    %v2029 = vunpack.c.l.b16 %v1837
    %v2030 = vunpack.c.h.b16 %v1837
    %v2031 = vunpack.c.l.b16 %v1838
    %v2032 = vunpack.c.h.b16 %v1838
    %v2033 = vunpack.c.l.b16 %v1839
    %v2034 = vunpack.c.h.b16 %v1839
    %v2035 = vunpack.c.l.b16 %v1840
    %v2036 = vunpack.c.h.b16 %v1840
    %v2037 = vunpack.c.l.b16 %v1841
    %v2038 = vunpack.c.h.b16 %v1841
    %v2039 = vunpack.c.l.b16 %v1842
    %v2040 = vunpack.c.h.b16 %v1842
    %v2041 = vunpack.c.l.b16 %v1843
    %v2042 = vunpack.c.h.b16 %v1843
    %v2043 = vunpack.c.l.b16 %v1844
    %v2044 = vunpack.c.h.b16 %v1844
    %v2045 = vunpack.c.l.b16 %v1845
    %v2046 = vunpack.c.h.b16 %v1845
    %v2047 = vunpack.c.l.b16 %v1846
    %v2048 = vunpack.c.h.b16 %v1846
    %v2049 = vunpack.c.l.b16 %v1847
    %v2050 = vunpack.c.h.b16 %v1847
    %v2051 = vunpack.c.l.b16 %v1848
    %v2052 = vunpack.c.h.b16 %v1848
    %v2053 = vunpack.c.l.b16 %v1849
    %v2054 = vunpack.c.h.b16 %v1849
    %v2055 = vunpack.c.l.b16 %v1850
    %v2056 = vunpack.c.h.b16 %v1850
    %v2057 = vunpack.c.l.b16 %v1851
    %v2058 = vunpack.c.h.b16 %v1851
    %v2059 = vunpack.c.l.b16 %v1852
    %v2060 = vunpack.c.h.b16 %v1852
    %v2061 = vunpack.c.l.b16 %v1853
    %v2062 = vunpack.c.h.b16 %v1853
    %v2063 = vunpack.c.l.b16 %v1854
    %v2064 = vunpack.c.h.b16 %v1854
    %v2065 = vunpack.c.l.b16 %v1855
    %v2066 = vunpack.c.h.b16 %v1855
    %v2067 = vunpack.c.l.b16 %v1856
    %v2068 = vunpack.c.h.b16 %v1856
    %v2069 = vunpack.c.l.b16 %v1857
    %v2070 = vunpack.c.h.b16 %v1857
    %v2071 = vunpack.c.l.b16 %v1858
    %v2072 = vunpack.c.h.b16 %v1858
    %v2073 = vunpack.c.l.b16 %v1859
    %v2074 = vunpack.c.h.b16 %v1859
    %v2075 = vunpack.c.l.b16 %v1860
    %v2076 = vunpack.c.h.b16 %v1860
    %v2077 = vunpack.c.l.b16 %v1861
    %v2078 = vunpack.c.h.b16 %v1861
    %v2079 = vunpack.c.l.b16 %v1862
    %v2080 = vunpack.c.h.b16 %v1862
    %v2081 = vunpack.c.l.b16 %v1863
    %v2082 = vunpack.c.h.b16 %v1863
    %v2083 = vunpack.c.l.b16 %v1864
    %v2084 = vunpack.c.h.b16 %v1864
    %v2085 = vunpack.c.l.b16 %v1865
    %v2086 = vunpack.c.h.b16 %v1865
    %v2087 = vunpack.c.l.b16 %v1866
    %v2088 = vunpack.c.h.b16 %v1866
    %v2089 = vunpack.c.l.b16 %v1867
    %v2090 = vunpack.c.h.b16 %v1867
    %v2091 = vunpack.c.l.b16 %v1868
    %v2092 = vunpack.c.h.b16 %v1868
    %v2093 = vunpack.c.l.b16 %v1869
    %v2094 = vunpack.c.h.b16 %v1869
    %v2095 = vunpack.c.l.b16 %v1870
    %v2096 = vunpack.c.h.b16 %v1870
    %v2097 = vunpack.c.l.b16 %v1871
    %v2098 = vunpack.c.h.b16 %v1871
    %v2099 = vunpack.c.l.b16 %v1872
    %v2100 = vunpack.c.h.b16 %v1872
    %v2101 = vunpack.c.l.b16 %v1873
    %v2102 = vunpack.c.h.b16 %v1873
    %v2103 = vpack.c.b16 %v1979, %v1975
    %v2104 = vpack.c.b16 %v1980, %v1976
    %v2105 = vpack.c.b16 %v1981, %v1977
    %v2106 = vpack.c.b16 %v1982, %v1978
    %v2107 = vpack.c.b16 %v1987, %v1983
    %v2108 = vpack.c.b16 %v1988, %v1984
    %v2109 = vpack.c.b16 %v1989, %v1985
    %v2110 = vpack.c.b16 %v1990, %v1986
    %v2111 = vpack.c.b16 %v1995, %v1991
    %v2112 = vpack.c.b16 %v1996, %v1992
    %v2113 = vpack.c.b16 %v1997, %v1993
    %v2114 = vpack.c.b16 %v1998, %v1994
    %v2115 = vpack.c.b16 %v2003, %v1999
    %v2116 = vpack.c.b16 %v2004, %v2000
    %v2117 = vpack.c.b16 %v2005, %v2001
    %v2118 = vpack.c.b16 %v2006, %v2002
    %v2119 = vpack.c.b16 %v2011, %v2007
    %v2120 = vpack.c.b16 %v2012, %v2008
    %v2121 = vpack.c.b16 %v2013, %v2009
    %v2122 = vpack.c.b16 %v2014, %v2010
    %v2123 = vpack.c.b16 %v2019, %v2015
    %v2124 = vpack.c.b16 %v2020, %v2016
    %v2125 = vpack.c.b16 %v2021, %v2017
    %v2126 = vpack.c.b16 %v2022, %v2018
    %v2127 = vpack.c.b16 %v2027, %v2023
    %v2128 = vpack.c.b16 %v2028, %v2024
    %v2129 = vpack.c.b16 %v2029, %v2025
    %v2130 = vpack.c.b16 %v2030, %v2026
    %v2131 = vpack.c.b16 %v2035, %v2031
    %v2132 = vpack.c.b16 %v2036, %v2032
    %v2133 = vpack.c.b16 %v2037, %v2033
    %v2134 = vpack.c.b16 %v2038, %v2034
    %v2135 = vpack.c.b16 %v2043, %v2039
    %v2136 = vpack.c.b16 %v2044, %v2040
    %v2137 = vpack.c.b16 %v2045, %v2041
    %v2138 = vpack.c.b16 %v2046, %v2042
    %v2139 = vpack.c.b16 %v2051, %v2047
    %v2140 = vpack.c.b16 %v2052, %v2048
    %v2141 = vpack.c.b16 %v2053, %v2049
    %v2142 = vpack.c.b16 %v2054, %v2050
    %v2143 = vpack.c.b16 %v2059, %v2055
    %v2144 = vpack.c.b16 %v2060, %v2056
    %v2145 = vpack.c.b16 %v2061, %v2057
    %v2146 = vpack.c.b16 %v2062, %v2058
    %v2147 = vpack.c.b16 %v2067, %v2063
    %v2148 = vpack.c.b16 %v2068, %v2064
    %v2149 = vpack.c.b16 %v2069, %v2065
    %v2150 = vpack.c.b16 %v2070, %v2066
    %v2151 = vpack.c.b16 %v2075, %v2071
    %v2152 = vpack.c.b16 %v2076, %v2072
    %v2153 = vpack.c.b16 %v2077, %v2073
    %v2154 = vpack.c.b16 %v2078, %v2074
    %v2155 = vpack.c.b16 %v2083, %v2079
    %v2156 = vpack.c.b16 %v2084, %v2080
    %v2157 = vpack.c.b16 %v2085, %v2081
    %v2158 = vpack.c.b16 %v2086, %v2082
    %v2159 = vpack.c.b16 %v2091, %v2087
    %v2160 = vpack.c.b16 %v2092, %v2088
    %v2161 = vpack.c.b16 %v2093, %v2089
    %v2162 = vpack.c.b16 %v2094, %v2090
    %v2163 = vpack.c.b16 %v2099, %v2095
    %v2164 = vpack.c.b16 %v2100, %v2096
    %v2165 = vpack.c.b16 %v2101, %v2097
    %v2166 = vpack.c.b16 %v2102, %v2098
    %2231 = vmatprep.subr.bf16.mxu0 %v2104
    %2232 = vmatpush1.bf16.msra.mxu0 %v2103
    %2233 = vmatprep.subr.bf16.mxu0 %v2108
    %2234 = vmatpush1.bf16.msra.mxu0 %v2107
    %2235 = vmatprep.subr.bf16.mxu0 %v2112
    %2236 = vmatpush1.bf16.msra.mxu0 %v2111
    %2237 = vmatprep.subr.bf16.mxu0 %v2116
    %2238 = vmatpush1.bf16.msra.mxu0 %v2115
    %2239 = vmatprep.subr.bf16.mxu0 %v2120
    %2240 = vmatpush1.bf16.msra.mxu0 %v2119
    %2241 = vmatprep.subr.bf16.mxu0 %v2124
    %2242 = vmatpush1.bf16.msra.mxu0 %v2123
    %2243 = vmatprep.subr.bf16.mxu0 %v2128
    %2244 = vmatpush1.bf16.msra.mxu0 %v2127
    %2245 = vmatprep.subr.bf16.mxu0 %v2132
    %2246 = vmatpush1.bf16.msra.mxu0 %v2131
    %2247 = vmatprep.subr.bf16.mxu0 %v2136
    %2248 = vmatpush1.bf16.msra.mxu0 %v2135
    %2249 = vmatprep.subr.bf16.mxu0 %v2140
    %2250 = vmatpush1.bf16.msra.mxu0 %v2139
    %2251 = vmatprep.subr.bf16.mxu0 %v2144
    %2252 = vmatpush1.bf16.msra.mxu0 %v2143
    %2253 = vmatprep.subr.bf16.mxu0 %v2148
    %2254 = vmatpush1.bf16.msra.mxu0 %v2147
    %2255 = vmatprep.subr.bf16.mxu0 %v2152
    %2256 = vmatpush1.bf16.msra.mxu0 %v2151
    %2257 = vmatprep.subr.bf16.mxu0 %v2156
    %2258 = vmatpush1.bf16.msra.mxu0 %v2155
    %2259 = vmatprep.subr.bf16.mxu0 %v2160
    %2260 = vmatpush1.bf16.msra.mxu0 %v2159
    %2261 = vmatprep.subr.bf16.mxu0 %v2164
    %2262 = vmatpush1.bf16.msra.mxu0 %v2163
    %2263 = vmatprep.mubr.bf16.mxu0 %v1890
    %2264 = vmatmul.mubr.bf16.gmra.mrb[0].mxu0 %v1887
    %v2265 = vpop.f32.mrb[0].mxu0
    %v2266 = vadd.f32 0.0, %v2265
    %v2267 = vpop.f32.mrb[0].mxu0
    %v2268 = vadd.f32 0.0, %v2267
    %v2269 = vpop.f32.mrb[0].mxu0
    %v2270 = vadd.f32 0.0, %v2269
    %v2271 = vpop.f32.mrb[0].mxu0
    %v2272 = vadd.f32 0.0, %v2271
    %2273 = vmatprep.mubr.bf16.mxu0 %v1894
    %2274 = vmatmul.mubr.bf16.gmra.mrb[0].mxu0 %v1892
    %v2275 = vpop.f32.mrb[0].mxu0
    %v2276 = vadd.f32 0.0, %v2275
    %v2277 = vpop.f32.mrb[0].mxu0
    %v2278 = vadd.f32 0.0, %v2277
    %v2279 = vpop.f32.mrb[0].mxu0
    %v2280 = vadd.f32 0.0, %v2279
    %v2281 = vpop.f32.mrb[0].mxu0
    %v2282 = vadd.f32 0.0, %v2281
    %2283 = vmatprep.mubr.bf16.mxu0 %v1898
    %2284 = vmatmul.mubr.bf16.gmra.mrb[0].mxu0 %v1896
    %v2285 = vpop.f32.mrb[0].mxu0
    %v2286 = vadd.f32 0.0, %v2285
    %v2287 = vpop.f32.mrb[0].mxu0
    %v2288 = vadd.f32 0.0, %v2287
    %v2289 = vpop.f32.mrb[0].mxu0
    %v2290 = vadd.f32 0.0, %v2289
    %v2291 = vpop.f32.mrb[0].mxu0
    %v2292 = vadd.f32 0.0, %v2291
    %2293 = vmatprep.mubr.bf16.mxu0 %v1902
    %2294 = vmatmul.mubr.bf16.gmra.mrb[0].mxu0 %v1900
    %v2295 = vpop.f32.mrb[0].mxu0
    %v2296 = vadd.f32 0.0, %v2295
    %v2297 = vpop.f32.mrb[0].mxu0
    %v2298 = vadd.f32 0.0, %v2297
    %v2299 = vpop.f32.mrb[0].mxu0
    %v2300 = vadd.f32 0.0, %v2299
    %v2301 = vpop.f32.mrb[0].mxu0
    %v2302 = vadd.f32 0.0, %v2301
    %2303 = vdwg.mxu0
    %2304 = vmatprep.subr.bf16.mxu0 %v2106
    %2305 = vmatpush1.bf16.msra.mxu0 %v2105
    %2306 = vmatprep.subr.bf16.mxu0 %v2110
    %2307 = vmatpush1.bf16.msra.mxu0 %v2109
    %2308 = vmatprep.subr.bf16.mxu0 %v2114
    %2309 = vmatpush1.bf16.msra.mxu0 %v2113
    %2310 = vmatprep.subr.bf16.mxu0 %v2118
    %2311 = vmatpush1.bf16.msra.mxu0 %v2117
    %2312 = vmatprep.subr.bf16.mxu0 %v2122
    %2313 = vmatpush1.bf16.msra.mxu0 %v2121
    %2314 = vmatprep.subr.bf16.mxu0 %v2126
    %2315 = vmatpush1.bf16.msra.mxu0 %v2125
    %2316 = vmatprep.subr.bf16.mxu0 %v2130
    %2317 = vmatpush1.bf16.msra.mxu0 %v2129
    %2318 = vmatprep.subr.bf16.mxu0 %v2134
    %2319 = vmatpush1.bf16.msra.mxu0 %v2133
    %2320 = vmatprep.subr.bf16.mxu0 %v2138
    %2321 = vmatpush1.bf16.msra.mxu0 %v2137
    %2322 = vmatprep.subr.bf16.mxu0 %v2142
    %2323 = vmatpush1.bf16.msra.mxu0 %v2141
    %2324 = vmatprep.subr.bf16.mxu0 %v2146
    %2325 = vmatpush1.bf16.msra.mxu0 %v2145
    %2326 = vmatprep.subr.bf16.mxu0 %v2150
    %2327 = vmatpush1.bf16.msra.mxu0 %v2149
    %2328 = vmatprep.subr.bf16.mxu0 %v2154
    %2329 = vmatpush1.bf16.msra.mxu0 %v2153
    %2330 = vmatprep.subr.bf16.mxu0 %v2158
    %2331 = vmatpush1.bf16.msra.mxu0 %v2157
    %2332 = vmatprep.subr.bf16.mxu0 %v2162
    %2333 = vmatpush1.bf16.msra.mxu0 %v2161
    %2334 = vmatprep.subr.bf16.mxu0 %v2166
    %2335 = vmatpush1.bf16.msra.mxu0 %v2165
    %2336 = vmatprep.mubr.bf16.mxu0 %v1890
    %2337 = vmatmul.mubr.bf16.gmra.mrb[0].mxu0 %v1887
    %v2338 = vpop.f32.mrb[0].mxu0
    %v2339 = vadd.f32 0.0, %v2338
    %v2340 = vpop.f32.mrb[0].mxu0
    %v2341 = vadd.f32 0.0, %v2340
    %v2342 = vpop.f32.mrb[0].mxu0
    %v2343 = vadd.f32 0.0, %v2342
    %v2344 = vpop.f32.mrb[0].mxu0
    %v2345 = vadd.f32 0.0, %v2344
    %2346 = vmatprep.mubr.bf16.mxu0 %v1894
    %2347 = vmatmul.mubr.bf16.gmra.mrb[0].mxu0 %v1892
    %v2348 = vpop.f32.mrb[0].mxu0
    %v2349 = vadd.f32 0.0, %v2348
    %v2350 = vpop.f32.mrb[0].mxu0
    %v2351 = vadd.f32 0.0, %v2350
    %v2352 = vpop.f32.mrb[0].mxu0
    %v2353 = vadd.f32 0.0, %v2352
    %v2354 = vpop.f32.mrb[0].mxu0
    %v2355 = vadd.f32 0.0, %v2354
    %2356 = vmatprep.mubr.bf16.mxu0 %v1898
    %2357 = vmatmul.mubr.bf16.gmra.mrb[0].mxu0 %v1896
    %v2358 = vpop.f32.mrb[0].mxu0
    %v2359 = vadd.f32 0.0, %v2358
    %v2360 = vpop.f32.mrb[0].mxu0
    %v2361 = vadd.f32 0.0, %v2360
    %v2362 = vpop.f32.mrb[0].mxu0
    %v2363 = vadd.f32 0.0, %v2362
    %v2364 = vpop.f32.mrb[0].mxu0
    %v2365 = vadd.f32 0.0, %v2364
    %2366 = vmatprep.mubr.bf16.mxu0 %v1902
    %2367 = vmatmul.mubr.bf16.gmra.mrb[0].mxu0 %v1900
    %v2368 = vpop.f32.mrb[0].mxu0
    %v2369 = vadd.f32 0.0, %v2368
    %v2370 = vpop.f32.mrb[0].mxu0
    %v2371 = vadd.f32 0.0, %v2370
    %v2372 = vpop.f32.mrb[0].mxu0
    %v2373 = vadd.f32 0.0, %v2372
    %v2374 = vpop.f32.mrb[0].mxu0
    %v2375 = vadd.f32 0.0, %v2374
    %2376 = vdwg.mxu0
    %v2377 = vld [vmem:[#allocation4] sm:$0xff]
    %v2378 = vld [vmem:[#allocation4 + $0x8] sm:$0xff]
    %v2379 = vld [vmem:[#allocation4 + $0x10] sm:$0xff]
    %v2380 = vld [vmem:[#allocation4 + $0x18] sm:$0xff]
    %v2381 = vld [vmem:[#allocation4 + $0x20] sm:$0xff]
    %v2382 = vld [vmem:[#allocation4 + $0x28] sm:$0xff]
    %v2383 = vld [vmem:[#allocation4 + $0x30] sm:$0xff]
    %v2384 = vld [vmem:[#allocation4 + $0x38] sm:$0xff]
    %v2385 = vld [vmem:[#allocation4 + $0x40] sm:$0xff]
    %v2386 = vld [vmem:[#allocation4 + $0x48] sm:$0xff]
    %v2387 = vld [vmem:[#allocation4 + $0x50] sm:$0xff]
    %v2388 = vld [vmem:[#allocation4 + $0x58] sm:$0xff]
    %v2389 = vld [vmem:[#allocation4 + $0x60] sm:$0xff]
    %v2390 = vld [vmem:[#allocation4 + $0x68] sm:$0xff]
    %v2391 = vld [vmem:[#allocation4 + $0x70] sm:$0xff]
    %v2392 = vld [vmem:[#allocation4 + $0x78] sm:$0xff]
    %v2393 = vld [vmem:[#allocation4 + $0x80] sm:$0xff]
    %v2394 = vld [vmem:[#allocation4 + $0x88] sm:$0xff]
    %v2395 = vld [vmem:[#allocation4 + $0x90] sm:$0xff]
    %v2396 = vld [vmem:[#allocation4 + $0x98] sm:$0xff]
    %v2397 = vld [vmem:[#allocation4 + $0xa0] sm:$0xff]
    %v2398 = vld [vmem:[#allocation4 + $0xa8] sm:$0xff]
    %v2399 = vld [vmem:[#allocation4 + $0xb0] sm:$0xff]
    %v2400 = vld [vmem:[#allocation4 + $0xb8] sm:$0xff]
    %v2401 = vld [vmem:[#allocation4 + $0xc0] sm:$0xff]
    %v2402 = vld [vmem:[#allocation4 + $0xc8] sm:$0xff]
    %v2403 = vld [vmem:[#allocation4 + $0xd0] sm:$0xff]
    %v2404 = vld [vmem:[#allocation4 + $0xd8] sm:$0xff]
    %v2405 = vld [vmem:[#allocation4 + $0xe0] sm:$0xff]
    %v2406 = vld [vmem:[#allocation4 + $0xe8] sm:$0xff]
    %v2407 = vld [vmem:[#allocation4 + $0xf0] sm:$0xff]
    %v2408 = vld [vmem:[#allocation4 + $0xf8] sm:$0xff]
    %v2409 = vadd.f32 %v2377, %v2266
    %v2410 = vadd.f32 %v2378, %v2268
    %v2411 = vadd.f32 %v2379, %v2339
    %v2412 = vadd.f32 %v2380, %v2341
    %v2413 = vadd.f32 %v2381, %v2270
    %v2414 = vadd.f32 %v2382, %v2272
    %v2415 = vadd.f32 %v2383, %v2343
    %v2416 = vadd.f32 %v2384, %v2345
    %v2417 = vadd.f32 %v2385, %v2276
    %v2418 = vadd.f32 %v2386, %v2278
    %v2419 = vadd.f32 %v2387, %v2349
    %v2420 = vadd.f32 %v2388, %v2351
    %v2421 = vadd.f32 %v2389, %v2280
    %v2422 = vadd.f32 %v2390, %v2282
    %v2423 = vadd.f32 %v2391, %v2353
    %v2424 = vadd.f32 %v2392, %v2355
    %v2425 = vadd.f32 %v2393, %v2286
    %v2426 = vadd.f32 %v2394, %v2288
    %v2427 = vadd.f32 %v2395, %v2359
    %v2428 = vadd.f32 %v2396, %v2361
    %v2429 = vadd.f32 %v2397, %v2290
    %v2430 = vadd.f32 %v2398, %v2292
    %v2431 = vadd.f32 %v2399, %v2363
    %v2432 = vadd.f32 %v2400, %v2365
    %v2433 = vadd.f32 %v2401, %v2296
    %v2434 = vadd.f32 %v2402, %v2298
    %v2435 = vadd.f32 %v2403, %v2369
    %v2436 = vadd.f32 %v2404, %v2371
    %v2437 = vadd.f32 %v2405, %v2300
    %v2438 = vadd.f32 %v2406, %v2302
    %v2439 = vadd.f32 %v2407, %v2373
    %v2440 = vadd.f32 %v2408, %v2375
    %2441 = vst [vmem:[#allocation4] sm:$0xff] %v2409
    %2442 = vst [vmem:[#allocation4 + $0x8] sm:$0xff] %v2410
    %2443 = vst [vmem:[#allocation4 + $0x10] sm:$0xff] %v2411
    %2444 = vst [vmem:[#allocation4 + $0x18] sm:$0xff] %v2412
    %2445 = vst [vmem:[#allocation4 + $0x20] sm:$0xff] %v2413
    %2446 = vst [vmem:[#allocation4 + $0x28] sm:$0xff] %v2414
    %2447 = vst [vmem:[#allocation4 + $0x30] sm:$0xff] %v2415
    %2448 = vst [vmem:[#allocation4 + $0x38] sm:$0xff] %v2416
    %2449 = vst [vmem:[#allocation4 + $0x40] sm:$0xff] %v2417
    %2450 = vst [vmem:[#allocation4 + $0x48] sm:$0xff] %v2418
    %2451 = vst [vmem:[#allocation4 + $0x50] sm:$0xff] %v2419
    %2452 = vst [vmem:[#allocation4 + $0x58] sm:$0xff] %v2420
    %2453 = vst [vmem:[#allocation4 + $0x60] sm:$0xff] %v2421
    %2454 = vst [vmem:[#allocation4 + $0x68] sm:$0xff] %v2422
    %2455 = vst [vmem:[#allocation4 + $0x70] sm:$0xff] %v2423
    %2456 = vst [vmem:[#allocation4 + $0x78] sm:$0xff] %v2424
    %2457 = vst [vmem:[#allocation4 + $0x80] sm:$0xff] %v2425
    %2458 = vst [vmem:[#allocation4 + $0x88] sm:$0xff] %v2426
    %2459 = vst [vmem:[#allocation4 + $0x90] sm:$0xff] %v2427
    %2460 = vst [vmem:[#allocation4 + $0x98] sm:$0xff] %v2428
    %2461 = vst [vmem:[#allocation4 + $0xa0] sm:$0xff] %v2429
    %2462 = vst [vmem:[#allocation4 + $0xa8] sm:$0xff] %v2430
    %2463 = vst [vmem:[#allocation4 + $0xb0] sm:$0xff] %v2431
    %2464 = vst [vmem:[#allocation4 + $0xb8] sm:$0xff] %v2432
    %2465 = vst [vmem:[#allocation4 + $0xc0] sm:$0xff] %v2433
    %2466 = vst [vmem:[#allocation4 + $0xc8] sm:$0xff] %v2434
    %2467 = vst [vmem:[#allocation4 + $0xd0] sm:$0xff] %v2435
    %2468 = vst [vmem:[#allocation4 + $0xd8] sm:$0xff] %v2436
    %2469 = vst [vmem:[#allocation4 + $0xe0] sm:$0xff] %v2437
    %2470 = vst [vmem:[#allocation4 + $0xe8] sm:$0xff] %v2438
    %2471 = vst [vmem:[#allocation4 + $0xf0] sm:$0xff] %v2439
    %2472 = vst [vmem:[#allocation4 + $0xf8] sm:$0xff] %v2440
    %v2473 = vld [vmem:[#allocation3 + $0x10] sm:$0xff]
    %v2474 = vld [vmem:[#allocation3 + $0x18] sm:$0xff]
    %v2475 = vld [vmem:[#allocation3 + $0x20] sm:$0xff]
    %v2476 = vld [vmem:[#allocation3 + $0x28] sm:$0xff]
    %v2477 = vld [vmem:[#allocation3 + $0x30] sm:$0xff]
    %v2478 = vld [vmem:[#allocation3 + $0x38] sm:$0xff]
    %v2479 = vld [vmem:[#allocation3 + $0x40] sm:$0xff]
    %v2480 = vld [vmem:[#allocation3 + $0x48] sm:$0xff]
    %s2481 = scalar_lea.vmem [#allocation10], 1024
    %v2482 = vld [vmem:[%s2481] sm:$0xff]
    %v2483 = vld [vmem:[%s2481 + $0x8] sm:$0xff]
    %v2484 = vld [vmem:[%s2481 + $0x10] sm:$0xff]
    %v2485 = vld [vmem:[%s2481 + $0x18] sm:$0xff]
    %v2486 = vld [vmem:[%s2481 + $0x20] sm:$0xff]
    %v2487 = vld [vmem:[%s2481 + $0x28] sm:$0xff]
    %v2488 = vld [vmem:[%s2481 + $0x30] sm:$0xff]
    %v2489 = vld [vmem:[%s2481 + $0x38] sm:$0xff]
    %v2490 = vld [vmem:[%s2481 + $0x40] sm:$0xff]
    %v2491 = vld [vmem:[%s2481 + $0x48] sm:$0xff]
    %v2492 = vld [vmem:[%s2481 + $0x50] sm:$0xff]
    %v2493 = vld [vmem:[%s2481 + $0x58] sm:$0xff]
    %v2494 = vld [vmem:[%s2481 + $0x60] sm:$0xff]
    %v2495 = vld [vmem:[%s2481 + $0x68] sm:$0xff]
    %v2496 = vld [vmem:[%s2481 + $0x70] sm:$0xff]
    %v2497 = vld [vmem:[%s2481 + $0x78] sm:$0xff]
    %v2498 = vld [vmem:[%s2481 + $0x80] sm:$0xff]
    %v2499 = vld [vmem:[%s2481 + $0x88] sm:$0xff]
    %v2500 = vld [vmem:[%s2481 + $0x90] sm:$0xff]
    %v2501 = vld [vmem:[%s2481 + $0x98] sm:$0xff]
    %v2502 = vld [vmem:[%s2481 + $0xa0] sm:$0xff]
    %v2503 = vld [vmem:[%s2481 + $0xa8] sm:$0xff]
    %v2504 = vld [vmem:[%s2481 + $0xb0] sm:$0xff]
    %v2505 = vld [vmem:[%s2481 + $0xb8] sm:$0xff]
    %v2506 = vld [vmem:[%s2481 + $0xc0] sm:$0xff]
    %v2507 = vld [vmem:[%s2481 + $0xc8] sm:$0xff]
    %v2508 = vld [vmem:[%s2481 + $0xd0] sm:$0xff]
    %v2509 = vld [vmem:[%s2481 + $0xd8] sm:$0xff]
    %v2510 = vld [vmem:[%s2481 + $0xe0] sm:$0xff]
    %v2511 = vld [vmem:[%s2481 + $0xe8] sm:$0xff]
    %v2512 = vld [vmem:[%s2481 + $0xf0] sm:$0xff]
    %v2513 = vld [vmem:[%s2481 + $0xf8] sm:$0xff]
    %v2514 = vld [vmem:[%s2481 + $0x100] sm:$0xff]
    %v2515 = vld [vmem:[%s2481 + $0x108] sm:$0xff]
    %v2516 = vld [vmem:[%s2481 + $0x110] sm:$0xff]
    %v2517 = vld [vmem:[%s2481 + $0x118] sm:$0xff]
    %v2518 = vld [vmem:[%s2481 + $0x120] sm:$0xff]
    %v2519 = vld [vmem:[%s2481 + $0x128] sm:$0xff]
    %v2520 = vld [vmem:[%s2481 + $0x130] sm:$0xff]
    %v2521 = vld [vmem:[%s2481 + $0x138] sm:$0xff]
    %v2522 = vld [vmem:[%s2481 + $0x140] sm:$0xff]
    %v2523 = vld [vmem:[%s2481 + $0x148] sm:$0xff]
    %v2524 = vld [vmem:[%s2481 + $0x150] sm:$0xff]
    %v2525 = vld [vmem:[%s2481 + $0x158] sm:$0xff]
    %v2526 = vld [vmem:[%s2481 + $0x160] sm:$0xff]
    %v2527 = vld [vmem:[%s2481 + $0x168] sm:$0xff]
    %v2528 = vld [vmem:[%s2481 + $0x170] sm:$0xff]
    %v2529 = vld [vmem:[%s2481 + $0x178] sm:$0xff]
    %v2530 = vld [vmem:[%s2481 + $0x180] sm:$0xff]
    %v2531 = vld [vmem:[%s2481 + $0x188] sm:$0xff]
    %v2532 = vld [vmem:[%s2481 + $0x190] sm:$0xff]
    %v2533 = vld [vmem:[%s2481 + $0x198] sm:$0xff]
    %v2534 = vld [vmem:[%s2481 + $0x1a0] sm:$0xff]
    %v2535 = vld [vmem:[%s2481 + $0x1a8] sm:$0xff]
    %v2536 = vld [vmem:[%s2481 + $0x1b0] sm:$0xff]
    %v2537 = vld [vmem:[%s2481 + $0x1b8] sm:$0xff]
    %v2538 = vld [vmem:[%s2481 + $0x1c0] sm:$0xff]
    %v2539 = vld [vmem:[%s2481 + $0x1c8] sm:$0xff]
    %v2540 = vld [vmem:[%s2481 + $0x1d0] sm:$0xff]
    %v2541 = vld [vmem:[%s2481 + $0x1d8] sm:$0xff]
    %v2542 = vld [vmem:[%s2481 + $0x1e0] sm:$0xff]
    %v2543 = vld [vmem:[%s2481 + $0x1e8] sm:$0xff]
    %v2544 = vld [vmem:[%s2481 + $0x1f0] sm:$0xff]
    %v2545 = vld [vmem:[%s2481 + $0x1f8] sm:$0xff]
    %v2610 = vunpack.c.l.b16 %v2482
    %v2611 = vunpack.c.h.b16 %v2482
    %v2612 = vunpack.c.l.b16 %v2483
    %v2613 = vunpack.c.h.b16 %v2483
    %v2614 = vunpack.c.l.b16 %v2484
    %v2615 = vunpack.c.h.b16 %v2484
    %v2616 = vunpack.c.l.b16 %v2485
    %v2617 = vunpack.c.h.b16 %v2485
    %v2618 = vunpack.c.l.b16 %v2486
    %v2619 = vunpack.c.h.b16 %v2486
    %v2620 = vunpack.c.l.b16 %v2487
    %v2621 = vunpack.c.h.b16 %v2487
    %v2622 = vunpack.c.l.b16 %v2488
    %v2623 = vunpack.c.h.b16 %v2488
    %v2624 = vunpack.c.l.b16 %v2489
    %v2625 = vunpack.c.h.b16 %v2489
    %v2626 = vunpack.c.l.b16 %v2490
    %v2627 = vunpack.c.h.b16 %v2490
    %v2628 = vunpack.c.l.b16 %v2491
    %v2629 = vunpack.c.h.b16 %v2491
    %v2630 = vunpack.c.l.b16 %v2492
    %v2631 = vunpack.c.h.b16 %v2492
    %v2632 = vunpack.c.l.b16 %v2493
    %v2633 = vunpack.c.h.b16 %v2493
    %v2634 = vunpack.c.l.b16 %v2494
    %v2635 = vunpack.c.h.b16 %v2494
    %v2636 = vunpack.c.l.b16 %v2495
    %v2637 = vunpack.c.h.b16 %v2495
    %v2638 = vunpack.c.l.b16 %v2496
    %v2639 = vunpack.c.h.b16 %v2496
    %v2640 = vunpack.c.l.b16 %v2497
    %v2641 = vunpack.c.h.b16 %v2497
    %v2642 = vunpack.c.l.b16 %v2498
    %v2643 = vunpack.c.h.b16 %v2498
    %v2644 = vunpack.c.l.b16 %v2499
    %v2645 = vunpack.c.h.b16 %v2499
    %v2646 = vunpack.c.l.b16 %v2500
    %v2647 = vunpack.c.h.b16 %v2500
    %v2648 = vunpack.c.l.b16 %v2501
    %v2649 = vunpack.c.h.b16 %v2501
    %v2650 = vunpack.c.l.b16 %v2502
    %v2651 = vunpack.c.h.b16 %v2502
    %v2652 = vunpack.c.l.b16 %v2503
    %v2653 = vunpack.c.h.b16 %v2503
    %v2654 = vunpack.c.l.b16 %v2504
    %v2655 = vunpack.c.h.b16 %v2504
    %v2656 = vunpack.c.l.b16 %v2505
    %v2657 = vunpack.c.h.b16 %v2505
    %v2658 = vunpack.c.l.b16 %v2506
    %v2659 = vunpack.c.h.b16 %v2506
    %v2660 = vunpack.c.l.b16 %v2507
    %v2661 = vunpack.c.h.b16 %v2507
    %v2662 = vunpack.c.l.b16 %v2508
    %v2663 = vunpack.c.h.b16 %v2508
    %v2664 = vunpack.c.l.b16 %v2509
    %v2665 = vunpack.c.h.b16 %v2509
    %v2666 = vunpack.c.l.b16 %v2510
    %v2667 = vunpack.c.h.b16 %v2510
    %v2668 = vunpack.c.l.b16 %v2511
    %v2669 = vunpack.c.h.b16 %v2511
    %v2670 = vunpack.c.l.b16 %v2512
    %v2671 = vunpack.c.h.b16 %v2512
    %v2672 = vunpack.c.l.b16 %v2513
    %v2673 = vunpack.c.h.b16 %v2513
    %v2674 = vunpack.c.l.b16 %v2514
    %v2675 = vunpack.c.h.b16 %v2514
    %v2676 = vunpack.c.l.b16 %v2515
    %v2677 = vunpack.c.h.b16 %v2515
    %v2678 = vunpack.c.l.b16 %v2516
    %v2679 = vunpack.c.h.b16 %v2516
    %v2680 = vunpack.c.l.b16 %v2517
    %v2681 = vunpack.c.h.b16 %v2517
    %v2682 = vunpack.c.l.b16 %v2518
    %v2683 = vunpack.c.h.b16 %v2518
    %v2684 = vunpack.c.l.b16 %v2519
    %v2685 = vunpack.c.h.b16 %v2519
    %v2686 = vunpack.c.l.b16 %v2520
    %v2687 = vunpack.c.h.b16 %v2520
    %v2688 = vunpack.c.l.b16 %v2521
    %v2689 = vunpack.c.h.b16 %v2521
    %v2690 = vunpack.c.l.b16 %v2522
    %v2691 = vunpack.c.h.b16 %v2522
    %v2692 = vunpack.c.l.b16 %v2523
    %v2693 = vunpack.c.h.b16 %v2523
    %v2694 = vunpack.c.l.b16 %v2524
    %v2695 = vunpack.c.h.b16 %v2524
    %v2696 = vunpack.c.l.b16 %v2525
    %v2697 = vunpack.c.h.b16 %v2525
    %v2698 = vunpack.c.l.b16 %v2526
    %v2699 = vunpack.c.h.b16 %v2526
    %v2700 = vunpack.c.l.b16 %v2527
    %v2701 = vunpack.c.h.b16 %v2527
    %v2702 = vunpack.c.l.b16 %v2528
    %v2703 = vunpack.c.h.b16 %v2528
    %v2704 = vunpack.c.l.b16 %v2529
    %v2705 = vunpack.c.h.b16 %v2529
    %v2706 = vunpack.c.l.b16 %v2530
    %v2707 = vunpack.c.h.b16 %v2530
    %v2708 = vunpack.c.l.b16 %v2531
    %v2709 = vunpack.c.h.b16 %v2531
    %v2710 = vunpack.c.l.b16 %v2532
    %v2711 = vunpack.c.h.b16 %v2532
    %v2712 = vunpack.c.l.b16 %v2533
    %v2713 = vunpack.c.h.b16 %v2533
    %v2714 = vunpack.c.l.b16 %v2534
    %v2715 = vunpack.c.h.b16 %v2534
    %v2716 = vunpack.c.l.b16 %v2535
    %v2717 = vunpack.c.h.b16 %v2535
    %v2718 = vunpack.c.l.b16 %v2536
    %v2719 = vunpack.c.h.b16 %v2536
    %v2720 = vunpack.c.l.b16 %v2537
    %v2721 = vunpack.c.h.b16 %v2537
    %v2722 = vunpack.c.l.b16 %v2538
    %v2723 = vunpack.c.h.b16 %v2538
    %v2724 = vunpack.c.l.b16 %v2539
    %v2725 = vunpack.c.h.b16 %v2539
    %v2726 = vunpack.c.l.b16 %v2540
    %v2727 = vunpack.c.h.b16 %v2540
    %v2728 = vunpack.c.l.b16 %v2541
    %v2729 = vunpack.c.h.b16 %v2541
    %v2730 = vunpack.c.l.b16 %v2542
    %v2731 = vunpack.c.h.b16 %v2542
    %v2732 = vunpack.c.l.b16 %v2543
    %v2733 = vunpack.c.h.b16 %v2543
    %v2734 = vunpack.c.l.b16 %v2544
    %v2735 = vunpack.c.h.b16 %v2544
    %v2736 = vunpack.c.l.b16 %v2545
    %v2737 = vunpack.c.h.b16 %v2545
    %v2738 = vpack.c.b16 %v2614, %v2610
    %v2739 = vpack.c.b16 %v2615, %v2611
    %v2740 = vpack.c.b16 %v2616, %v2612
    %v2741 = vpack.c.b16 %v2617, %v2613
    %v2742 = vpack.c.b16 %v2622, %v2618
    %v2743 = vpack.c.b16 %v2623, %v2619
    %v2744 = vpack.c.b16 %v2624, %v2620
    %v2745 = vpack.c.b16 %v2625, %v2621
    %v2746 = vpack.c.b16 %v2630, %v2626
    %v2747 = vpack.c.b16 %v2631, %v2627
    %v2748 = vpack.c.b16 %v2632, %v2628
    %v2749 = vpack.c.b16 %v2633, %v2629
    %v2750 = vpack.c.b16 %v2638, %v2634
    %v2751 = vpack.c.b16 %v2639, %v2635
    %v2752 = vpack.c.b16 %v2640, %v2636
    %v2753 = vpack.c.b16 %v2641, %v2637
    %v2754 = vpack.c.b16 %v2646, %v2642
    %v2755 = vpack.c.b16 %v2647, %v2643
    %v2756 = vpack.c.b16 %v2648, %v2644
    %v2757 = vpack.c.b16 %v2649, %v2645
    %v2758 = vpack.c.b16 %v2654, %v2650
    %v2759 = vpack.c.b16 %v2655, %v2651
    %v2760 = vpack.c.b16 %v2656, %v2652
    %v2761 = vpack.c.b16 %v2657, %v2653
    %v2762 = vpack.c.b16 %v2662, %v2658
    %v2763 = vpack.c.b16 %v2663, %v2659
    %v2764 = vpack.c.b16 %v2664, %v2660
    %v2765 = vpack.c.b16 %v2665, %v2661
    %v2766 = vpack.c.b16 %v2670, %v2666
    %v2767 = vpack.c.b16 %v2671, %v2667
    %v2768 = vpack.c.b16 %v2672, %v2668
    %v2769 = vpack.c.b16 %v2673, %v2669
    %v2770 = vpack.c.b16 %v2678, %v2674
    %v2771 = vpack.c.b16 %v2679, %v2675
    %v2772 = vpack.c.b16 %v2680, %v2676
    %v2773 = vpack.c.b16 %v2681, %v2677
    %v2774 = vpack.c.b16 %v2686, %v2682
    %v2775 = vpack.c.b16 %v2687, %v2683
    %v2776 = vpack.c.b16 %v2688, %v2684
    %v2777 = vpack.c.b16 %v2689, %v2685
    %v2778 = vpack.c.b16 %v2694, %v2690
    %v2779 = vpack.c.b16 %v2695, %v2691
    %v2780 = vpack.c.b16 %v2696, %v2692
    %v2781 = vpack.c.b16 %v2697, %v2693
    %v2782 = vpack.c.b16 %v2702, %v2698
    %v2783 = vpack.c.b16 %v2703, %v2699
    %v2784 = vpack.c.b16 %v2704, %v2700
    %v2785 = vpack.c.b16 %v2705, %v2701
    %v2786 = vpack.c.b16 %v2710, %v2706
    %v2787 = vpack.c.b16 %v2711, %v2707
    %v2788 = vpack.c.b16 %v2712, %v2708
    %v2789 = vpack.c.b16 %v2713, %v2709
    %v2790 = vpack.c.b16 %v2718, %v2714
    %v2791 = vpack.c.b16 %v2719, %v2715
    %v2792 = vpack.c.b16 %v2720, %v2716
    %v2793 = vpack.c.b16 %v2721, %v2717
    %v2794 = vpack.c.b16 %v2726, %v2722
    %v2795 = vpack.c.b16 %v2727, %v2723
    %v2796 = vpack.c.b16 %v2728, %v2724
    %v2797 = vpack.c.b16 %v2729, %v2725
    %v2798 = vpack.c.b16 %v2734, %v2730
    %v2799 = vpack.c.b16 %v2735, %v2731
    %v2800 = vpack.c.b16 %v2736, %v2732
    %v2801 = vpack.c.b16 %v2737, %v2733
    %2866 = vmatprep.subr.bf16.mxu0 %v2739
    %2867 = vmatpush1.bf16.msra.mxu0 %v2738
    %2868 = vmatprep.subr.bf16.mxu0 %v2743
    %2869 = vmatpush1.bf16.msra.mxu0 %v2742
    %2870 = vmatprep.subr.bf16.mxu0 %v2747
    %2871 = vmatpush1.bf16.msra.mxu0 %v2746
    %2872 = vmatprep.subr.bf16.mxu0 %v2751
    %2873 = vmatpush1.bf16.msra.mxu0 %v2750
    %2874 = vmatprep.subr.bf16.mxu0 %v2755
    %2875 = vmatpush1.bf16.msra.mxu0 %v2754
    %2876 = vmatprep.subr.bf16.mxu0 %v2759
    %2877 = vmatpush1.bf16.msra.mxu0 %v2758
    %2878 = vmatprep.subr.bf16.mxu0 %v2763
    %2879 = vmatpush1.bf16.msra.mxu0 %v2762
    %2880 = vmatprep.subr.bf16.mxu0 %v2767
    %2881 = vmatpush1.bf16.msra.mxu0 %v2766
    %2882 = vmatprep.subr.bf16.mxu0 %v2771
    %2883 = vmatpush1.bf16.msra.mxu0 %v2770
    %2884 = vmatprep.subr.bf16.mxu0 %v2775
    %2885 = vmatpush1.bf16.msra.mxu0 %v2774
    %2886 = vmatprep.subr.bf16.mxu0 %v2779
    %2887 = vmatpush1.bf16.msra.mxu0 %v2778
    %2888 = vmatprep.subr.bf16.mxu0 %v2783
    %2889 = vmatpush1.bf16.msra.mxu0 %v2782
    %2890 = vmatprep.subr.bf16.mxu0 %v2787
    %2891 = vmatpush1.bf16.msra.mxu0 %v2786
    %2892 = vmatprep.subr.bf16.mxu0 %v2791
    %2893 = vmatpush1.bf16.msra.mxu0 %v2790
    %2894 = vmatprep.subr.bf16.mxu0 %v2795
    %2895 = vmatpush1.bf16.msra.mxu0 %v2794
    %2896 = vmatprep.subr.bf16.mxu0 %v2799
    %2897 = vmatpush1.bf16.msra.mxu0 %v2798
    %2898 = vmatprep.mubr.bf16.mxu0 %v2474
    %2899 = vmatmul.mubr.bf16.gmra.mrb[0].mxu0 %v2473
    %v2900 = vpop.f32.mrb[0].mxu0
    %v2901 = vadd.f32 0.0, %v2900
    %v2902 = vpop.f32.mrb[0].mxu0
    %v2903 = vadd.f32 0.0, %v2902
    %v2904 = vpop.f32.mrb[0].mxu0
    %v2905 = vadd.f32 0.0, %v2904
    %v2906 = vpop.f32.mrb[0].mxu0
    %v2907 = vadd.f32 0.0, %v2906
    %2908 = vmatprep.mubr.bf16.mxu0 %v2476
    %2909 = vmatmul.mubr.bf16.gmra.mrb[0].mxu0 %v2475
    %v2910 = vpop.f32.mrb[0].mxu0
    %v2911 = vadd.f32 0.0, %v2910
    %v2912 = vpop.f32.mrb[0].mxu0
    %v2913 = vadd.f32 0.0, %v2912
    %v2914 = vpop.f32.mrb[0].mxu0
    %v2915 = vadd.f32 0.0, %v2914
    %v2916 = vpop.f32.mrb[0].mxu0
    %v2917 = vadd.f32 0.0, %v2916
    %2918 = vmatprep.mubr.bf16.mxu0 %v2478
    %2919 = vmatmul.mubr.bf16.gmra.mrb[0].mxu0 %v2477
    %v2920 = vpop.f32.mrb[0].mxu0
    %v2921 = vadd.f32 0.0, %v2920
    %v2922 = vpop.f32.mrb[0].mxu0
    %v2923 = vadd.f32 0.0, %v2922
    %v2924 = vpop.f32.mrb[0].mxu0
    %v2925 = vadd.f32 0.0, %v2924
    %v2926 = vpop.f32.mrb[0].mxu0
    %v2927 = vadd.f32 0.0, %v2926
    %2928 = vmatprep.mubr.bf16.mxu0 %v2480
    %2929 = vmatmul.mubr.bf16.gmra.mrb[0].mxu0 %v2479
    %v2930 = vpop.f32.mrb[0].mxu0
    %v2931 = vadd.f32 0.0, %v2930
    %v2932 = vpop.f32.mrb[0].mxu0
    %v2933 = vadd.f32 0.0, %v2932
    %v2934 = vpop.f32.mrb[0].mxu0
    %v2935 = vadd.f32 0.0, %v2934
    %v2936 = vpop.f32.mrb[0].mxu0
    %v2937 = vadd.f32 0.0, %v2936
    %2938 = vdwg.mxu0
    %2939 = vmatprep.subr.bf16.mxu0 %v2741
    %2940 = vmatpush1.bf16.msra.mxu0 %v2740
    %2941 = vmatprep.subr.bf16.mxu0 %v2745
    %2942 = vmatpush1.bf16.msra.mxu0 %v2744
    %2943 = vmatprep.subr.bf16.mxu0 %v2749
    %2944 = vmatpush1.bf16.msra.mxu0 %v2748
    %2945 = vmatprep.subr.bf16.mxu0 %v2753
    %2946 = vmatpush1.bf16.msra.mxu0 %v2752
    %2947 = vmatprep.subr.bf16.mxu0 %v2757
    %2948 = vmatpush1.bf16.msra.mxu0 %v2756
    %2949 = vmatprep.subr.bf16.mxu0 %v2761
    %2950 = vmatpush1.bf16.msra.mxu0 %v2760
    %2951 = vmatprep.subr.bf16.mxu0 %v2765
    %2952 = vmatpush1.bf16.msra.mxu0 %v2764
    %2953 = vmatprep.subr.bf16.mxu0 %v2769
    %2954 = vmatpush1.bf16.msra.mxu0 %v2768
    %2955 = vmatprep.subr.bf16.mxu0 %v2773
    %2956 = vmatpush1.bf16.msra.mxu0 %v2772
    %2957 = vmatprep.subr.bf16.mxu0 %v2777
    %2958 = vmatpush1.bf16.msra.mxu0 %v2776
    %2959 = vmatprep.subr.bf16.mxu0 %v2781
    %2960 = vmatpush1.bf16.msra.mxu0 %v2780
    %2961 = vmatprep.subr.bf16.mxu0 %v2785
    %2962 = vmatpush1.bf16.msra.mxu0 %v2784
    %2963 = vmatprep.subr.bf16.mxu0 %v2789
    %2964 = vmatpush1.bf16.msra.mxu0 %v2788
    %2965 = vmatprep.subr.bf16.mxu0 %v2793
    %2966 = vmatpush1.bf16.msra.mxu0 %v2792
    %2967 = vmatprep.subr.bf16.mxu0 %v2797
    %2968 = vmatpush1.bf16.msra.mxu0 %v2796
    %2969 = vmatprep.subr.bf16.mxu0 %v2801
    %2970 = vmatpush1.bf16.msra.mxu0 %v2800
    %2971 = vmatprep.mubr.bf16.mxu0 %v2474
    %2972 = vmatmul.mubr.bf16.gmra.mrb[0].mxu0 %v2473
    %v2973 = vpop.f32.mrb[0].mxu0
    %v2974 = vadd.f32 0.0, %v2973
    %v2975 = vpop.f32.mrb[0].mxu0
    %v2976 = vadd.f32 0.0, %v2975
    %v2977 = vpop.f32.mrb[0].mxu0
    %v2978 = vadd.f32 0.0, %v2977
    %v2979 = vpop.f32.mrb[0].mxu0
    %v2980 = vadd.f32 0.0, %v2979
    %2981 = vmatprep.mubr.bf16.mxu0 %v2476
    %2982 = vmatmul.mubr.bf16.gmra.mrb[0].mxu0 %v2475
    %v2983 = vpop.f32.mrb[0].mxu0
    %v2984 = vadd.f32 0.0, %v2983
    %v2985 = vpop.f32.mrb[0].mxu0
    %v2986 = vadd.f32 0.0, %v2985
    %v2987 = vpop.f32.mrb[0].mxu0
    %v2988 = vadd.f32 0.0, %v2987
    %v2989 = vpop.f32.mrb[0].mxu0
    %v2990 = vadd.f32 0.0, %v2989
    %2991 = vmatprep.mubr.bf16.mxu0 %v2478
    %2992 = vmatmul.mubr.bf16.gmra.mrb[0].mxu0 %v2477
    %v2993 = vpop.f32.mrb[0].mxu0
    %v2994 = vadd.f32 0.0, %v2993
    %v2995 = vpop.f32.mrb[0].mxu0
    %v2996 = vadd.f32 0.0, %v2995
    %v2997 = vpop.f32.mrb[0].mxu0
    %v2998 = vadd.f32 0.0, %v2997
    %v2999 = vpop.f32.mrb[0].mxu0
    %v3000 = vadd.f32 0.0, %v2999
    %3001 = vmatprep.mubr.bf16.mxu0 %v2480
    %3002 = vmatmul.mubr.bf16.gmra.mrb[0].mxu0 %v2479
    %v3003 = vpop.f32.mrb[0].mxu0
    %v3004 = vadd.f32 0.0, %v3003
    %v3005 = vpop.f32.mrb[0].mxu0
    %v3006 = vadd.f32 0.0, %v3005
    %v3007 = vpop.f32.mrb[0].mxu0
    %v3008 = vadd.f32 0.0, %v3007
    %v3009 = vpop.f32.mrb[0].mxu0
    %v3010 = vadd.f32 0.0, %v3009
    %3011 = vdwg.mxu0
    %v3012 = vld [vmem:[#allocation4] sm:$0xff]
    %v3013 = vld [vmem:[#allocation4 + $0x8] sm:$0xff]
    %v3014 = vld [vmem:[#allocation4 + $0x10] sm:$0xff]
    %v3015 = vld [vmem:[#allocation4 + $0x18] sm:$0xff]
    %v3016 = vld [vmem:[#allocation4 + $0x20] sm:$0xff]
    %v3017 = vld [vmem:[#allocation4 + $0x28] sm:$0xff]
    %v3018 = vld [vmem:[#allocation4 + $0x30] sm:$0xff]
    %v3019 = vld [vmem:[#allocation4 + $0x38] sm:$0xff]
    %v3020 = vld [vmem:[#allocation4 + $0x40] sm:$0xff]
    %v3021 = vld [vmem:[#allocation4 + $0x48] sm:$0xff]
    %v3022 = vld [vmem:[#allocation4 + $0x50] sm:$0xff]
    %v3023 = vld [vmem:[#allocation4 + $0x58] sm:$0xff]
    %v3024 = vld [vmem:[#allocation4 + $0x60] sm:$0xff]
    %v3025 = vld [vmem:[#allocation4 + $0x68] sm:$0xff]
    %v3026 = vld [vmem:[#allocation4 + $0x70] sm:$0xff]
    %v3027 = vld [vmem:[#allocation4 + $0x78] sm:$0xff]
    %v3028 = vld [vmem:[#allocation4 + $0x80] sm:$0xff]
    %v3029 = vld [vmem:[#allocation4 + $0x88] sm:$0xff]
    %v3030 = vld [vmem:[#allocation4 + $0x90] sm:$0xff]
    %v3031 = vld [vmem:[#allocation4 + $0x98] sm:$0xff]
    %v3032 = vld [vmem:[#allocation4 + $0xa0] sm:$0xff]
    %v3033 = vld [vmem:[#allocation4 + $0xa8] sm:$0xff]
    %v3034 = vld [vmem:[#allocation4 + $0xb0] sm:$0xff]
    %v3035 = vld [vmem:[#allocation4 + $0xb8] sm:$0xff]
    %v3036 = vld [vmem:[#allocation4 + $0xc0] sm:$0xff]
    %v3037 = vld [vmem:[#allocation4 + $0xc8] sm:$0xff]
    %v3038 = vld [vmem:[#allocation4 + $0xd0] sm:$0xff]
    %v3039 = vld [vmem:[#allocation4 + $0xd8] sm:$0xff]
    %v3040 = vld [vmem:[#allocation4 + $0xe0] sm:$0xff]
    %v3041 = vld [vmem:[#allocation4 + $0xe8] sm:$0xff]
    %v3042 = vld [vmem:[#allocation4 + $0xf0] sm:$0xff]
    %v3043 = vld [vmem:[#allocation4 + $0xf8] sm:$0xff]
    %v3044 = vadd.f32 %v3012, %v2901
    %v3045 = vadd.f32 %v3013, %v2903
    %v3046 = vadd.f32 %v3014, %v2974
    %v3047 = vadd.f32 %v3015, %v2976
    %v3048 = vadd.f32 %v3016, %v2905
    %v3049 = vadd.f32 %v3017, %v2907
    %v3050 = vadd.f32 %v3018, %v2978
    %v3051 = vadd.f32 %v3019, %v2980
    %v3052 = vadd.f32 %v3020, %v2911
    %v3053 = vadd.f32 %v3021, %v2913
    %v3054 = vadd.f32 %v3022, %v2984
    %v3055 = vadd.f32 %v3023, %v2986
    %v3056 = vadd.f32 %v3024, %v2915
    %v3057 = vadd.f32 %v3025, %v2917
    %v3058 = vadd.f32 %v3026, %v2988
    %v3059 = vadd.f32 %v3027, %v2990
    %v3060 = vadd.f32 %v3028, %v2921
    %v3061 = vadd.f32 %v3029, %v2923
    %v3062 = vadd.f32 %v3030, %v2994
    %v3063 = vadd.f32 %v3031, %v2996
    %v3064 = vadd.f32 %v3032, %v2925
    %v3065 = vadd.f32 %v3033, %v2927
    %v3066 = vadd.f32 %v3034, %v2998
    %v3067 = vadd.f32 %v3035, %v3000
    %v3068 = vadd.f32 %v3036, %v2931
    %v3069 = vadd.f32 %v3037, %v2933
    %v3070 = vadd.f32 %v3038, %v3004
    %v3071 = vadd.f32 %v3039, %v3006
    %v3072 = vadd.f32 %v3040, %v2935
    %v3073 = vadd.f32 %v3041, %v2937
    %v3074 = vadd.f32 %v3042, %v3008
    %v3075 = vadd.f32 %v3043, %v3010
    %3076 = vst [vmem:[#allocation4] sm:$0xff] %v3044
    %3077 = vst [vmem:[#allocation4 + $0x8] sm:$0xff] %v3045
    %3078 = vst [vmem:[#allocation4 + $0x10] sm:$0xff] %v3046
    %3079 = vst [vmem:[#allocation4 + $0x18] sm:$0xff] %v3047
    %3080 = vst [vmem:[#allocation4 + $0x20] sm:$0xff] %v3048
    %3081 = vst [vmem:[#allocation4 + $0x28] sm:$0xff] %v3049
    %3082 = vst [vmem:[#allocation4 + $0x30] sm:$0xff] %v3050
    %3083 = vst [vmem:[#allocation4 + $0x38] sm:$0xff] %v3051
    %3084 = vst [vmem:[#allocation4 + $0x40] sm:$0xff] %v3052
    %3085 = vst [vmem:[#allocation4 + $0x48] sm:$0xff] %v3053
    %3086 = vst [vmem:[#allocation4 + $0x50] sm:$0xff] %v3054
    %3087 = vst [vmem:[#allocation4 + $0x58] sm:$0xff] %v3055
    %3088 = vst [vmem:[#allocation4 + $0x60] sm:$0xff] %v3056
    %3089 = vst [vmem:[#allocation4 + $0x68] sm:$0xff] %v3057
    %3090 = vst [vmem:[#allocation4 + $0x70] sm:$0xff] %v3058
    %3091 = vst [vmem:[#allocation4 + $0x78] sm:$0xff] %v3059
    %3092 = vst [vmem:[#allocation4 + $0x80] sm:$0xff] %v3060
    %3093 = vst [vmem:[#allocation4 + $0x88] sm:$0xff] %v3061
    %3094 = vst [vmem:[#allocation4 + $0x90] sm:$0xff] %v3062
    %3095 = vst [vmem:[#allocation4 + $0x98] sm:$0xff] %v3063
    %3096 = vst [vmem:[#allocation4 + $0xa0] sm:$0xff] %v3064
    %3097 = vst [vmem:[#allocation4 + $0xa8] sm:$0xff] %v3065
    %3098 = vst [vmem:[#allocation4 + $0xb0] sm:$0xff] %v3066
    %3099 = vst [vmem:[#allocation4 + $0xb8] sm:$0xff] %v3067
    %3100 = vst [vmem:[#allocation4 + $0xc0] sm:$0xff] %v3068
    %3101 = vst [vmem:[#allocation4 + $0xc8] sm:$0xff] %v3069
    %3102 = vst [vmem:[#allocation4 + $0xd0] sm:$0xff] %v3070
    %3103 = vst [vmem:[#allocation4 + $0xd8] sm:$0xff] %v3071
    %3104 = vst [vmem:[#allocation4 + $0xe0] sm:$0xff] %v3072
    %3105 = vst [vmem:[#allocation4 + $0xe8] sm:$0xff] %v3073
    %3106 = vst [vmem:[#allocation4 + $0xf0] sm:$0xff] %v3074
    %3107 = vst [vmem:[#allocation4 + $0xf8] sm:$0xff] %v3075
    %v3108 = vld [vmem:[#allocation3 + $0x10] sm:$0xf0]
    %v3109 = vld [vmem:[#allocation3 + $0x18] sm:$0xf0]
    %v3110 = vld [vmem:[#allocation3 + $0x20] sm:$0xff]
    %v3111 = vld [vmem:[#allocation3 + $0x28] sm:$0xff]
    %v3112 = vld [vmem:[#allocation3 + $0x30] sm:$0xff]
    %v3113 = vld [vmem:[#allocation3 + $0x38] sm:$0xff]
    %v3114 = vld [vmem:[#allocation3 + $0x40] sm:$0xff]
    %v3115 = vld [vmem:[#allocation3 + $0x48] sm:$0xff]
    %v3116 = vld [vmem:[#allocation3 + $0x50] sm:$0xf]
    %v3117 = vld [vmem:[#allocation3 + $0x58] sm:$0xf]
    %s3118 = scalar_lea.vmem [#allocation10], 1536
    %v3119 = vld [vmem:[%s3118] sm:$0xff]
    %v3120 = vld [vmem:[%s3118 + $0x8] sm:$0xff]
    %v3121 = vld [vmem:[%s3118 + $0x10] sm:$0xff]
    %v3122 = vld [vmem:[%s3118 + $0x18] sm:$0xff]
    %v3123 = vld [vmem:[%s3118 + $0x20] sm:$0xff]
    %v3124 = vld [vmem:[%s3118 + $0x28] sm:$0xff]
    %v3125 = vld [vmem:[%s3118 + $0x30] sm:$0xff]
    %v3126 = vld [vmem:[%s3118 + $0x38] sm:$0xff]
    %v3127 = vld [vmem:[%s3118 + $0x40] sm:$0xff]
    %v3128 = vld [vmem:[%s3118 + $0x48] sm:$0xff]
    %v3129 = vld [vmem:[%s3118 + $0x50] sm:$0xff]
    %v3130 = vld [vmem:[%s3118 + $0x58] sm:$0xff]
    %v3131 = vld [vmem:[%s3118 + $0x60] sm:$0xff]
    %v3132 = vld [vmem:[%s3118 + $0x68] sm:$0xff]
    %v3133 = vld [vmem:[%s3118 + $0x70] sm:$0xff]
    %v3134 = vld [vmem:[%s3118 + $0x78] sm:$0xff]
    %v3135 = vld [vmem:[%s3118 + $0x80] sm:$0xff]
    %v3136 = vld [vmem:[%s3118 + $0x88] sm:$0xff]
    %v3137 = vld [vmem:[%s3118 + $0x90] sm:$0xff]
    %v3138 = vld [vmem:[%s3118 + $0x98] sm:$0xff]
    %v3139 = vld [vmem:[%s3118 + $0xa0] sm:$0xff]
    %v3140 = vld [vmem:[%s3118 + $0xa8] sm:$0xff]
    %v3141 = vld [vmem:[%s3118 + $0xb0] sm:$0xff]
    %v3142 = vld [vmem:[%s3118 + $0xb8] sm:$0xff]
    %v3143 = vld [vmem:[%s3118 + $0xc0] sm:$0xff]
    %v3144 = vld [vmem:[%s3118 + $0xc8] sm:$0xff]
    %v3145 = vld [vmem:[%s3118 + $0xd0] sm:$0xff]
    %v3146 = vld [vmem:[%s3118 + $0xd8] sm:$0xff]
    %v3147 = vld [vmem:[%s3118 + $0xe0] sm:$0xff]
    %v3148 = vld [vmem:[%s3118 + $0xe8] sm:$0xff]
    %v3149 = vld [vmem:[%s3118 + $0xf0] sm:$0xff]
    %v3150 = vld [vmem:[%s3118 + $0xf8] sm:$0xff]
    %v3151 = vld [vmem:[%s3118 + $0x100] sm:$0xff]
    %v3152 = vld [vmem:[%s3118 + $0x108] sm:$0xff]
    %v3153 = vld [vmem:[%s3118 + $0x110] sm:$0xff]
    %v3154 = vld [vmem:[%s3118 + $0x118] sm:$0xff]
    %v3155 = vld [vmem:[%s3118 + $0x120] sm:$0xff]
    %v3156 = vld [vmem:[%s3118 + $0x128] sm:$0xff]
    %v3157 = vld [vmem:[%s3118 + $0x130] sm:$0xff]
    %v3158 = vld [vmem:[%s3118 + $0x138] sm:$0xff]
    %v3159 = vld [vmem:[%s3118 + $0x140] sm:$0xff]
    %v3160 = vld [vmem:[%s3118 + $0x148] sm:$0xff]
    %v3161 = vld [vmem:[%s3118 + $0x150] sm:$0xff]
    %v3162 = vld [vmem:[%s3118 + $0x158] sm:$0xff]
    %v3163 = vld [vmem:[%s3118 + $0x160] sm:$0xff]
    %v3164 = vld [vmem:[%s3118 + $0x168] sm:$0xff]
    %v3165 = vld [vmem:[%s3118 + $0x170] sm:$0xff]
    %v3166 = vld [vmem:[%s3118 + $0x178] sm:$0xff]
    %v3167 = vld [vmem:[%s3118 + $0x180] sm:$0xff]
    %v3168 = vld [vmem:[%s3118 + $0x188] sm:$0xff]
    %v3169 = vld [vmem:[%s3118 + $0x190] sm:$0xff]
    %v3170 = vld [vmem:[%s3118 + $0x198] sm:$0xff]
    %v3171 = vld [vmem:[%s3118 + $0x1a0] sm:$0xff]
    %v3172 = vld [vmem:[%s3118 + $0x1a8] sm:$0xff]
    %v3173 = vld [vmem:[%s3118 + $0x1b0] sm:$0xff]
    %v3174 = vld [vmem:[%s3118 + $0x1b8] sm:$0xff]
    %v3175 = vld [vmem:[%s3118 + $0x1c0] sm:$0xff]
    %v3176 = vld [vmem:[%s3118 + $0x1c8] sm:$0xff]
    %v3177 = vld [vmem:[%s3118 + $0x1d0] sm:$0xff]
    %v3178 = vld [vmem:[%s3118 + $0x1d8] sm:$0xff]
    %v3179 = vld [vmem:[%s3118 + $0x1e0] sm:$0xff]
    %v3180 = vld [vmem:[%s3118 + $0x1e8] sm:$0xff]
    %v3181 = vld [vmem:[%s3118 + $0x1f0] sm:$0xff]
    %v3182 = vld [vmem:[%s3118 + $0x1f8] sm:$0xff]
    %v3193 = vrot.slane %v3108, 4
    %v3194 = vrot.slane %v3110, 4
    %v3195 = vsel %vm1884, %v3193, %v3194
    %v3196 = vrot.slane %v3109, 4
    %v3197 = vrot.slane %v3111, 4
    %v3198 = vsel %vm1884, %v3196, %v3197
    %v3199 = vrot.slane %v3112, 4
    %v3200 = vsel %vm1884, %v3194, %v3199
    %v3201 = vrot.slane %v3113, 4
    %v3202 = vsel %vm1884, %v3197, %v3201
    %v3203 = vrot.slane %v3114, 4
    %v3204 = vsel %vm1884, %v3199, %v3203
    %v3205 = vrot.slane %v3115, 4
    %v3206 = vsel %vm1884, %v3201, %v3205
    %v3207 = vrot.slane %v3116, 4
    %v3208 = vsel %vm1884, %v3203, %v3207
    %v3209 = vrot.slane %v3117, 4
    %v3210 = vsel %vm1884, %v3205, %v3209
    %v3283 = vunpack.c.l.b16 %v3119
    %v3284 = vunpack.c.h.b16 %v3119
    %v3285 = vunpack.c.l.b16 %v3120
    %v3286 = vunpack.c.h.b16 %v3120
    %v3287 = vunpack.c.l.b16 %v3121
    %v3288 = vunpack.c.h.b16 %v3121
    %v3289 = vunpack.c.l.b16 %v3122
    %v3290 = vunpack.c.h.b16 %v3122
    %v3291 = vunpack.c.l.b16 %v3123
    %v3292 = vunpack.c.h.b16 %v3123
    %v3293 = vunpack.c.l.b16 %v3124
    %v3294 = vunpack.c.h.b16 %v3124
    %v3295 = vunpack.c.l.b16 %v3125
    %v3296 = vunpack.c.h.b16 %v3125
    %v3297 = vunpack.c.l.b16 %v3126
    %v3298 = vunpack.c.h.b16 %v3126
    %v3299 = vunpack.c.l.b16 %v3127
    %v3300 = vunpack.c.h.b16 %v3127
    %v3301 = vunpack.c.l.b16 %v3128
    %v3302 = vunpack.c.h.b16 %v3128
    %v3303 = vunpack.c.l.b16 %v3129
    %v3304 = vunpack.c.h.b16 %v3129
    %v3305 = vunpack.c.l.b16 %v3130
    %v3306 = vunpack.c.h.b16 %v3130
    %v3307 = vunpack.c.l.b16 %v3131
    %v3308 = vunpack.c.h.b16 %v3131
    %v3309 = vunpack.c.l.b16 %v3132
    %v3310 = vunpack.c.h.b16 %v3132
    %v3311 = vunpack.c.l.b16 %v3133
    %v3312 = vunpack.c.h.b16 %v3133
    %v3313 = vunpack.c.l.b16 %v3134
    %v3314 = vunpack.c.h.b16 %v3134
    %v3315 = vunpack.c.l.b16 %v3135
    %v3316 = vunpack.c.h.b16 %v3135
    %v3317 = vunpack.c.l.b16 %v3136
    %v3318 = vunpack.c.h.b16 %v3136
    %v3319 = vunpack.c.l.b16 %v3137
    %v3320 = vunpack.c.h.b16 %v3137
    %v3321 = vunpack.c.l.b16 %v3138
    %v3322 = vunpack.c.h.b16 %v3138
    %v3323 = vunpack.c.l.b16 %v3139
    %v3324 = vunpack.c.h.b16 %v3139
    %v3325 = vunpack.c.l.b16 %v3140
    %v3326 = vunpack.c.h.b16 %v3140
    %v3327 = vunpack.c.l.b16 %v3141
    %v3328 = vunpack.c.h.b16 %v3141
    %v3329 = vunpack.c.l.b16 %v3142
    %v3330 = vunpack.c.h.b16 %v3142
    %v3331 = vunpack.c.l.b16 %v3143
    %v3332 = vunpack.c.h.b16 %v3143
    %v3333 = vunpack.c.l.b16 %v3144
    %v3334 = vunpack.c.h.b16 %v3144
    %v3335 = vunpack.c.l.b16 %v3145
    %v3336 = vunpack.c.h.b16 %v3145
    %v3337 = vunpack.c.l.b16 %v3146
    %v3338 = vunpack.c.h.b16 %v3146
    %v3339 = vunpack.c.l.b16 %v3147
    %v3340 = vunpack.c.h.b16 %v3147
    %v3341 = vunpack.c.l.b16 %v3148
    %v3342 = vunpack.c.h.b16 %v3148
    %v3343 = vunpack.c.l.b16 %v3149
    %v3344 = vunpack.c.h.b16 %v3149
    %v3345 = vunpack.c.l.b16 %v3150
    %v3346 = vunpack.c.h.b16 %v3150
    %v3347 = vunpack.c.l.b16 %v3151
    %v3348 = vunpack.c.h.b16 %v3151
    %v3349 = vunpack.c.l.b16 %v3152
    %v3350 = vunpack.c.h.b16 %v3152
    %v3351 = vunpack.c.l.b16 %v3153
    %v3352 = vunpack.c.h.b16 %v3153
    %v3353 = vunpack.c.l.b16 %v3154
    %v3354 = vunpack.c.h.b16 %v3154
    %v3355 = vunpack.c.l.b16 %v3155
    %v3356 = vunpack.c.h.b16 %v3155
    %v3357 = vunpack.c.l.b16 %v3156
    %v3358 = vunpack.c.h.b16 %v3156
    %v3359 = vunpack.c.l.b16 %v3157
    %v3360 = vunpack.c.h.b16 %v3157
    %v3361 = vunpack.c.l.b16 %v3158
    %v3362 = vunpack.c.h.b16 %v3158
    %v3363 = vunpack.c.l.b16 %v3159
    %v3364 = vunpack.c.h.b16 %v3159
    %v3365 = vunpack.c.l.b16 %v3160
    %v3366 = vunpack.c.h.b16 %v3160
    %v3367 = vunpack.c.l.b16 %v3161
    %v3368 = vunpack.c.h.b16 %v3161
    %v3369 = vunpack.c.l.b16 %v3162
    %v3370 = vunpack.c.h.b16 %v3162
    %v3371 = vunpack.c.l.b16 %v3163
    %v3372 = vunpack.c.h.b16 %v3163
    %v3373 = vunpack.c.l.b16 %v3164
    %v3374 = vunpack.c.h.b16 %v3164
    %v3375 = vunpack.c.l.b16 %v3165
    %v3376 = vunpack.c.h.b16 %v3165
    %v3377 = vunpack.c.l.b16 %v3166
    %v3378 = vunpack.c.h.b16 %v3166
    %v3379 = vunpack.c.l.b16 %v3167
    %v3380 = vunpack.c.h.b16 %v3167
    %v3381 = vunpack.c.l.b16 %v3168
    %v3382 = vunpack.c.h.b16 %v3168
    %v3383 = vunpack.c.l.b16 %v3169
    %v3384 = vunpack.c.h.b16 %v3169
    %v3385 = vunpack.c.l.b16 %v3170
    %v3386 = vunpack.c.h.b16 %v3170
    %v3387 = vunpack.c.l.b16 %v3171
    %v3388 = vunpack.c.h.b16 %v3171
    %v3389 = vunpack.c.l.b16 %v3172
    %v3390 = vunpack.c.h.b16 %v3172
    %v3391 = vunpack.c.l.b16 %v3173
    %v3392 = vunpack.c.h.b16 %v3173
    %v3393 = vunpack.c.l.b16 %v3174
    %v3394 = vunpack.c.h.b16 %v3174
    %v3395 = vunpack.c.l.b16 %v3175
    %v3396 = vunpack.c.h.b16 %v3175
    %v3397 = vunpack.c.l.b16 %v3176
    %v3398 = vunpack.c.h.b16 %v3176
    %v3399 = vunpack.c.l.b16 %v3177
    %v3400 = vunpack.c.h.b16 %v3177
    %v3401 = vunpack.c.l.b16 %v3178
    %v3402 = vunpack.c.h.b16 %v3178
    %v3403 = vunpack.c.l.b16 %v3179
    %v3404 = vunpack.c.h.b16 %v3179
    %v3405 = vunpack.c.l.b16 %v3180
    %v3406 = vunpack.c.h.b16 %v3180
    %v3407 = vunpack.c.l.b16 %v3181
    %v3408 = vunpack.c.h.b16 %v3181
    %v3409 = vunpack.c.l.b16 %v3182
    %v3410 = vunpack.c.h.b16 %v3182
    %v3411 = vpack.c.b16 %v3287, %v3283
    %v3412 = vpack.c.b16 %v3288, %v3284
    %v3413 = vpack.c.b16 %v3289, %v3285
    %v3414 = vpack.c.b16 %v3290, %v3286
    %v3415 = vpack.c.b16 %v3295, %v3291
    %v3416 = vpack.c.b16 %v3296, %v3292
    %v3417 = vpack.c.b16 %v3297, %v3293
    %v3418 = vpack.c.b16 %v3298, %v3294
    %v3419 = vpack.c.b16 %v3303, %v3299
    %v3420 = vpack.c.b16 %v3304, %v3300
    %v3421 = vpack.c.b16 %v3305, %v3301
    %v3422 = vpack.c.b16 %v3306, %v3302
    %v3423 = vpack.c.b16 %v3311, %v3307
    %v3424 = vpack.c.b16 %v3312, %v3308
    %v3425 = vpack.c.b16 %v3313, %v3309
    %v3426 = vpack.c.b16 %v3314, %v3310
    %v3427 = vpack.c.b16 %v3319, %v3315
    %v3428 = vpack.c.b16 %v3320, %v3316
    %v3429 = vpack.c.b16 %v3321, %v3317
    %v3430 = vpack.c.b16 %v3322, %v3318
    %v3431 = vpack.c.b16 %v3327, %v3323
    %v3432 = vpack.c.b16 %v3328, %v3324
    %v3433 = vpack.c.b16 %v3329, %v3325
    %v3434 = vpack.c.b16 %v3330, %v3326
    %v3435 = vpack.c.b16 %v3335, %v3331
    %v3436 = vpack.c.b16 %v3336, %v3332
    %v3437 = vpack.c.b16 %v3337, %v3333
    %v3438 = vpack.c.b16 %v3338, %v3334
    %v3439 = vpack.c.b16 %v3343, %v3339
    %v3440 = vpack.c.b16 %v3344, %v3340
    %v3441 = vpack.c.b16 %v3345, %v3341
    %v3442 = vpack.c.b16 %v3346, %v3342
    %v3443 = vpack.c.b16 %v3351, %v3347
    %v3444 = vpack.c.b16 %v3352, %v3348
    %v3445 = vpack.c.b16 %v3353, %v3349
    %v3446 = vpack.c.b16 %v3354, %v3350
    %v3447 = vpack.c.b16 %v3359, %v3355
    %v3448 = vpack.c.b16 %v3360, %v3356
    %v3449 = vpack.c.b16 %v3361, %v3357
    %v3450 = vpack.c.b16 %v3362, %v3358
    %v3451 = vpack.c.b16 %v3367, %v3363
    %v3452 = vpack.c.b16 %v3368, %v3364
    %v3453 = vpack.c.b16 %v3369, %v3365
    %v3454 = vpack.c.b16 %v3370, %v3366
    %v3455 = vpack.c.b16 %v3375, %v3371
    %v3456 = vpack.c.b16 %v3376, %v3372
    %v3457 = vpack.c.b16 %v3377, %v3373
    %v3458 = vpack.c.b16 %v3378, %v3374
    %v3459 = vpack.c.b16 %v3383, %v3379
    %v3460 = vpack.c.b16 %v3384, %v3380
    %v3461 = vpack.c.b16 %v3385, %v3381
    %v3462 = vpack.c.b16 %v3386, %v3382
    %v3463 = vpack.c.b16 %v3391, %v3387
    %v3464 = vpack.c.b16 %v3392, %v3388
    %v3465 = vpack.c.b16 %v3393, %v3389
    %v3466 = vpack.c.b16 %v3394, %v3390
    %v3467 = vpack.c.b16 %v3399, %v3395
    %v3468 = vpack.c.b16 %v3400, %v3396
    %v3469 = vpack.c.b16 %v3401, %v3397
    %v3470 = vpack.c.b16 %v3402, %v3398
    %v3471 = vpack.c.b16 %v3407, %v3403
    %v3472 = vpack.c.b16 %v3408, %v3404
    %v3473 = vpack.c.b16 %v3409, %v3405
    %v3474 = vpack.c.b16 %v3410, %v3406
    %3539 = vmatprep.subr.bf16.mxu0 %v3412
    %3540 = vmatpush1.bf16.msra.mxu0 %v3411
    %3541 = vmatprep.subr.bf16.mxu0 %v3416
    %3542 = vmatpush1.bf16.msra.mxu0 %v3415
    %3543 = vmatprep.subr.bf16.mxu0 %v3420
    %3544 = vmatpush1.bf16.msra.mxu0 %v3419
    %3545 = vmatprep.subr.bf16.mxu0 %v3424
    %3546 = vmatpush1.bf16.msra.mxu0 %v3423
    %3547 = vmatprep.subr.bf16.mxu0 %v3428
    %3548 = vmatpush1.bf16.msra.mxu0 %v3427
    %3549 = vmatprep.subr.bf16.mxu0 %v3432
    %3550 = vmatpush1.bf16.msra.mxu0 %v3431
    %3551 = vmatprep.subr.bf16.mxu0 %v3436
    %3552 = vmatpush1.bf16.msra.mxu0 %v3435
    %3553 = vmatprep.subr.bf16.mxu0 %v3440
    %3554 = vmatpush1.bf16.msra.mxu0 %v3439
    %3555 = vmatprep.subr.bf16.mxu0 %v3444
    %3556 = vmatpush1.bf16.msra.mxu0 %v3443
    %3557 = vmatprep.subr.bf16.mxu0 %v3448
    %3558 = vmatpush1.bf16.msra.mxu0 %v3447
    %3559 = vmatprep.subr.bf16.mxu0 %v3452
    %3560 = vmatpush1.bf16.msra.mxu0 %v3451
    %3561 = vmatprep.subr.bf16.mxu0 %v3456
    %3562 = vmatpush1.bf16.msra.mxu0 %v3455
    %3563 = vmatprep.subr.bf16.mxu0 %v3460
    %3564 = vmatpush1.bf16.msra.mxu0 %v3459
    %3565 = vmatprep.subr.bf16.mxu0 %v3464
    %3566 = vmatpush1.bf16.msra.mxu0 %v3463
    %3567 = vmatprep.subr.bf16.mxu0 %v3468
    %3568 = vmatpush1.bf16.msra.mxu0 %v3467
    %3569 = vmatprep.subr.bf16.mxu0 %v3472
    %3570 = vmatpush1.bf16.msra.mxu0 %v3471
    %3571 = vmatprep.mubr.bf16.mxu0 %v3198
    %3572 = vmatmul.mubr.bf16.gmra.mrb[0].mxu0 %v3195
    %v3573 = vpop.f32.mrb[0].mxu0
    %v3574 = vadd.f32 0.0, %v3573
    %v3575 = vpop.f32.mrb[0].mxu0
    %v3576 = vadd.f32 0.0, %v3575
    %v3577 = vpop.f32.mrb[0].mxu0
    %v3578 = vadd.f32 0.0, %v3577
    %v3579 = vpop.f32.mrb[0].mxu0
    %v3580 = vadd.f32 0.0, %v3579
    %3581 = vmatprep.mubr.bf16.mxu0 %v3202
    %3582 = vmatmul.mubr.bf16.gmra.mrb[0].mxu0 %v3200
    %v3583 = vpop.f32.mrb[0].mxu0
    %v3584 = vadd.f32 0.0, %v3583
    %v3585 = vpop.f32.mrb[0].mxu0
    %v3586 = vadd.f32 0.0, %v3585
    %v3587 = vpop.f32.mrb[0].mxu0
    %v3588 = vadd.f32 0.0, %v3587
    %v3589 = vpop.f32.mrb[0].mxu0
    %v3590 = vadd.f32 0.0, %v3589
    %3591 = vmatprep.mubr.bf16.mxu0 %v3206
    %3592 = vmatmul.mubr.bf16.gmra.mrb[0].mxu0 %v3204
    %v3593 = vpop.f32.mrb[0].mxu0
    %v3594 = vadd.f32 0.0, %v3593
    %v3595 = vpop.f32.mrb[0].mxu0
    %v3596 = vadd.f32 0.0, %v3595
    %v3597 = vpop.f32.mrb[0].mxu0
    %v3598 = vadd.f32 0.0, %v3597
    %v3599 = vpop.f32.mrb[0].mxu0
    %v3600 = vadd.f32 0.0, %v3599
    %3601 = vmatprep.mubr.bf16.mxu0 %v3210
    %3602 = vmatmul.mubr.bf16.gmra.mrb[0].mxu0 %v3208
    %v3603 = vpop.f32.mrb[0].mxu0
    %v3604 = vadd.f32 0.0, %v3603
    %v3605 = vpop.f32.mrb[0].mxu0
    %v3606 = vadd.f32 0.0, %v3605
    %v3607 = vpop.f32.mrb[0].mxu0
    %v3608 = vadd.f32 0.0, %v3607
    %v3609 = vpop.f32.mrb[0].mxu0
    %v3610 = vadd.f32 0.0, %v3609
    %3611 = vdwg.mxu0
    %3612 = vmatprep.subr.bf16.mxu0 %v3414
    %3613 = vmatpush1.bf16.msra.mxu0 %v3413
    %3614 = vmatprep.subr.bf16.mxu0 %v3418
    %3615 = vmatpush1.bf16.msra.mxu0 %v3417
    %3616 = vmatprep.subr.bf16.mxu0 %v3422
    %3617 = vmatpush1.bf16.msra.mxu0 %v3421
    %3618 = vmatprep.subr.bf16.mxu0 %v3426
    %3619 = vmatpush1.bf16.msra.mxu0 %v3425
    %3620 = vmatprep.subr.bf16.mxu0 %v3430
    %3621 = vmatpush1.bf16.msra.mxu0 %v3429
    %3622 = vmatprep.subr.bf16.mxu0 %v3434
    %3623 = vmatpush1.bf16.msra.mxu0 %v3433
    %3624 = vmatprep.subr.bf16.mxu0 %v3438
    %3625 = vmatpush1.bf16.msra.mxu0 %v3437
    %3626 = vmatprep.subr.bf16.mxu0 %v3442
    %3627 = vmatpush1.bf16.msra.mxu0 %v3441
    %3628 = vmatprep.subr.bf16.mxu0 %v3446
    %3629 = vmatpush1.bf16.msra.mxu0 %v3445
    %3630 = vmatprep.subr.bf16.mxu0 %v3450
    %3631 = vmatpush1.bf16.msra.mxu0 %v3449
    %3632 = vmatprep.subr.bf16.mxu0 %v3454
    %3633 = vmatpush1.bf16.msra.mxu0 %v3453
    %3634 = vmatprep.subr.bf16.mxu0 %v3458
    %3635 = vmatpush1.bf16.msra.mxu0 %v3457
    %3636 = vmatprep.subr.bf16.mxu0 %v3462
    %3637 = vmatpush1.bf16.msra.mxu0 %v3461
    %3638 = vmatprep.subr.bf16.mxu0 %v3466
    %3639 = vmatpush1.bf16.msra.mxu0 %v3465
    %3640 = vmatprep.subr.bf16.mxu0 %v3470
    %3641 = vmatpush1.bf16.msra.mxu0 %v3469
    %3642 = vmatprep.subr.bf16.mxu0 %v3474
    %3643 = vmatpush1.bf16.msra.mxu0 %v3473
    %3644 = vmatprep.mubr.bf16.mxu0 %v3198
    %3645 = vmatmul.mubr.bf16.gmra.mrb[0].mxu0 %v3195
    %v3646 = vpop.f32.mrb[0].mxu0
    %v3647 = vadd.f32 0.0, %v3646
    %v3648 = vpop.f32.mrb[0].mxu0
    %v3649 = vadd.f32 0.0, %v3648
    %v3650 = vpop.f32.mrb[0].mxu0
    %v3651 = vadd.f32 0.0, %v3650
    %v3652 = vpop.f32.mrb[0].mxu0
    %v3653 = vadd.f32 0.0, %v3652
    %3654 = vmatprep.mubr.bf16.mxu0 %v3202
    %3655 = vmatmul.mubr.bf16.gmra.mrb[0].mxu0 %v3200
    %v3656 = vpop.f32.mrb[0].mxu0
    %v3657 = vadd.f32 0.0, %v3656
    %v3658 = vpop.f32.mrb[0].mxu0
    %v3659 = vadd.f32 0.0, %v3658
    %v3660 = vpop.f32.mrb[0].mxu0
    %v3661 = vadd.f32 0.0, %v3660
    %v3662 = vpop.f32.mrb[0].mxu0
    %v3663 = vadd.f32 0.0, %v3662
    %3664 = vmatprep.mubr.bf16.mxu0 %v3206
    %3665 = vmatmul.mubr.bf16.gmra.mrb[0].mxu0 %v3204
    %v3666 = vpop.f32.mrb[0].mxu0
    %v3667 = vadd.f32 0.0, %v3666
    %v3668 = vpop.f32.mrb[0].mxu0
    %v3669 = vadd.f32 0.0, %v3668
    %v3670 = vpop.f32.mrb[0].mxu0
    %v3671 = vadd.f32 0.0, %v3670
    %v3672 = vpop.f32.mrb[0].mxu0
    %v3673 = vadd.f32 0.0, %v3672
    %3674 = vmatprep.mubr.bf16.mxu0 %v3210
    %3675 = vmatmul.mubr.bf16.gmra.mrb[0].mxu0 %v3208
    %v3676 = vpop.f32.mrb[0].mxu0
    %v3677 = vadd.f32 0.0, %v3676
    %v3678 = vpop.f32.mrb[0].mxu0
    %v3679 = vadd.f32 0.0, %v3678
    %v3680 = vpop.f32.mrb[0].mxu0
    %v3681 = vadd.f32 0.0, %v3680
    %v3682 = vpop.f32.mrb[0].mxu0
    %v3683 = vadd.f32 0.0, %v3682
    %3684 = vdwg.mxu0
    %v3685 = vld [vmem:[#allocation4] sm:$0xff]
    %v3686 = vld [vmem:[#allocation4 + $0x8] sm:$0xff]
    %v3687 = vld [vmem:[#allocation4 + $0x10] sm:$0xff]
    %v3688 = vld [vmem:[#allocation4 + $0x18] sm:$0xff]
    %v3689 = vld [vmem:[#allocation4 + $0x20] sm:$0xff]
    %v3690 = vld [vmem:[#allocation4 + $0x28] sm:$0xff]
    %v3691 = vld [vmem:[#allocation4 + $0x30] sm:$0xff]
    %v3692 = vld [vmem:[#allocation4 + $0x38] sm:$0xff]
    %v3693 = vld [vmem:[#allocation4 + $0x40] sm:$0xff]
    %v3694 = vld [vmem:[#allocation4 + $0x48] sm:$0xff]
    %v3695 = vld [vmem:[#allocation4 + $0x50] sm:$0xff]
    %v3696 = vld [vmem:[#allocation4 + $0x58] sm:$0xff]
    %v3697 = vld [vmem:[#allocation4 + $0x60] sm:$0xff]
    %v3698 = vld [vmem:[#allocation4 + $0x68] sm:$0xff]
    %v3699 = vld [vmem:[#allocation4 + $0x70] sm:$0xff]
    %v3700 = vld [vmem:[#allocation4 + $0x78] sm:$0xff]
    %v3701 = vld [vmem:[#allocation4 + $0x80] sm:$0xff]
    %v3702 = vld [vmem:[#allocation4 + $0x88] sm:$0xff]
    %v3703 = vld [vmem:[#allocation4 + $0x90] sm:$0xff]
    %v3704 = vld [vmem:[#allocation4 + $0x98] sm:$0xff]
    %v3705 = vld [vmem:[#allocation4 + $0xa0] sm:$0xff]
    %v3706 = vld [vmem:[#allocation4 + $0xa8] sm:$0xff]
    %v3707 = vld [vmem:[#allocation4 + $0xb0] sm:$0xff]
    %v3708 = vld [vmem:[#allocation4 + $0xb8] sm:$0xff]
    %v3709 = vld [vmem:[#allocation4 + $0xc0] sm:$0xff]
    %v3710 = vld [vmem:[#allocation4 + $0xc8] sm:$0xff]
    %v3711 = vld [vmem:[#allocation4 + $0xd0] sm:$0xff]
    %v3712 = vld [vmem:[#allocation4 + $0xd8] sm:$0xff]
    %v3713 = vld [vmem:[#allocation4 + $0xe0] sm:$0xff]
    %v3714 = vld [vmem:[#allocation4 + $0xe8] sm:$0xff]
    %v3715 = vld [vmem:[#allocation4 + $0xf0] sm:$0xff]
    %v3716 = vld [vmem:[#allocation4 + $0xf8] sm:$0xff]
    %v3717 = vadd.f32 %v3685, %v3574
    %v3718 = vadd.f32 %v3686, %v3576
    %v3719 = vadd.f32 %v3687, %v3647
    %v3720 = vadd.f32 %v3688, %v3649
    %v3721 = vadd.f32 %v3689, %v3578
    %v3722 = vadd.f32 %v3690, %v3580
    %v3723 = vadd.f32 %v3691, %v3651
    %v3724 = vadd.f32 %v3692, %v3653
    %v3725 = vadd.f32 %v3693, %v3584
    %v3726 = vadd.f32 %v3694, %v3586
    %v3727 = vadd.f32 %v3695, %v3657
    %v3728 = vadd.f32 %v3696, %v3659
    %v3729 = vadd.f32 %v3697, %v3588
    %v3730 = vadd.f32 %v3698, %v3590
    %v3731 = vadd.f32 %v3699, %v3661
    %v3732 = vadd.f32 %v3700, %v3663
    %v3733 = vadd.f32 %v3701, %v3594
    %v3734 = vadd.f32 %v3702, %v3596
    %v3735 = vadd.f32 %v3703, %v3667
    %v3736 = vadd.f32 %v3704, %v3669
    %v3737 = vadd.f32 %v3705, %v3598
    %v3738 = vadd.f32 %v3706, %v3600
    %v3739 = vadd.f32 %v3707, %v3671
    %v3740 = vadd.f32 %v3708, %v3673
    %v3741 = vadd.f32 %v3709, %v3604
    %v3742 = vadd.f32 %v3710, %v3606
    %v3743 = vadd.f32 %v3711, %v3677
    %v3744 = vadd.f32 %v3712, %v3679
    %v3745 = vadd.f32 %v3713, %v3608
    %v3746 = vadd.f32 %v3714, %v3610
    %v3747 = vadd.f32 %v3715, %v3681
    %v3748 = vadd.f32 %v3716, %v3683
    %3749 = vst [vmem:[#allocation4] sm:$0xff] %v3717
    %3750 = vst [vmem:[#allocation4 + $0x8] sm:$0xff] %v3718
    %3751 = vst [vmem:[#allocation4 + $0x10] sm:$0xff] %v3719
    %3752 = vst [vmem:[#allocation4 + $0x18] sm:$0xff] %v3720
    %3753 = vst [vmem:[#allocation4 + $0x20] sm:$0xff] %v3721
    %3754 = vst [vmem:[#allocation4 + $0x28] sm:$0xff] %v3722
    %3755 = vst [vmem:[#allocation4 + $0x30] sm:$0xff] %v3723
    %3756 = vst [vmem:[#allocation4 + $0x38] sm:$0xff] %v3724
    %3757 = vst [vmem:[#allocation4 + $0x40] sm:$0xff] %v3725
    %3758 = vst [vmem:[#allocation4 + $0x48] sm:$0xff] %v3726
    %3759 = vst [vmem:[#allocation4 + $0x50] sm:$0xff] %v3727
    %3760 = vst [vmem:[#allocation4 + $0x58] sm:$0xff] %v3728
    %3761 = vst [vmem:[#allocation4 + $0x60] sm:$0xff] %v3729
    %3762 = vst [vmem:[#allocation4 + $0x68] sm:$0xff] %v3730
    %3763 = vst [vmem:[#allocation4 + $0x70] sm:$0xff] %v3731
    %3764 = vst [vmem:[#allocation4 + $0x78] sm:$0xff] %v3732
    %3765 = vst [vmem:[#allocation4 + $0x80] sm:$0xff] %v3733
    %3766 = vst [vmem:[#allocation4 + $0x88] sm:$0xff] %v3734
    %3767 = vst [vmem:[#allocation4 + $0x90] sm:$0xff] %v3735
    %3768 = vst [vmem:[#allocation4 + $0x98] sm:$0xff] %v3736
    %3769 = vst [vmem:[#allocation4 + $0xa0] sm:$0xff] %v3737
    %3770 = vst [vmem:[#allocation4 + $0xa8] sm:$0xff] %v3738
    %3771 = vst [vmem:[#allocation4 + $0xb0] sm:$0xff] %v3739
    %3772 = vst [vmem:[#allocation4 + $0xb8] sm:$0xff] %v3740
    %3773 = vst [vmem:[#allocation4 + $0xc0] sm:$0xff] %v3741
    %3774 = vst [vmem:[#allocation4 + $0xc8] sm:$0xff] %v3742
    %3775 = vst [vmem:[#allocation4 + $0xd0] sm:$0xff] %v3743
    %3776 = vst [vmem:[#allocation4 + $0xd8] sm:$0xff] %v3744
    %3777 = vst [vmem:[#allocation4 + $0xe0] sm:$0xff] %v3745
    %3778 = vst [vmem:[#allocation4 + $0xe8] sm:$0xff] %v3746
    %3779 = vst [vmem:[#allocation4 + $0xf0] sm:$0xff] %v3747
    %3780 = vst [vmem:[#allocation4 + $0xf8] sm:$0xff] %v3748
    %v3781 = vld [vmem:[#allocation3 + $0x20] sm:$0xff]
    %v3782 = vld [vmem:[#allocation3 + $0x28] sm:$0xff]
    %v3783 = vld [vmem:[#allocation3 + $0x30] sm:$0xff]
    %v3784 = vld [vmem:[#allocation3 + $0x38] sm:$0xff]
    %v3785 = vld [vmem:[#allocation3 + $0x40] sm:$0xff]
    %v3786 = vld [vmem:[#allocation3 + $0x48] sm:$0xff]
    %v3787 = vld [vmem:[#allocation3 + $0x50] sm:$0xff]
    %v3788 = vld [vmem:[#allocation3 + $0x58] sm:$0xff]
    %s3789 = scalar_lea.vmem [#allocation10], 2048
    %v3790 = vld [vmem:[%s3789] sm:$0xff]
    %v3791 = vld [vmem:[%s3789 + $0x8] sm:$0xff]
    %v3792 = vld [vmem:[%s3789 + $0x10] sm:$0xff]
    %v3793 = vld [vmem:[%s3789 + $0x18] sm:$0xff]
    %v3794 = vld [vmem:[%s3789 + $0x20] sm:$0xff]
    %v3795 = vld [vmem:[%s3789 + $0x28] sm:$0xff]
    %v3796 = vld [vmem:[%s3789 + $0x30] sm:$0xff]
    %v3797 = vld [vmem:[%s3789 + $0x38] sm:$0xff]
    %v3798 = vld [vmem:[%s3789 + $0x40] sm:$0xff]
    %v3799 = vld [vmem:[%s3789 + $0x48] sm:$0xff]
    %v3800 = vld [vmem:[%s3789 + $0x50] sm:$0xff]
    %v3801 = vld [vmem:[%s3789 + $0x58] sm:$0xff]
    %v3802 = vld [vmem:[%s3789 + $0x60] sm:$0xff]
    %v3803 = vld [vmem:[%s3789 + $0x68] sm:$0xff]
    %v3804 = vld [vmem:[%s3789 + $0x70] sm:$0xff]
    %v3805 = vld [vmem:[%s3789 + $0x78] sm:$0xff]
    %v3806 = vld [vmem:[%s3789 + $0x80] sm:$0xff]
    %v3807 = vld [vmem:[%s3789 + $0x88] sm:$0xff]
    %v3808 = vld [vmem:[%s3789 + $0x90] sm:$0xff]
    %v3809 = vld [vmem:[%s3789 + $0x98] sm:$0xff]
    %v3810 = vld [vmem:[%s3789 + $0xa0] sm:$0xff]
    %v3811 = vld [vmem:[%s3789 + $0xa8] sm:$0xff]
    %v3812 = vld [vmem:[%s3789 + $0xb0] sm:$0xff]
    %v3813 = vld [vmem:[%s3789 + $0xb8] sm:$0xff]
    %v3814 = vld [vmem:[%s3789 + $0xc0] sm:$0xff]
    %v3815 = vld [vmem:[%s3789 + $0xc8] sm:$0xff]
    %v3816 = vld [vmem:[%s3789 + $0xd0] sm:$0xff]
    %v3817 = vld [vmem:[%s3789 + $0xd8] sm:$0xff]
    %v3818 = vld [vmem:[%s3789 + $0xe0] sm:$0xff]
    %v3819 = vld [vmem:[%s3789 + $0xe8] sm:$0xff]
    %v3820 = vld [vmem:[%s3789 + $0xf0] sm:$0xff]
    %v3821 = vld [vmem:[%s3789 + $0xf8] sm:$0xff]
    %v3822 = vld [vmem:[%s3789 + $0x100] sm:$0xff]
    %v3823 = vld [vmem:[%s3789 + $0x108] sm:$0xff]
    %v3824 = vld [vmem:[%s3789 + $0x110] sm:$0xff]
    %v3825 = vld [vmem:[%s3789 + $0x118] sm:$0xff]
    %v3826 = vld [vmem:[%s3789 + $0x120] sm:$0xff]
    %v3827 = vld [vmem:[%s3789 + $0x128] sm:$0xff]
    %v3828 = vld [vmem:[%s3789 + $0x130] sm:$0xff]
    %v3829 = vld [vmem:[%s3789 + $0x138] sm:$0xff]
    %v3830 = vld [vmem:[%s3789 + $0x140] sm:$0xff]
    %v3831 = vld [vmem:[%s3789 + $0x148] sm:$0xff]
    %v3832 = vld [vmem:[%s3789 + $0x150] sm:$0xff]
    %v3833 = vld [vmem:[%s3789 + $0x158] sm:$0xff]
    %v3834 = vld [vmem:[%s3789 + $0x160] sm:$0xff]
    %v3835 = vld [vmem:[%s3789 + $0x168] sm:$0xff]
    %v3836 = vld [vmem:[%s3789 + $0x170] sm:$0xff]
    %v3837 = vld [vmem:[%s3789 + $0x178] sm:$0xff]
    %v3838 = vld [vmem:[%s3789 + $0x180] sm:$0xff]
    %v3839 = vld [vmem:[%s3789 + $0x188] sm:$0xff]
    %v3840 = vld [vmem:[%s3789 + $0x190] sm:$0xff]
    %v3841 = vld [vmem:[%s3789 + $0x198] sm:$0xff]
    %v3842 = vld [vmem:[%s3789 + $0x1a0] sm:$0xff]
    %v3843 = vld [vmem:[%s3789 + $0x1a8] sm:$0xff]
    %v3844 = vld [vmem:[%s3789 + $0x1b0] sm:$0xff]
    %v3845 = vld [vmem:[%s3789 + $0x1b8] sm:$0xff]
    %v3846 = vld [vmem:[%s3789 + $0x1c0] sm:$0xff]
    %v3847 = vld [vmem:[%s3789 + $0x1c8] sm:$0xff]
    %v3848 = vld [vmem:[%s3789 + $0x1d0] sm:$0xff]
    %v3849 = vld [vmem:[%s3789 + $0x1d8] sm:$0xff]
    %v3850 = vld [vmem:[%s3789 + $0x1e0] sm:$0xff]
    %v3851 = vld [vmem:[%s3789 + $0x1e8] sm:$0xff]
    %v3852 = vld [vmem:[%s3789 + $0x1f0] sm:$0xff]
    %v3853 = vld [vmem:[%s3789 + $0x1f8] sm:$0xff]
    %v3918 = vunpack.c.l.b16 %v3790
    %v3919 = vunpack.c.h.b16 %v3790
    %v3920 = vunpack.c.l.b16 %v3791
    %v3921 = vunpack.c.h.b16 %v3791
    %v3922 = vunpack.c.l.b16 %v3792
    %v3923 = vunpack.c.h.b16 %v3792
    %v3924 = vunpack.c.l.b16 %v3793
    %v3925 = vunpack.c.h.b16 %v3793
    %v3926 = vunpack.c.l.b16 %v3794
    %v3927 = vunpack.c.h.b16 %v3794
    %v3928 = vunpack.c.l.b16 %v3795
    %v3929 = vunpack.c.h.b16 %v3795
    %v3930 = vunpack.c.l.b16 %v3796
    %v3931 = vunpack.c.h.b16 %v3796
    %v3932 = vunpack.c.l.b16 %v3797
    %v3933 = vunpack.c.h.b16 %v3797
    %v3934 = vunpack.c.l.b16 %v3798
    %v3935 = vunpack.c.h.b16 %v3798
    %v3936 = vunpack.c.l.b16 %v3799
    %v3937 = vunpack.c.h.b16 %v3799
    %v3938 = vunpack.c.l.b16 %v3800
    %v3939 = vunpack.c.h.b16 %v3800
    %v3940 = vunpack.c.l.b16 %v3801
    %v3941 = vunpack.c.h.b16 %v3801
    %v3942 = vunpack.c.l.b16 %v3802
    %v3943 = vunpack.c.h.b16 %v3802
    %v3944 = vunpack.c.l.b16 %v3803
    %v3945 = vunpack.c.h.b16 %v3803
    %v3946 = vunpack.c.l.b16 %v3804
    %v3947 = vunpack.c.h.b16 %v3804
    %v3948 = vunpack.c.l.b16 %v3805
    %v3949 = vunpack.c.h.b16 %v3805
    %v3950 = vunpack.c.l.b16 %v3806
    %v3951 = vunpack.c.h.b16 %v3806
    %v3952 = vunpack.c.l.b16 %v3807
    %v3953 = vunpack.c.h.b16 %v3807
    %v3954 = vunpack.c.l.b16 %v3808
    %v3955 = vunpack.c.h.b16 %v3808
    %v3956 = vunpack.c.l.b16 %v3809
    %v3957 = vunpack.c.h.b16 %v3809
    %v3958 = vunpack.c.l.b16 %v3810
    %v3959 = vunpack.c.h.b16 %v3810
    %v3960 = vunpack.c.l.b16 %v3811
    %v3961 = vunpack.c.h.b16 %v3811
    %v3962 = vunpack.c.l.b16 %v3812
    %v3963 = vunpack.c.h.b16 %v3812
    %v3964 = vunpack.c.l.b16 %v3813
    %v3965 = vunpack.c.h.b16 %v3813
    %v3966 = vunpack.c.l.b16 %v3814
    %v3967 = vunpack.c.h.b16 %v3814
    %v3968 = vunpack.c.l.b16 %v3815
    %v3969 = vunpack.c.h.b16 %v3815
    %v3970 = vunpack.c.l.b16 %v3816
    %v3971 = vunpack.c.h.b16 %v3816
    %v3972 = vunpack.c.l.b16 %v3817
    %v3973 = vunpack.c.h.b16 %v3817
    %v3974 = vunpack.c.l.b16 %v3818
    %v3975 = vunpack.c.h.b16 %v3818
    %v3976 = vunpack.c.l.b16 %v3819
    %v3977 = vunpack.c.h.b16 %v3819
    %v3978 = vunpack.c.l.b16 %v3820
    %v3979 = vunpack.c.h.b16 %v3820
    %v3980 = vunpack.c.l.b16 %v3821
    %v3981 = vunpack.c.h.b16 %v3821
    %v3982 = vunpack.c.l.b16 %v3822
    %v3983 = vunpack.c.h.b16 %v3822
    %v3984 = vunpack.c.l.b16 %v3823
    %v3985 = vunpack.c.h.b16 %v3823
    %v3986 = vunpack.c.l.b16 %v3824
    %v3987 = vunpack.c.h.b16 %v3824
    %v3988 = vunpack.c.l.b16 %v3825
    %v3989 = vunpack.c.h.b16 %v3825
    %v3990 = vunpack.c.l.b16 %v3826
    %v3991 = vunpack.c.h.b16 %v3826
    %v3992 = vunpack.c.l.b16 %v3827
    %v3993 = vunpack.c.h.b16 %v3827
    %v3994 = vunpack.c.l.b16 %v3828
    %v3995 = vunpack.c.h.b16 %v3828
    %v3996 = vunpack.c.l.b16 %v3829
    %v3997 = vunpack.c.h.b16 %v3829
    %v3998 = vunpack.c.l.b16 %v3830
    %v3999 = vunpack.c.h.b16 %v3830
    %v4000 = vunpack.c.l.b16 %v3831
    %v4001 = vunpack.c.h.b16 %v3831
    %v4002 = vunpack.c.l.b16 %v3832
    %v4003 = vunpack.c.h.b16 %v3832
    %v4004 = vunpack.c.l.b16 %v3833
    %v4005 = vunpack.c.h.b16 %v3833
    %v4006 = vunpack.c.l.b16 %v3834
    %v4007 = vunpack.c.h.b16 %v3834
    %v4008 = vunpack.c.l.b16 %v3835
    %v4009 = vunpack.c.h.b16 %v3835
    %v4010 = vunpack.c.l.b16 %v3836
    %v4011 = vunpack.c.h.b16 %v3836
    %v4012 = vunpack.c.l.b16 %v3837
    %v4013 = vunpack.c.h.b16 %v3837
    %v4014 = vunpack.c.l.b16 %v3838
    %v4015 = vunpack.c.h.b16 %v3838
    %v4016 = vunpack.c.l.b16 %v3839
    %v4017 = vunpack.c.h.b16 %v3839
    %v4018 = vunpack.c.l.b16 %v3840
    %v4019 = vunpack.c.h.b16 %v3840
    %v4020 = vunpack.c.l.b16 %v3841
    %v4021 = vunpack.c.h.b16 %v3841
    %v4022 = vunpack.c.l.b16 %v3842
    %v4023 = vunpack.c.h.b16 %v3842
    %v4024 = vunpack.c.l.b16 %v3843
    %v4025 = vunpack.c.h.b16 %v3843
    %v4026 = vunpack.c.l.b16 %v3844
    %v4027 = vunpack.c.h.b16 %v3844
    %v4028 = vunpack.c.l.b16 %v3845
    %v4029 = vunpack.c.h.b16 %v3845
    %v4030 = vunpack.c.l.b16 %v3846
    %v4031 = vunpack.c.h.b16 %v3846
    %v4032 = vunpack.c.l.b16 %v3847
    %v4033 = vunpack.c.h.b16 %v3847
    %v4034 = vunpack.c.l.b16 %v3848
    %v4035 = vunpack.c.h.b16 %v3848
    %v4036 = vunpack.c.l.b16 %v3849
    %v4037 = vunpack.c.h.b16 %v3849
    %v4038 = vunpack.c.l.b16 %v3850
    %v4039 = vunpack.c.h.b16 %v3850
    %v4040 = vunpack.c.l.b16 %v3851
    %v4041 = vunpack.c.h.b16 %v3851
    %v4042 = vunpack.c.l.b16 %v3852
    %v4043 = vunpack.c.h.b16 %v3852
    %v4044 = vunpack.c.l.b16 %v3853
    %v4045 = vunpack.c.h.b16 %v3853
    %v4046 = vpack.c.b16 %v3922, %v3918
    %v4047 = vpack.c.b16 %v3923, %v3919
    %v4048 = vpack.c.b16 %v3924, %v3920
    %v4049 = vpack.c.b16 %v3925, %v3921
    %v4050 = vpack.c.b16 %v3930, %v3926
    %v4051 = vpack.c.b16 %v3931, %v3927
    %v4052 = vpack.c.b16 %v3932, %v3928
    %v4053 = vpack.c.b16 %v3933, %v3929
    %v4054 = vpack.c.b16 %v3938, %v3934
    %v4055 = vpack.c.b16 %v3939, %v3935
    %v4056 = vpack.c.b16 %v3940, %v3936
    %v4057 = vpack.c.b16 %v3941, %v3937
    %v4058 = vpack.c.b16 %v3946, %v3942
    %v4059 = vpack.c.b16 %v3947, %v3943
    %v4060 = vpack.c.b16 %v3948, %v3944
    %v4061 = vpack.c.b16 %v3949, %v3945
    %v4062 = vpack.c.b16 %v3954, %v3950
    %v4063 = vpack.c.b16 %v3955, %v3951
    %v4064 = vpack.c.b16 %v3956, %v3952
    %v4065 = vpack.c.b16 %v3957, %v3953
    %v4066 = vpack.c.b16 %v3962, %v3958
    %v4067 = vpack.c.b16 %v3963, %v3959
    %v4068 = vpack.c.b16 %v3964, %v3960
    %v4069 = vpack.c.b16 %v3965, %v3961
    %v4070 = vpack.c.b16 %v3970, %v3966
    %v4071 = vpack.c.b16 %v3971, %v3967
    %v4072 = vpack.c.b16 %v3972, %v3968
    %v4073 = vpack.c.b16 %v3973, %v3969
    %v4074 = vpack.c.b16 %v3978, %v3974
    %v4075 = vpack.c.b16 %v3979, %v3975
    %v4076 = vpack.c.b16 %v3980, %v3976
    %v4077 = vpack.c.b16 %v3981, %v3977
    %v4078 = vpack.c.b16 %v3986, %v3982
    %v4079 = vpack.c.b16 %v3987, %v3983
    %v4080 = vpack.c.b16 %v3988, %v3984
    %v4081 = vpack.c.b16 %v3989, %v3985
    %v4082 = vpack.c.b16 %v3994, %v3990
    %v4083 = vpack.c.b16 %v3995, %v3991
    %v4084 = vpack.c.b16 %v3996, %v3992
    %v4085 = vpack.c.b16 %v3997, %v3993
    %v4086 = vpack.c.b16 %v4002, %v3998
    %v4087 = vpack.c.b16 %v4003, %v3999
    %v4088 = vpack.c.b16 %v4004, %v4000
    %v4089 = vpack.c.b16 %v4005, %v4001
    %v4090 = vpack.c.b16 %v4010, %v4006
    %v4091 = vpack.c.b16 %v4011, %v4007
    %v4092 = vpack.c.b16 %v4012, %v4008
    %v4093 = vpack.c.b16 %v4013, %v4009
    %v4094 = vpack.c.b16 %v4018, %v4014
    %v4095 = vpack.c.b16 %v4019, %v4015
    %v4096 = vpack.c.b16 %v4020, %v4016
    %v4097 = vpack.c.b16 %v4021, %v4017
    %v4098 = vpack.c.b16 %v4026, %v4022
    %v4099 = vpack.c.b16 %v4027, %v4023
    %v4100 = vpack.c.b16 %v4028, %v4024
    %v4101 = vpack.c.b16 %v4029, %v4025
    %v4102 = vpack.c.b16 %v4034, %v4030
    %v4103 = vpack.c.b16 %v4035, %v4031
    %v4104 = vpack.c.b16 %v4036, %v4032
    %v4105 = vpack.c.b16 %v4037, %v4033
    %v4106 = vpack.c.b16 %v4042, %v4038
    %v4107 = vpack.c.b16 %v4043, %v4039
    %v4108 = vpack.c.b16 %v4044, %v4040
    %v4109 = vpack.c.b16 %v4045, %v4041
    %4174 = vmatprep.subr.bf16.mxu0 %v4047
    %4175 = vmatpush1.bf16.msra.mxu0 %v4046
    %4176 = vmatprep.subr.bf16.mxu0 %v4051
    %4177 = vmatpush1.bf16.msra.mxu0 %v4050
    %4178 = vmatprep.subr.bf16.mxu0 %v4055
    %4179 = vmatpush1.bf16.msra.mxu0 %v4054
    %4180 = vmatprep.subr.bf16.mxu0 %v4059
    %4181 = vmatpush1.bf16.msra.mxu0 %v4058
    %4182 = vmatprep.subr.bf16.mxu0 %v4063
    %4183 = vmatpush1.bf16.msra.mxu0 %v4062
    %4184 = vmatprep.subr.bf16.mxu0 %v4067
    %4185 = vmatpush1.bf16.msra.mxu0 %v4066
    %4186 = vmatprep.subr.bf16.mxu0 %v4071
    %4187 = vmatpush1.bf16.msra.mxu0 %v4070
    %4188 = vmatprep.subr.bf16.mxu0 %v4075
    %4189 = vmatpush1.bf16.msra.mxu0 %v4074
    %4190 = vmatprep.subr.bf16.mxu0 %v4079
    %4191 = vmatpush1.bf16.msra.mxu0 %v4078
    %4192 = vmatprep.subr.bf16.mxu0 %v4083
    %4193 = vmatpush1.bf16.msra.mxu0 %v4082
    %4194 = vmatprep.subr.bf16.mxu0 %v4087
    %4195 = vmatpush1.bf16.msra.mxu0 %v4086
    %4196 = vmatprep.subr.bf16.mxu0 %v4091
    %4197 = vmatpush1.bf16.msra.mxu0 %v4090
    %4198 = vmatprep.subr.bf16.mxu0 %v4095
    %4199 = vmatpush1.bf16.msra.mxu0 %v4094
    %4200 = vmatprep.subr.bf16.mxu0 %v4099
    %4201 = vmatpush1.bf16.msra.mxu0 %v4098
    %4202 = vmatprep.subr.bf16.mxu0 %v4103
    %4203 = vmatpush1.bf16.msra.mxu0 %v4102
    %4204 = vmatprep.subr.bf16.mxu0 %v4107
    %4205 = vmatpush1.bf16.msra.mxu0 %v4106
    %4206 = vmatprep.mubr.bf16.mxu0 %v3782
    %4207 = vmatmul.mubr.bf16.gmra.mrb[0].mxu0 %v3781
    %v4208 = vpop.f32.mrb[0].mxu0
    %v4209 = vadd.f32 0.0, %v4208
    %v4210 = vpop.f32.mrb[0].mxu0
    %v4211 = vadd.f32 0.0, %v4210
    %v4212 = vpop.f32.mrb[0].mxu0
    %v4213 = vadd.f32 0.0, %v4212
    %v4214 = vpop.f32.mrb[0].mxu0
    %v4215 = vadd.f32 0.0, %v4214
    %4216 = vmatprep.mubr.bf16.mxu0 %v3784
    %4217 = vmatmul.mubr.bf16.gmra.mrb[0].mxu0 %v3783
    %v4218 = vpop.f32.mrb[0].mxu0
    %v4219 = vadd.f32 0.0, %v4218
    %v4220 = vpop.f32.mrb[0].mxu0
    %v4221 = vadd.f32 0.0, %v4220
    %v4222 = vpop.f32.mrb[0].mxu0
    %v4223 = vadd.f32 0.0, %v4222
    %v4224 = vpop.f32.mrb[0].mxu0
    %v4225 = vadd.f32 0.0, %v4224
    %4226 = vmatprep.mubr.bf16.mxu0 %v3786
    %4227 = vmatmul.mubr.bf16.gmra.mrb[0].mxu0 %v3785
    %v4228 = vpop.f32.mrb[0].mxu0
    %v4229 = vadd.f32 0.0, %v4228
    %v4230 = vpop.f32.mrb[0].mxu0
    %v4231 = vadd.f32 0.0, %v4230
    %v4232 = vpop.f32.mrb[0].mxu0
    %v4233 = vadd.f32 0.0, %v4232
    %v4234 = vpop.f32.mrb[0].mxu0
    %v4235 = vadd.f32 0.0, %v4234
    %4236 = vmatprep.mubr.bf16.mxu0 %v3788
    %4237 = vmatmul.mubr.bf16.gmra.mrb[0].mxu0 %v3787
    %v4238 = vpop.f32.mrb[0].mxu0
    %v4239 = vadd.f32 0.0, %v4238
    %v4240 = vpop.f32.mrb[0].mxu0
    %v4241 = vadd.f32 0.0, %v4240
    %v4242 = vpop.f32.mrb[0].mxu0
    %v4243 = vadd.f32 0.0, %v4242
    %v4244 = vpop.f32.mrb[0].mxu0
    %v4245 = vadd.f32 0.0, %v4244
    %4246 = vdwg.mxu0
    %4247 = vmatprep.subr.bf16.mxu0 %v4049
    %4248 = vmatpush1.bf16.msra.mxu0 %v4048
    %4249 = vmatprep.subr.bf16.mxu0 %v4053
    %4250 = vmatpush1.bf16.msra.mxu0 %v4052
    %4251 = vmatprep.subr.bf16.mxu0 %v4057
    %4252 = vmatpush1.bf16.msra.mxu0 %v4056
    %4253 = vmatprep.subr.bf16.mxu0 %v4061
    %4254 = vmatpush1.bf16.msra.mxu0 %v4060
    %4255 = vmatprep.subr.bf16.mxu0 %v4065
    %4256 = vmatpush1.bf16.msra.mxu0 %v4064
    %4257 = vmatprep.subr.bf16.mxu0 %v4069
    %4258 = vmatpush1.bf16.msra.mxu0 %v4068
    %4259 = vmatprep.subr.bf16.mxu0 %v4073
    %4260 = vmatpush1.bf16.msra.mxu0 %v4072
    %4261 = vmatprep.subr.bf16.mxu0 %v4077
    %4262 = vmatpush1.bf16.msra.mxu0 %v4076
    %4263 = vmatprep.subr.bf16.mxu0 %v4081
    %4264 = vmatpush1.bf16.msra.mxu0 %v4080
    %4265 = vmatprep.subr.bf16.mxu0 %v4085
    %4266 = vmatpush1.bf16.msra.mxu0 %v4084
    %4267 = vmatprep.subr.bf16.mxu0 %v4089
    %4268 = vmatpush1.bf16.msra.mxu0 %v4088
    %4269 = vmatprep.subr.bf16.mxu0 %v4093
    %4270 = vmatpush1.bf16.msra.mxu0 %v4092
    %4271 = vmatprep.subr.bf16.mxu0 %v4097
    %4272 = vmatpush1.bf16.msra.mxu0 %v4096
    %4273 = vmatprep.subr.bf16.mxu0 %v4101
    %4274 = vmatpush1.bf16.msra.mxu0 %v4100
    %4275 = vmatprep.subr.bf16.mxu0 %v4105
    %4276 = vmatpush1.bf16.msra.mxu0 %v4104
    %4277 = vmatprep.subr.bf16.mxu0 %v4109
    %4278 = vmatpush1.bf16.msra.mxu0 %v4108
    %4279 = vmatprep.mubr.bf16.mxu0 %v3782
    %4280 = vmatmul.mubr.bf16.gmra.mrb[0].mxu0 %v3781
    %v4281 = vpop.f32.mrb[0].mxu0
    %v4282 = vadd.f32 0.0, %v4281
    %v4283 = vpop.f32.mrb[0].mxu0
    %v4284 = vadd.f32 0.0, %v4283
    %v4285 = vpop.f32.mrb[0].mxu0
    %v4286 = vadd.f32 0.0, %v4285
    %v4287 = vpop.f32.mrb[0].mxu0
    %v4288 = vadd.f32 0.0, %v4287
    %4289 = vmatprep.mubr.bf16.mxu0 %v3784
    %4290 = vmatmul.mubr.bf16.gmra.mrb[0].mxu0 %v3783
    %v4291 = vpop.f32.mrb[0].mxu0
    %v4292 = vadd.f32 0.0, %v4291
    %v4293 = vpop.f32.mrb[0].mxu0
    %v4294 = vadd.f32 0.0, %v4293
    %v4295 = vpop.f32.mrb[0].mxu0
    %v4296 = vadd.f32 0.0, %v4295
    %v4297 = vpop.f32.mrb[0].mxu0
    %v4298 = vadd.f32 0.0, %v4297
    %4299 = vmatprep.mubr.bf16.mxu0 %v3786
    %4300 = vmatmul.mubr.bf16.gmra.mrb[0].mxu0 %v3785
    %v4301 = vpop.f32.mrb[0].mxu0
    %v4302 = vadd.f32 0.0, %v4301
    %v4303 = vpop.f32.mrb[0].mxu0
    %v4304 = vadd.f32 0.0, %v4303
    %v4305 = vpop.f32.mrb[0].mxu0
    %v4306 = vadd.f32 0.0, %v4305
    %v4307 = vpop.f32.mrb[0].mxu0
    %v4308 = vadd.f32 0.0, %v4307
    %4309 = vmatprep.mubr.bf16.mxu0 %v3788
    %4310 = vmatmul.mubr.bf16.gmra.mrb[0].mxu0 %v3787
    %v4311 = vpop.f32.mrb[0].mxu0
    %v4312 = vadd.f32 0.0, %v4311
    %v4313 = vpop.f32.mrb[0].mxu0
    %v4314 = vadd.f32 0.0, %v4313
    %v4315 = vpop.f32.mrb[0].mxu0
    %v4316 = vadd.f32 0.0, %v4315
    %v4317 = vpop.f32.mrb[0].mxu0
    %v4318 = vadd.f32 0.0, %v4317
    %4319 = vdwg.mxu0
    %v4320 = vld [vmem:[#allocation4] sm:$0xff]
    %v4321 = vld [vmem:[#allocation4 + $0x8] sm:$0xff]
    %v4322 = vld [vmem:[#allocation4 + $0x10] sm:$0xff]
    %v4323 = vld [vmem:[#allocation4 + $0x18] sm:$0xff]
    %v4324 = vld [vmem:[#allocation4 + $0x20] sm:$0xff]
    %v4325 = vld [vmem:[#allocation4 + $0x28] sm:$0xff]
    %v4326 = vld [vmem:[#allocation4 + $0x30] sm:$0xff]
    %v4327 = vld [vmem:[#allocation4 + $0x38] sm:$0xff]
    %v4328 = vld [vmem:[#allocation4 + $0x40] sm:$0xff]
    %v4329 = vld [vmem:[#allocation4 + $0x48] sm:$0xff]
    %v4330 = vld [vmem:[#allocation4 + $0x50] sm:$0xff]
    %v4331 = vld [vmem:[#allocation4 + $0x58] sm:$0xff]
    %v4332 = vld [vmem:[#allocation4 + $0x60] sm:$0xff]
    %v4333 = vld [vmem:[#allocation4 + $0x68] sm:$0xff]
    %v4334 = vld [vmem:[#allocation4 + $0x70] sm:$0xff]
    %v4335 = vld [vmem:[#allocation4 + $0x78] sm:$0xff]
    %v4336 = vld [vmem:[#allocation4 + $0x80] sm:$0xff]
    %v4337 = vld [vmem:[#allocation4 + $0x88] sm:$0xff]
    %v4338 = vld [vmem:[#allocation4 + $0x90] sm:$0xff]
    %v4339 = vld [vmem:[#allocation4 + $0x98] sm:$0xff]
    %v4340 = vld [vmem:[#allocation4 + $0xa0] sm:$0xff]
    %v4341 = vld [vmem:[#allocation4 + $0xa8] sm:$0xff]
    %v4342 = vld [vmem:[#allocation4 + $0xb0] sm:$0xff]
    %v4343 = vld [vmem:[#allocation4 + $0xb8] sm:$0xff]
    %v4344 = vld [vmem:[#allocation4 + $0xc0] sm:$0xff]
    %v4345 = vld [vmem:[#allocation4 + $0xc8] sm:$0xff]
    %v4346 = vld [vmem:[#allocation4 + $0xd0] sm:$0xff]
    %v4347 = vld [vmem:[#allocation4 + $0xd8] sm:$0xff]
    %v4348 = vld [vmem:[#allocation4 + $0xe0] sm:$0xff]
    %v4349 = vld [vmem:[#allocation4 + $0xe8] sm:$0xff]
    %v4350 = vld [vmem:[#allocation4 + $0xf0] sm:$0xff]
    %v4351 = vld [vmem:[#allocation4 + $0xf8] sm:$0xff]
    %v4352 = vadd.f32 %v4320, %v4209
    %v4353 = vadd.f32 %v4321, %v4211
    %v4354 = vadd.f32 %v4322, %v4282
    %v4355 = vadd.f32 %v4323, %v4284
    %v4356 = vadd.f32 %v4324, %v4213
    %v4357 = vadd.f32 %v4325, %v4215
    %v4358 = vadd.f32 %v4326, %v4286
    %v4359 = vadd.f32 %v4327, %v4288
    %v4360 = vadd.f32 %v4328, %v4219
    %v4361 = vadd.f32 %v4329, %v4221
    %v4362 = vadd.f32 %v4330, %v4292
    %v4363 = vadd.f32 %v4331, %v4294
    %v4364 = vadd.f32 %v4332, %v4223
    %v4365 = vadd.f32 %v4333, %v4225
    %v4366 = vadd.f32 %v4334, %v4296
    %v4367 = vadd.f32 %v4335, %v4298
    %v4368 = vadd.f32 %v4336, %v4229
    %v4369 = vadd.f32 %v4337, %v4231
    %v4370 = vadd.f32 %v4338, %v4302
    %v4371 = vadd.f32 %v4339, %v4304
    %v4372 = vadd.f32 %v4340, %v4233
    %v4373 = vadd.f32 %v4341, %v4235
    %v4374 = vadd.f32 %v4342, %v4306
    %v4375 = vadd.f32 %v4343, %v4308
    %v4376 = vadd.f32 %v4344, %v4239
    %v4377 = vadd.f32 %v4345, %v4241
    %v4378 = vadd.f32 %v4346, %v4312
    %v4379 = vadd.f32 %v4347, %v4314
    %v4380 = vadd.f32 %v4348, %v4243
    %v4381 = vadd.f32 %v4349, %v4245
    %v4382 = vadd.f32 %v4350, %v4316
    %v4383 = vadd.f32 %v4351, %v4318
    %4384 = vst [vmem:[#allocation4] sm:$0xff] %v4352
    %4385 = vst [vmem:[#allocation4 + $0x8] sm:$0xff] %v4353
    %4386 = vst [vmem:[#allocation4 + $0x10] sm:$0xff] %v4354
    %4387 = vst [vmem:[#allocation4 + $0x18] sm:$0xff] %v4355
    %4388 = vst [vmem:[#allocation4 + $0x20] sm:$0xff] %v4356
    %4389 = vst [vmem:[#allocation4 + $0x28] sm:$0xff] %v4357
    %4390 = vst [vmem:[#allocation4 + $0x30] sm:$0xff] %v4358
    %4391 = vst [vmem:[#allocation4 + $0x38] sm:$0xff] %v4359
    %4392 = vst [vmem:[#allocation4 + $0x40] sm:$0xff] %v4360
    %4393 = vst [vmem:[#allocation4 + $0x48] sm:$0xff] %v4361
    %4394 = vst [vmem:[#allocation4 + $0x50] sm:$0xff] %v4362
    %4395 = vst [vmem:[#allocation4 + $0x58] sm:$0xff] %v4363
    %4396 = vst [vmem:[#allocation4 + $0x60] sm:$0xff] %v4364
    %4397 = vst [vmem:[#allocation4 + $0x68] sm:$0xff] %v4365
    %4398 = vst [vmem:[#allocation4 + $0x70] sm:$0xff] %v4366
    %4399 = vst [vmem:[#allocation4 + $0x78] sm:$0xff] %v4367
    %4400 = vst [vmem:[#allocation4 + $0x80] sm:$0xff] %v4368
    %4401 = vst [vmem:[#allocation4 + $0x88] sm:$0xff] %v4369
    %4402 = vst [vmem:[#allocation4 + $0x90] sm:$0xff] %v4370
    %4403 = vst [vmem:[#allocation4 + $0x98] sm:$0xff] %v4371
    %4404 = vst [vmem:[#allocation4 + $0xa0] sm:$0xff] %v4372
    %4405 = vst [vmem:[#allocation4 + $0xa8] sm:$0xff] %v4373
    %4406 = vst [vmem:[#allocation4 + $0xb0] sm:$0xff] %v4374
    %4407 = vst [vmem:[#allocation4 + $0xb8] sm:$0xff] %v4375
    %4408 = vst [vmem:[#allocation4 + $0xc0] sm:$0xff] %v4376
    %4409 = vst [vmem:[#allocation4 + $0xc8] sm:$0xff] %v4377
    %4410 = vst [vmem:[#allocation4 + $0xd0] sm:$0xff] %v4378
    %4411 = vst [vmem:[#allocation4 + $0xd8] sm:$0xff] %v4379
    %4412 = vst [vmem:[#allocation4 + $0xe0] sm:$0xff] %v4380
    %4413 = vst [vmem:[#allocation4 + $0xe8] sm:$0xff] %v4381
    %4414 = vst [vmem:[#allocation4 + $0xf0] sm:$0xff] %v4382
    %4415 = vst [vmem:[#allocation4 + $0xf8] sm:$0xff] %v4383
    %v4416 = vld [vmem:[#allocation11] sm:$0x3]
    %v4417 = vld [vmem:[#allocation4] sm:$0xff]
    %v4418 = vld [vmem:[#allocation4 + $0x8] sm:$0xff]
    %v4419 = vld [vmem:[#allocation4 + $0x10] sm:$0xff]
    %v4420 = vld [vmem:[#allocation4 + $0x18] sm:$0xff]
    %v4421 = vld [vmem:[#allocation4 + $0x20] sm:$0xff]
    %v4422 = vld [vmem:[#allocation4 + $0x28] sm:$0xff]
    %v4423 = vld [vmem:[#allocation4 + $0x30] sm:$0xff]
    %v4424 = vld [vmem:[#allocation4 + $0x38] sm:$0xff]
    %v4425 = vmax.f32 %v4417, %v4421
    %v4426 = vmax.f32 %v4418, %v4422
    %v4427 = vmax.f32 %v4419, %v4423
    %v4428 = vmax.f32 %v4420, %v4424
    %v4429 = vmax.f32 %v4425, %v4427
    %v4430 = vmax.f32 %v4426, %v4428
    %v4432 = vlaneseq
    %v4433 = vshrl.u32 %v4432, 7
    %v4434 = vsub.s32 0, %v4433
    %v4435 = vrot.slane %v4416, %v4434
    %v4436 = vlaneseq
    %v4437 = vshrl.u32 %v4436, 7
    %v4438 = vsub.s32 1, %v4437
    %v4439 = vrot.slane %v4416, %v4438
    %v4442 = vadd.f32 %v4429, %v4435
    %v4443 = vadd.f32 %v4430, %v4439
    %v4444 = vmax.f32 %v4442, 0.0
    %v4445 = vmax.f32 %v4443, 0.0
    %v4446 = vpack.c.bf16 %v4444, %v4444
    %v4447 = vpack.c.bf16 %v4445, %v4445
    %v4448 = vld [vmem:[%s5] sm:$0xf]
    %v4449 = vld [vmem:[%s5 + $0x4] sm:$0xf]
    %v4450 = vld [vmem:[%s5 + $0x8] sm:$0xf]
    %v4451 = vld [vmem:[%s5 + $0xc] sm:$0xf]
    %v4452 = vld [vmem:[%s5 + $0x10] sm:$0xf]
    %v4453 = vld [vmem:[%s5 + $0x14] sm:$0xf]
    %v4454 = vld [vmem:[%s5 + $0x18] sm:$0xf]
    %v4455 = vld [vmem:[%s5 + $0x1c] sm:$0xf]
    %v4456 = vld [vmem:[%s5 + $0x20] sm:$0xf]
    %v4457 = vld [vmem:[%s5 + $0x24] sm:$0xf]
    %v4458 = vld [vmem:[%s5 + $0x28] sm:$0xf]
    %v4459 = vld [vmem:[%s5 + $0x2c] sm:$0xf]
    %v4460 = vld [vmem:[%s5 + $0x30] sm:$0xf]
    %v4461 = vld [vmem:[%s5 + $0x34] sm:$0xf]
    %v4462 = vld [vmem:[%s5 + $0x38] sm:$0xf]
    %v4463 = vld [vmem:[%s5 + $0x3c] sm:$0xf]
    %v4464 = vld [vmem:[%s5 + $0x40] sm:$0xf]
    %v4465 = vld [vmem:[%s5 + $0x44] sm:$0xf]
    %v4466 = vld [vmem:[%s5 + $0x48] sm:$0xf]
    %v4467 = vld [vmem:[%s5 + $0x4c] sm:$0xf]
    %v4468 = vld [vmem:[%s5 + $0x50] sm:$0xf]
    %v4469 = vld [vmem:[%s5 + $0x54] sm:$0xf]
    %v4470 = vld [vmem:[%s5 + $0x58] sm:$0xf]
    %v4471 = vld [vmem:[%s5 + $0x5c] sm:$0xf]
    %v4472 = vld [vmem:[%s5 + $0x60] sm:$0xf]
    %v4473 = vld [vmem:[%s5 + $0x64] sm:$0xf]
    %v4474 = vld [vmem:[%s5 + $0x68] sm:$0xf]
    %v4475 = vld [vmem:[%s5 + $0x6c] sm:$0xf]
    %v4476 = vld [vmem:[%s5 + $0x70] sm:$0xf]
    %v4477 = vld [vmem:[%s5 + $0x74] sm:$0xf]
    %v4478 = vld [vmem:[%s5 + $0x78] sm:$0xf]
    %v4479 = vld [vmem:[%s5 + $0x7c] sm:$0xf]
    %v4480 = vld [vmem:[#allocation4 + $0x40] sm:$0xff]
    %v4481 = vld [vmem:[#allocation4 + $0x48] sm:$0xff]
    %v4482 = vld [vmem:[#allocation4 + $0x50] sm:$0xff]
    %v4483 = vld [vmem:[#allocation4 + $0x58] sm:$0xff]
    %v4484 = vld [vmem:[#allocation4 + $0x60] sm:$0xff]
    %v4485 = vld [vmem:[#allocation4 + $0x68] sm:$0xff]
    %v4486 = vld [vmem:[#allocation4 + $0x70] sm:$0xff]
    %v4487 = vld [vmem:[#allocation4 + $0x78] sm:$0xff]
    %v4488 = vmax.f32 %v4480, %v4484
    %v4489 = vmax.f32 %v4481, %v4485
    %v4490 = vmax.f32 %v4482, %v4486
    %v4491 = vmax.f32 %v4483, %v4487
    %v4492 = vmax.f32 %v4488, %v4490
    %v4493 = vmax.f32 %v4489, %v4491
    %v4494 = vadd.f32 %v4492, %v4435
    %v4495 = vadd.f32 %v4493, %v4439
    %v4496 = vmax.f32 %v4494, 0.0
    %v4497 = vmax.f32 %v4495, 0.0
    %v4498 = vpack.c.bf16 %v4496, %v4496
    %v4499 = vpack.c.bf16 %v4497, %v4497
    %s4500 = scalar_lea.vmem %s5, 128
    %v4501 = vld [vmem:[%s4500] sm:$0xf]
    %v4502 = vld [vmem:[%s4500 + $0x4] sm:$0xf]
    %v4503 = vld [vmem:[%s4500 + $0x8] sm:$0xf]
    %v4504 = vld [vmem:[%s4500 + $0xc] sm:$0xf]
    %v4505 = vld [vmem:[%s4500 + $0x10] sm:$0xf]
    %v4506 = vld [vmem:[%s4500 + $0x14] sm:$0xf]
    %v4507 = vld [vmem:[%s4500 + $0x18] sm:$0xf]
    %v4508 = vld [vmem:[%s4500 + $0x1c] sm:$0xf]
    %v4509 = vld [vmem:[%s4500 + $0x20] sm:$0xf]
    %v4510 = vld [vmem:[%s4500 + $0x24] sm:$0xf]
    %v4511 = vld [vmem:[%s4500 + $0x28] sm:$0xf]
    %v4512 = vld [vmem:[%s4500 + $0x2c] sm:$0xf]
    %v4513 = vld [vmem:[%s4500 + $0x30] sm:$0xf]
    %v4514 = vld [vmem:[%s4500 + $0x34] sm:$0xf]
    %v4515 = vld [vmem:[%s4500 + $0x38] sm:$0xf]
    %v4516 = vld [vmem:[%s4500 + $0x3c] sm:$0xf]
    %v4517 = vld [vmem:[%s4500 + $0x40] sm:$0xf]
    %v4518 = vld [vmem:[%s4500 + $0x44] sm:$0xf]
    %v4519 = vld [vmem:[%s4500 + $0x48] sm:$0xf]
    %v4520 = vld [vmem:[%s4500 + $0x4c] sm:$0xf]
    %v4521 = vld [vmem:[%s4500 + $0x50] sm:$0xf]
    %v4522 = vld [vmem:[%s4500 + $0x54] sm:$0xf]
    %v4523 = vld [vmem:[%s4500 + $0x58] sm:$0xf]
    %v4524 = vld [vmem:[%s4500 + $0x5c] sm:$0xf]
    %v4525 = vld [vmem:[%s4500 + $0x60] sm:$0xf]
    %v4526 = vld [vmem:[%s4500 + $0x64] sm:$0xf]
    %v4527 = vld [vmem:[%s4500 + $0x68] sm:$0xf]
    %v4528 = vld [vmem:[%s4500 + $0x6c] sm:$0xf]
    %v4529 = vld [vmem:[%s4500 + $0x70] sm:$0xf]
    %v4530 = vld [vmem:[%s4500 + $0x74] sm:$0xf]
    %v4531 = vld [vmem:[%s4500 + $0x78] sm:$0xf]
    %v4532 = vld [vmem:[%s4500 + $0x7c] sm:$0xf]
    %v4565 = vunpack.c.l.b16 %v4501
    %v4566 = vunpack.c.l.b16 %v4502
    %v4567 = vunpack.c.l.b16 %v4503
    %v4568 = vunpack.c.l.b16 %v4504
    %v4569 = vunpack.c.l.b16 %v4505
    %v4570 = vunpack.c.l.b16 %v4506
    %v4571 = vunpack.c.l.b16 %v4507
    %v4572 = vunpack.c.l.b16 %v4508
    %v4573 = vunpack.c.l.b16 %v4509
    %v4574 = vunpack.c.l.b16 %v4510
    %v4575 = vunpack.c.l.b16 %v4511
    %v4576 = vunpack.c.l.b16 %v4512
    %v4577 = vunpack.c.l.b16 %v4513
    %v4578 = vunpack.c.l.b16 %v4514
    %v4579 = vunpack.c.l.b16 %v4515
    %v4580 = vunpack.c.l.b16 %v4516
    %v4581 = vunpack.c.l.b16 %v4517
    %v4582 = vunpack.c.l.b16 %v4518
    %v4583 = vunpack.c.l.b16 %v4519
    %v4584 = vunpack.c.l.b16 %v4520
    %v4585 = vunpack.c.l.b16 %v4521
    %v4586 = vunpack.c.l.b16 %v4522
    %v4587 = vunpack.c.l.b16 %v4523
    %v4588 = vunpack.c.l.b16 %v4524
    %v4589 = vunpack.c.l.b16 %v4525
    %v4590 = vunpack.c.l.b16 %v4526
    %v4591 = vunpack.c.l.b16 %v4527
    %v4592 = vunpack.c.l.b16 %v4528
    %v4593 = vunpack.c.l.b16 %v4529
    %v4594 = vunpack.c.l.b16 %v4530
    %v4595 = vunpack.c.l.b16 %v4531
    %v4596 = vunpack.c.l.b16 %v4532
    %v4597 = vpack.c.b16 %v4566, %v4565
    %v4598 = vpack.c.b16 %v4568, %v4567
    %v4599 = vpack.c.b16 %v4570, %v4569
    %v4600 = vpack.c.b16 %v4572, %v4571
    %v4601 = vpack.c.b16 %v4574, %v4573
    %v4602 = vpack.c.b16 %v4576, %v4575
    %v4603 = vpack.c.b16 %v4578, %v4577
    %v4604 = vpack.c.b16 %v4580, %v4579
    %v4605 = vpack.c.b16 %v4582, %v4581
    %v4606 = vpack.c.b16 %v4584, %v4583
    %v4607 = vpack.c.b16 %v4586, %v4585
    %v4608 = vpack.c.b16 %v4588, %v4587
    %v4609 = vpack.c.b16 %v4590, %v4589
    %v4610 = vpack.c.b16 %v4592, %v4591
    %v4611 = vpack.c.b16 %v4594, %v4593
    %v4612 = vpack.c.b16 %v4596, %v4595
    %4629 = vmatprep.subr.bf16.mxu0 0
    %4630 = vmatpush1.bf16.msra.mxu0 %v4597
    %4631 = vmatprep.subr.bf16.mxu0 0
    %4632 = vmatpush1.bf16.msra.mxu0 %v4598
    %4633 = vmatprep.subr.bf16.mxu0 0
    %4634 = vmatpush1.bf16.msra.mxu0 %v4599
    %4635 = vmatprep.subr.bf16.mxu0 0
    %4636 = vmatpush1.bf16.msra.mxu0 %v4600
    %4637 = vmatprep.subr.bf16.mxu0 0
    %4638 = vmatpush1.bf16.msra.mxu0 %v4601
    %4639 = vmatprep.subr.bf16.mxu0 0
    %4640 = vmatpush1.bf16.msra.mxu0 %v4602
    %4641 = vmatprep.subr.bf16.mxu0 0
    %4642 = vmatpush1.bf16.msra.mxu0 %v4603
    %4643 = vmatprep.subr.bf16.mxu0 0
    %4644 = vmatpush1.bf16.msra.mxu0 %v4604
    %4645 = vmatprep.subr.bf16.mxu0 0
    %4646 = vmatpush1.bf16.msra.mxu0 %v4605
    %4647 = vmatprep.subr.bf16.mxu0 0
    %4648 = vmatpush1.bf16.msra.mxu0 %v4606
    %4649 = vmatprep.subr.bf16.mxu0 0
    %4650 = vmatpush1.bf16.msra.mxu0 %v4607
    %4651 = vmatprep.subr.bf16.mxu0 0
    %4652 = vmatpush1.bf16.msra.mxu0 %v4608
    %4653 = vmatprep.subr.bf16.mxu0 0
    %4654 = vmatpush1.bf16.msra.mxu0 %v4609
    %4655 = vmatprep.subr.bf16.mxu0 0
    %4656 = vmatpush1.bf16.msra.mxu0 %v4610
    %4657 = vmatprep.subr.bf16.mxu0 0
    %4658 = vmatpush1.bf16.msra.mxu0 %v4611
    %4659 = vmatprep.subr.bf16.mxu0 0
    %4660 = vmatpush1.bf16.msra.mxu0 %v4612
    %4661 = vmatprep.mubr.bf16.mxu0 %v4499
    %4662 = vmatmul.mubr.bf16.gmra.mrb[0].mxu0 %v4498
    %v4663 = vpop.f32.mrb[0].mxu0
    %v4664 = vadd.f32 0.0, %v4663
    %v4665 = vpop.f32.mrb[0].mxu0
    %v4666 = vpop.f32.mrb[0].mxu0
    %v4667 = vpop.f32.mrb[0].mxu0
    %4668 = vdwg.mxu0
    %v4701 = vunpack.c.l.b16 %v4448
    %v4702 = vunpack.c.l.b16 %v4449
    %v4703 = vunpack.c.l.b16 %v4450
    %v4704 = vunpack.c.l.b16 %v4451
    %v4705 = vunpack.c.l.b16 %v4452
    %v4706 = vunpack.c.l.b16 %v4453
    %v4707 = vunpack.c.l.b16 %v4454
    %v4708 = vunpack.c.l.b16 %v4455
    %v4709 = vunpack.c.l.b16 %v4456
    %v4710 = vunpack.c.l.b16 %v4457
    %v4711 = vunpack.c.l.b16 %v4458
    %v4712 = vunpack.c.l.b16 %v4459
    %v4713 = vunpack.c.l.b16 %v4460
    %v4714 = vunpack.c.l.b16 %v4461
    %v4715 = vunpack.c.l.b16 %v4462
    %v4716 = vunpack.c.l.b16 %v4463
    %v4717 = vunpack.c.l.b16 %v4464
    %v4718 = vunpack.c.l.b16 %v4465
    %v4719 = vunpack.c.l.b16 %v4466
    %v4720 = vunpack.c.l.b16 %v4467
    %v4721 = vunpack.c.l.b16 %v4468
    %v4722 = vunpack.c.l.b16 %v4469
    %v4723 = vunpack.c.l.b16 %v4470
    %v4724 = vunpack.c.l.b16 %v4471
    %v4725 = vunpack.c.l.b16 %v4472
    %v4726 = vunpack.c.l.b16 %v4473
    %v4727 = vunpack.c.l.b16 %v4474
    %v4728 = vunpack.c.l.b16 %v4475
    %v4729 = vunpack.c.l.b16 %v4476
    %v4730 = vunpack.c.l.b16 %v4477
    %v4731 = vunpack.c.l.b16 %v4478
    %v4732 = vunpack.c.l.b16 %v4479
    %v4733 = vpack.c.b16 %v4702, %v4701
    %v4734 = vpack.c.b16 %v4704, %v4703
    %v4735 = vpack.c.b16 %v4706, %v4705
    %v4736 = vpack.c.b16 %v4708, %v4707
    %v4737 = vpack.c.b16 %v4710, %v4709
    %v4738 = vpack.c.b16 %v4712, %v4711
    %v4739 = vpack.c.b16 %v4714, %v4713
    %v4740 = vpack.c.b16 %v4716, %v4715
    %v4741 = vpack.c.b16 %v4718, %v4717
    %v4742 = vpack.c.b16 %v4720, %v4719
    %v4743 = vpack.c.b16 %v4722, %v4721
    %v4744 = vpack.c.b16 %v4724, %v4723
    %v4745 = vpack.c.b16 %v4726, %v4725
    %v4746 = vpack.c.b16 %v4728, %v4727
    %v4747 = vpack.c.b16 %v4730, %v4729
    %v4748 = vpack.c.b16 %v4732, %v4731
    %4765 = vmatprep.subr.bf16.mxu0 0
    %4766 = vmatpush1.bf16.msra.mxu0 %v4733
    %4767 = vmatprep.subr.bf16.mxu0 0
    %4768 = vmatpush1.bf16.msra.mxu0 %v4734
    %4769 = vmatprep.subr.bf16.mxu0 0
    %4770 = vmatpush1.bf16.msra.mxu0 %v4735
    %4771 = vmatprep.subr.bf16.mxu0 0
    %4772 = vmatpush1.bf16.msra.mxu0 %v4736
    %4773 = vmatprep.subr.bf16.mxu0 0
    %4774 = vmatpush1.bf16.msra.mxu0 %v4737
    %4775 = vmatprep.subr.bf16.mxu0 0
    %4776 = vmatpush1.bf16.msra.mxu0 %v4738
    %4777 = vmatprep.subr.bf16.mxu0 0
    %4778 = vmatpush1.bf16.msra.mxu0 %v4739
    %4779 = vmatprep.subr.bf16.mxu0 0
    %4780 = vmatpush1.bf16.msra.mxu0 %v4740
    %4781 = vmatprep.subr.bf16.mxu0 0
    %4782 = vmatpush1.bf16.msra.mxu0 %v4741
    %4783 = vmatprep.subr.bf16.mxu0 0
    %4784 = vmatpush1.bf16.msra.mxu0 %v4742
    %4785 = vmatprep.subr.bf16.mxu0 0
    %4786 = vmatpush1.bf16.msra.mxu0 %v4743
    %4787 = vmatprep.subr.bf16.mxu0 0
    %4788 = vmatpush1.bf16.msra.mxu0 %v4744
    %4789 = vmatprep.subr.bf16.mxu0 0
    %4790 = vmatpush1.bf16.msra.mxu0 %v4745
    %4791 = vmatprep.subr.bf16.mxu0 0
    %4792 = vmatpush1.bf16.msra.mxu0 %v4746
    %4793 = vmatprep.subr.bf16.mxu0 0
    %4794 = vmatpush1.bf16.msra.mxu0 %v4747
    %4795 = vmatprep.subr.bf16.mxu0 0
    %4796 = vmatpush1.bf16.msra.mxu0 %v4748
    %4797 = vmatprep.mubr.bf16.mxu0 %v4447
    %4798 = vmatmul.mubr.bf16.gmra.mrb[0].mxu0 %v4446
    %v4799 = vpop.f32.mrb[0].mxu0
    %v4800 = vadd.f32 %v4664, %v4799
    %v4801 = vpop.f32.mrb[0].mxu0
    %v4802 = vpop.f32.mrb[0].mxu0
    %v4803 = vpop.f32.mrb[0].mxu0
    %4804 = vdwg.mxu0
    %v4805 = vld [vmem:[#allocation4 + $0x80] sm:$0xff]
    %v4806 = vld [vmem:[#allocation4 + $0x88] sm:$0xff]
    %v4807 = vld [vmem:[#allocation4 + $0x90] sm:$0xff]
    %v4808 = vld [vmem:[#allocation4 + $0x98] sm:$0xff]
    %v4809 = vld [vmem:[#allocation4 + $0xa0] sm:$0xff]
    %v4810 = vld [vmem:[#allocation4 + $0xa8] sm:$0xff]
    %v4811 = vld [vmem:[#allocation4 + $0xb0] sm:$0xff]
    %v4812 = vld [vmem:[#allocation4 + $0xb8] sm:$0xff]
    %v4813 = vmax.f32 %v4805, %v4809
    %v4814 = vmax.f32 %v4806, %v4810
    %v4815 = vmax.f32 %v4807, %v4811
    %v4816 = vmax.f32 %v4808, %v4812
    %v4817 = vmax.f32 %v4813, %v4815
    %v4818 = vmax.f32 %v4814, %v4816
    %v4819 = vadd.f32 %v4817, %v4435
    %v4820 = vadd.f32 %v4818, %v4439
    %v4821 = vmax.f32 %v4819, 0.0
    %v4822 = vmax.f32 %v4820, 0.0
    %v4823 = vpack.c.bf16 %v4821, %v4821
    %v4824 = vpack.c.bf16 %v4822, %v4822
    %s4825 = scalar_lea.vmem %s5, 256
    %v4826 = vld [vmem:[%s4825] sm:$0xf]
    %v4827 = vld [vmem:[%s4825 + $0x4] sm:$0xf]
    %v4828 = vld [vmem:[%s4825 + $0x8] sm:$0xf]
    %v4829 = vld [vmem:[%s4825 + $0xc] sm:$0xf]
    %v4830 = vld [vmem:[%s4825 + $0x10] sm:$0xf]
    %v4831 = vld [vmem:[%s4825 + $0x14] sm:$0xf]
    %v4832 = vld [vmem:[%s4825 + $0x18] sm:$0xf]
    %v4833 = vld [vmem:[%s4825 + $0x1c] sm:$0xf]
    %v4834 = vld [vmem:[%s4825 + $0x20] sm:$0xf]
    %v4835 = vld [vmem:[%s4825 + $0x24] sm:$0xf]
    %v4836 = vld [vmem:[%s4825 + $0x28] sm:$0xf]
    %v4837 = vld [vmem:[%s4825 + $0x2c] sm:$0xf]
    %v4838 = vld [vmem:[%s4825 + $0x30] sm:$0xf]
    %v4839 = vld [vmem:[%s4825 + $0x34] sm:$0xf]
    %v4840 = vld [vmem:[%s4825 + $0x38] sm:$0xf]
    %v4841 = vld [vmem:[%s4825 + $0x3c] sm:$0xf]
    %v4842 = vld [vmem:[%s4825 + $0x40] sm:$0xf]
    %v4843 = vld [vmem:[%s4825 + $0x44] sm:$0xf]
    %v4844 = vld [vmem:[%s4825 + $0x48] sm:$0xf]
    %v4845 = vld [vmem:[%s4825 + $0x4c] sm:$0xf]
    %v4846 = vld [vmem:[%s4825 + $0x50] sm:$0xf]
    %v4847 = vld [vmem:[%s4825 + $0x54] sm:$0xf]
    %v4848 = vld [vmem:[%s4825 + $0x58] sm:$0xf]
    %v4849 = vld [vmem:[%s4825 + $0x5c] sm:$0xf]
    %v4850 = vld [vmem:[%s4825 + $0x60] sm:$0xf]
    %v4851 = vld [vmem:[%s4825 + $0x64] sm:$0xf]
    %v4852 = vld [vmem:[%s4825 + $0x68] sm:$0xf]
    %v4853 = vld [vmem:[%s4825 + $0x6c] sm:$0xf]
    %v4854 = vld [vmem:[%s4825 + $0x70] sm:$0xf]
    %v4855 = vld [vmem:[%s4825 + $0x74] sm:$0xf]
    %v4856 = vld [vmem:[%s4825 + $0x78] sm:$0xf]
    %v4857 = vld [vmem:[%s4825 + $0x7c] sm:$0xf]
    %v4890 = vunpack.c.l.b16 %v4826
    %v4891 = vunpack.c.l.b16 %v4827
    %v4892 = vunpack.c.l.b16 %v4828
    %v4893 = vunpack.c.l.b16 %v4829
    %v4894 = vunpack.c.l.b16 %v4830
    %v4895 = vunpack.c.l.b16 %v4831
    %v4896 = vunpack.c.l.b16 %v4832
    %v4897 = vunpack.c.l.b16 %v4833
    %v4898 = vunpack.c.l.b16 %v4834
    %v4899 = vunpack.c.l.b16 %v4835
    %v4900 = vunpack.c.l.b16 %v4836
    %v4901 = vunpack.c.l.b16 %v4837
    %v4902 = vunpack.c.l.b16 %v4838
    %v4903 = vunpack.c.l.b16 %v4839
    %v4904 = vunpack.c.l.b16 %v4840
    %v4905 = vunpack.c.l.b16 %v4841
    %v4906 = vunpack.c.l.b16 %v4842
    %v4907 = vunpack.c.l.b16 %v4843
    %v4908 = vunpack.c.l.b16 %v4844
    %v4909 = vunpack.c.l.b16 %v4845
    %v4910 = vunpack.c.l.b16 %v4846
    %v4911 = vunpack.c.l.b16 %v4847
    %v4912 = vunpack.c.l.b16 %v4848
    %v4913 = vunpack.c.l.b16 %v4849
    %v4914 = vunpack.c.l.b16 %v4850
    %v4915 = vunpack.c.l.b16 %v4851
    %v4916 = vunpack.c.l.b16 %v4852
    %v4917 = vunpack.c.l.b16 %v4853
    %v4918 = vunpack.c.l.b16 %v4854
    %v4919 = vunpack.c.l.b16 %v4855
    %v4920 = vunpack.c.l.b16 %v4856
    %v4921 = vunpack.c.l.b16 %v4857
    %v4922 = vpack.c.b16 %v4891, %v4890
    %v4923 = vpack.c.b16 %v4893, %v4892
    %v4924 = vpack.c.b16 %v4895, %v4894
    %v4925 = vpack.c.b16 %v4897, %v4896
    %v4926 = vpack.c.b16 %v4899, %v4898
    %v4927 = vpack.c.b16 %v4901, %v4900
    %v4928 = vpack.c.b16 %v4903, %v4902
    %v4929 = vpack.c.b16 %v4905, %v4904
    %v4930 = vpack.c.b16 %v4907, %v4906
    %v4931 = vpack.c.b16 %v4909, %v4908
    %v4932 = vpack.c.b16 %v4911, %v4910
    %v4933 = vpack.c.b16 %v4913, %v4912
    %v4934 = vpack.c.b16 %v4915, %v4914
    %v4935 = vpack.c.b16 %v4917, %v4916
    %v4936 = vpack.c.b16 %v4919, %v4918
    %v4937 = vpack.c.b16 %v4921, %v4920
    %4954 = vmatprep.subr.bf16.mxu0 0
    %4955 = vmatpush1.bf16.msra.mxu0 %v4922
    %4956 = vmatprep.subr.bf16.mxu0 0
    %4957 = vmatpush1.bf16.msra.mxu0 %v4923
    %4958 = vmatprep.subr.bf16.mxu0 0
    %4959 = vmatpush1.bf16.msra.mxu0 %v4924
    %4960 = vmatprep.subr.bf16.mxu0 0
    %4961 = vmatpush1.bf16.msra.mxu0 %v4925
    %4962 = vmatprep.subr.bf16.mxu0 0
    %4963 = vmatpush1.bf16.msra.mxu0 %v4926
    %4964 = vmatprep.subr.bf16.mxu0 0
    %4965 = vmatpush1.bf16.msra.mxu0 %v4927
    %4966 = vmatprep.subr.bf16.mxu0 0
    %4967 = vmatpush1.bf16.msra.mxu0 %v4928
    %4968 = vmatprep.subr.bf16.mxu0 0
    %4969 = vmatpush1.bf16.msra.mxu0 %v4929
    %4970 = vmatprep.subr.bf16.mxu0 0
    %4971 = vmatpush1.bf16.msra.mxu0 %v4930
    %4972 = vmatprep.subr.bf16.mxu0 0
    %4973 = vmatpush1.bf16.msra.mxu0 %v4931
    %4974 = vmatprep.subr.bf16.mxu0 0
    %4975 = vmatpush1.bf16.msra.mxu0 %v4932
    %4976 = vmatprep.subr.bf16.mxu0 0
    %4977 = vmatpush1.bf16.msra.mxu0 %v4933
    %4978 = vmatprep.subr.bf16.mxu0 0
    %4979 = vmatpush1.bf16.msra.mxu0 %v4934
    %4980 = vmatprep.subr.bf16.mxu0 0
    %4981 = vmatpush1.bf16.msra.mxu0 %v4935
    %4982 = vmatprep.subr.bf16.mxu0 0
    %4983 = vmatpush1.bf16.msra.mxu0 %v4936
    %4984 = vmatprep.subr.bf16.mxu0 0
    %4985 = vmatpush1.bf16.msra.mxu0 %v4937
    %4986 = vmatprep.mubr.bf16.mxu0 %v4824
    %4987 = vmatmul.mubr.bf16.gmra.mrb[0].mxu0 %v4823
    %v4988 = vpop.f32.mrb[0].mxu0
    %v4989 = vadd.f32 0.0, %v4988
    %v4990 = vpop.f32.mrb[0].mxu0
    %v4991 = vpop.f32.mrb[0].mxu0
    %v4992 = vpop.f32.mrb[0].mxu0
    %4993 = vdwg.mxu0
    %v4994 = vadd.f32 %v4800, %v4989
    %v4995 = vld [vmem:[#allocation4 + $0xc0] sm:$0xff]
    %v4996 = vld [vmem:[#allocation4 + $0xc8] sm:$0xff]
    %v4997 = vld [vmem:[#allocation4 + $0xd0] sm:$0xff]
    %v4998 = vld [vmem:[#allocation4 + $0xd8] sm:$0xff]
    %v4999 = vld [vmem:[#allocation4 + $0xe0] sm:$0xff]
    %v5000 = vld [vmem:[#allocation4 + $0xe8] sm:$0xff]
    %v5001 = vld [vmem:[#allocation4 + $0xf0] sm:$0xff]
    %v5002 = vld [vmem:[#allocation4 + $0xf8] sm:$0xff]
    %v5003 = vmax.f32 %v4995, %v4999
    %v5004 = vmax.f32 %v4996, %v5000
    %v5005 = vmax.f32 %v4997, %v5001
    %v5006 = vmax.f32 %v4998, %v5002
    %v5007 = vmax.f32 %v5003, %v5005
    %v5008 = vmax.f32 %v5004, %v5006
    %v5009 = vadd.f32 %v5007, %v4435
    %v5010 = vadd.f32 %v5008, %v4439
    %v5011 = vmax.f32 %v5009, 0.0
    %v5012 = vmax.f32 %v5010, 0.0
    %v5013 = vpack.c.bf16 %v5011, %v5011
    %v5014 = vpack.c.bf16 %v5012, %v5012
    %s5015 = scalar_lea.vmem %s5, 384
    %v5016 = vld [vmem:[%s5015] sm:$0xf]
    %v5017 = vld [vmem:[%s5015 + $0x4] sm:$0xf]
    %v5018 = vld [vmem:[%s5015 + $0x8] sm:$0xf]
    %v5019 = vld [vmem:[%s5015 + $0xc] sm:$0xf]
    %v5020 = vld [vmem:[%s5015 + $0x10] sm:$0xf]
    %v5021 = vld [vmem:[%s5015 + $0x14] sm:$0xf]
    %v5022 = vld [vmem:[%s5015 + $0x18] sm:$0xf]
    %v5023 = vld [vmem:[%s5015 + $0x1c] sm:$0xf]
    %v5024 = vld [vmem:[%s5015 + $0x20] sm:$0xf]
    %v5025 = vld [vmem:[%s5015 + $0x24] sm:$0xf]
    %v5026 = vld [vmem:[%s5015 + $0x28] sm:$0xf]
    %v5027 = vld [vmem:[%s5015 + $0x2c] sm:$0xf]
    %v5028 = vld [vmem:[%s5015 + $0x30] sm:$0xf]
    %v5029 = vld [vmem:[%s5015 + $0x34] sm:$0xf]
    %v5030 = vld [vmem:[%s5015 + $0x38] sm:$0xf]
    %v5031 = vld [vmem:[%s5015 + $0x3c] sm:$0xf]
    %v5032 = vld [vmem:[%s5015 + $0x40] sm:$0xf]
    %v5033 = vld [vmem:[%s5015 + $0x44] sm:$0xf]
    %v5034 = vld [vmem:[%s5015 + $0x48] sm:$0xf]
    %v5035 = vld [vmem:[%s5015 + $0x4c] sm:$0xf]
    %v5036 = vld [vmem:[%s5015 + $0x50] sm:$0xf]
    %v5037 = vld [vmem:[%s5015 + $0x54] sm:$0xf]
    %v5038 = vld [vmem:[%s5015 + $0x58] sm:$0xf]
    %v5039 = vld [vmem:[%s5015 + $0x5c] sm:$0xf]
    %v5040 = vld [vmem:[%s5015 + $0x60] sm:$0xf]
    %v5041 = vld [vmem:[%s5015 + $0x64] sm:$0xf]
    %v5042 = vld [vmem:[%s5015 + $0x68] sm:$0xf]
    %v5043 = vld [vmem:[%s5015 + $0x6c] sm:$0xf]
    %v5044 = vld [vmem:[%s5015 + $0x70] sm:$0xf]
    %v5045 = vld [vmem:[%s5015 + $0x74] sm:$0xf]
    %v5046 = vld [vmem:[%s5015 + $0x78] sm:$0xf]
    %v5047 = vld [vmem:[%s5015 + $0x7c] sm:$0xf]
    %v5080 = vunpack.c.l.b16 %v5016
    %v5081 = vunpack.c.l.b16 %v5017
    %v5082 = vunpack.c.l.b16 %v5018
    %v5083 = vunpack.c.l.b16 %v5019
    %v5084 = vunpack.c.l.b16 %v5020
    %v5085 = vunpack.c.l.b16 %v5021
    %v5086 = vunpack.c.l.b16 %v5022
    %v5087 = vunpack.c.l.b16 %v5023
    %v5088 = vunpack.c.l.b16 %v5024
    %v5089 = vunpack.c.l.b16 %v5025
    %v5090 = vunpack.c.l.b16 %v5026
    %v5091 = vunpack.c.l.b16 %v5027
    %v5092 = vunpack.c.l.b16 %v5028
    %v5093 = vunpack.c.l.b16 %v5029
    %v5094 = vunpack.c.l.b16 %v5030
    %v5095 = vunpack.c.l.b16 %v5031
    %v5096 = vunpack.c.l.b16 %v5032
    %v5097 = vunpack.c.l.b16 %v5033
    %v5098 = vunpack.c.l.b16 %v5034
    %v5099 = vunpack.c.l.b16 %v5035
    %v5100 = vunpack.c.l.b16 %v5036
    %v5101 = vunpack.c.l.b16 %v5037
    %v5102 = vunpack.c.l.b16 %v5038
    %v5103 = vunpack.c.l.b16 %v5039
    %v5104 = vunpack.c.l.b16 %v5040
    %v5105 = vunpack.c.l.b16 %v5041
    %v5106 = vunpack.c.l.b16 %v5042
    %v5107 = vunpack.c.l.b16 %v5043
    %v5108 = vunpack.c.l.b16 %v5044
    %v5109 = vunpack.c.l.b16 %v5045
    %v5110 = vunpack.c.l.b16 %v5046
    %v5111 = vunpack.c.l.b16 %v5047
    %v5112 = vpack.c.b16 %v5081, %v5080
    %v5113 = vpack.c.b16 %v5083, %v5082
    %v5114 = vpack.c.b16 %v5085, %v5084
    %v5115 = vpack.c.b16 %v5087, %v5086
    %v5116 = vpack.c.b16 %v5089, %v5088
    %v5117 = vpack.c.b16 %v5091, %v5090
    %v5118 = vpack.c.b16 %v5093, %v5092
    %v5119 = vpack.c.b16 %v5095, %v5094
    %v5120 = vpack.c.b16 %v5097, %v5096
    %v5121 = vpack.c.b16 %v5099, %v5098
    %v5122 = vpack.c.b16 %v5101, %v5100
    %v5123 = vpack.c.b16 %v5103, %v5102
    %v5124 = vpack.c.b16 %v5105, %v5104
    %v5125 = vpack.c.b16 %v5107, %v5106
    %v5126 = vpack.c.b16 %v5109, %v5108
    %v5127 = vpack.c.b16 %v5111, %v5110
    %5144 = vmatprep.subr.bf16.mxu0 0
    %5145 = vmatpush1.bf16.msra.mxu0 %v5112
    %5146 = vmatprep.subr.bf16.mxu0 0
    %5147 = vmatpush1.bf16.msra.mxu0 %v5113
    %5148 = vmatprep.subr.bf16.mxu0 0
    %5149 = vmatpush1.bf16.msra.mxu0 %v5114
    %5150 = vmatprep.subr.bf16.mxu0 0
    %5151 = vmatpush1.bf16.msra.mxu0 %v5115
    %5152 = vmatprep.subr.bf16.mxu0 0
    %5153 = vmatpush1.bf16.msra.mxu0 %v5116
    %5154 = vmatprep.subr.bf16.mxu0 0
    %5155 = vmatpush1.bf16.msra.mxu0 %v5117
    %5156 = vmatprep.subr.bf16.mxu0 0
    %5157 = vmatpush1.bf16.msra.mxu0 %v5118
    %5158 = vmatprep.subr.bf16.mxu0 0
    %5159 = vmatpush1.bf16.msra.mxu0 %v5119
    %5160 = vmatprep.subr.bf16.mxu0 0
    %5161 = vmatpush1.bf16.msra.mxu0 %v5120
    %5162 = vmatprep.subr.bf16.mxu0 0
    %5163 = vmatpush1.bf16.msra.mxu0 %v5121
    %5164 = vmatprep.subr.bf16.mxu0 0
    %5165 = vmatpush1.bf16.msra.mxu0 %v5122
    %5166 = vmatprep.subr.bf16.mxu0 0
    %5167 = vmatpush1.bf16.msra.mxu0 %v5123
    %5168 = vmatprep.subr.bf16.mxu0 0
    %5169 = vmatpush1.bf16.msra.mxu0 %v5124
    %5170 = vmatprep.subr.bf16.mxu0 0
    %5171 = vmatpush1.bf16.msra.mxu0 %v5125
    %5172 = vmatprep.subr.bf16.mxu0 0
    %5173 = vmatpush1.bf16.msra.mxu0 %v5126
    %5174 = vmatprep.subr.bf16.mxu0 0
    %5175 = vmatpush1.bf16.msra.mxu0 %v5127
    %5176 = vmatprep.mubr.bf16.mxu0 %v5014
    %5177 = vmatmul.mubr.bf16.gmra.mrb[0].mxu0 %v5013
    %v5178 = vpop.f32.mrb[0].mxu0
    %v5179 = vadd.f32 0.0, %v5178
    %v5180 = vpop.f32.mrb[0].mxu0
    %v5181 = vpop.f32.mrb[0].mxu0
    %v5182 = vpop.f32.mrb[0].mxu0
    %5183 = vdwg.mxu0
    %v5184 = vadd.f32 %v4994, %v5179
    %v5185 = vld [vmem:[#allocation13] sm:$0x1]
    %v5187 = vlaneseq
    %v5188 = vshrl.u32 %v5187, 7
    %v5189 = vsub.s32 0, %v5188
    %v5190 = vrot.slane %v5185, %v5189
    %v5192 = vadd.f32 %v5184, %v5190
    %v5193 = vmax.f32 %v5192, 0.0
    %v5194 = vpack.c.bf16 %v5193, %v5193
    %v5195 = vld [vmem:[#allocation14] sm:$0xf]
    %v5196 = vld [vmem:[#allocation14 + $0x4] sm:$0xf]
    %v5197 = vld [vmem:[#allocation14 + $0x8] sm:$0xf]
    %v5198 = vld [vmem:[#allocation14 + $0xc] sm:$0xf]
    %v5199 = vld [vmem:[#allocation16] sm:$0x1]
    %v5201 = vlaneseq
    %v5202 = vshrl.u32 %v5201, 7
    %v5203 = vsub.s32 0, %v5202
    %v5204 = vrot.slane %v5199, %v5203
    %v5210 = vunpack.c.l.b16 %v5195
    %v5211 = vunpack.c.l.b16 %v5196
    %v5212 = vunpack.c.l.b16 %v5197
    %v5213 = vunpack.c.l.b16 %v5198
    %v5214 = vpack.c.b16 %v5211, %v5210
    %v5215 = vpack.c.b16 %v5213, %v5212
    %vm5218 = vcmask 261120
    %v5220 = vsel %vm5218, %v5194, 0
    %5222 = vmatprep.subr.bf16.mxu0 0
    %5223 = vmatpush1.bf16.msra.mxu0 %v5214
    %5224 = vmatprep.subr.bf16.mxu0 0
    %5225 = vmatpush1.bf16.msra.mxu0 %v5215
    %5226 = vmatprep.subr.bf16.mxu0 0
    %5227 = vmatpush1.bf16.msra.mxu0 0
    %5228 = vmatprep.subr.bf16.mxu0 0
    %5229 = vmatpush1.bf16.msra.mxu0 0
    %5230 = vmatprep.subr.bf16.mxu0 0
    %5231 = vmatpush1.bf16.msra.mxu0 0
    %5232 = vmatprep.subr.bf16.mxu0 0
    %5233 = vmatpush1.bf16.msra.mxu0 0
    %5234 = vmatprep.subr.bf16.mxu0 0
    %5235 = vmatpush1.bf16.msra.mxu0 0
    %5236 = vmatprep.subr.bf16.mxu0 0
    %5237 = vmatpush1.bf16.msra.mxu0 0
    %5238 = vmatprep.subr.bf16.mxu0 0
    %5239 = vmatpush1.bf16.msra.mxu0 0
    %5240 = vmatprep.subr.bf16.mxu0 0
    %5241 = vmatpush1.bf16.msra.mxu0 0
    %5242 = vmatprep.subr.bf16.mxu0 0
    %5243 = vmatpush1.bf16.msra.mxu0 0
    %5244 = vmatprep.subr.bf16.mxu0 0
    %5245 = vmatpush1.bf16.msra.mxu0 0
    %5246 = vmatprep.subr.bf16.mxu0 0
    %5247 = vmatpush1.bf16.msra.mxu0 0
    %5248 = vmatprep.subr.bf16.mxu0 0
    %5249 = vmatpush1.bf16.msra.mxu0 0
    %5250 = vmatprep.subr.bf16.mxu0 0
    %5251 = vmatpush1.bf16.msra.mxu0 0
    %5252 = vmatprep.subr.bf16.mxu0 0
    %5253 = vmatpush1.bf16.msra.mxu0 0
    %5254 = vmatprep.mubr.bf16.mxu0 0
    %5255 = vmatmul.mubr.bf16.gmra.mrb[0].mxu0 %v5220
    %v5256 = vpop.f32.mrb[0].mxu0
    %v5257 = vadd.f32 %v5204, %v5256
    %v5258 = vpop.f32.mrb[0].mxu0
    %v5259 = vpop.f32.mrb[0].mxu0
    %v5260 = vpop.f32.mrb[0].mxu0
    %5261 = vdwg.mxu0
    %5262 = vmax.xlane.f32.xlu0 %v5257
    %v5263 = vpop.xlane.xlu0 %5262
    %v5264 = vsub.f32 %v5257, %v5263
    %v5265 = vmul.f32 %v5264, 1.442695
    %v5266 = vpow.pop %v5265
    %5267 = vadd.xlane.f32.xlu0 %v5266
    %v5268 = vpop.xlane.xlu0 %5267
    %v5269 = vlog2.pop %v5268
    %v5270 = vmul.f32 %v5269, 0.6931472
    %v5271 = vsub.f32 %v5264, %v5270
    %5272 = vst [vmem:[#allocation17] sm:$0xff] %v5271
    // Predicated region
    $region66: #{tpu_custom_call.1} parent=1 // pred_check
      _
    $region67: #{tpu_custom_call.1} parent=1 // pred_check_branch
      %5274 = sbr.rel (0) target = $region69
    $region68: #{tpu_custom_call.1} parent=1 // pred_region
      %s5276 = ssub.s32 128, 128
      %5277 = vsyncadd [#allocation7], %s5276
      %s5279 = sshll.u32 [#allocation17], 4
      %s5280 = int_to_ptr.vmem [resolvable:$true] %s5279
      %5282 = dma.vmem_to_hbm [thread:$0]  %s5280, 128, %s9, [#allocation7]
    $region69: #{tpu_custom_call.1} parent=1 // pred_fallthru
      _
    // Predicated region
    $region70: #{tpu_custom_call.1} parent=1 // pred_check
      _
    $region71: #{tpu_custom_call.1} parent=1 // pred_check_branch
      %5284 = sbr.rel (0) target = $region73
    $region72: #{tpu_custom_call.1} parent=1 // pred_region
      %5285 = dma.done [#allocation7], 128
    $region73: #{tpu_custom_call.1} parent=1 // pred_fallthru
      _
    %5286 = vsyncpa [#allocation6], 1
    %5287 = vsyncpa [#allocation9], 1
    %5288 = vsyncpa [#allocation12], 1
    %5289 = vsyncpa [#allocation15], 1
    %5290 = vsyncpa [#allocation7], 1

</llo_original>
